<compile_context>
chip_gen: v6e
topology: v6e:2x2x1
jax: 0.10.0
libtpu: 0.0.40
codegen_flags: <defaults>
</compile_context>

<pallas_src>
import functools
import math

import jax
import jax.numpy as jnp
from jax.experimental import pallas as pl
from jax.experimental.pallas import tpu as pltpu


# ----------------------------- Pallas kernels -----------------------------

def _entity_pipeline_kernel(node_ref, adj_rel_ref, w_relcat_ref, w_root_ref, b_rgcn_ref,
                            gather_ref, adj_ts_ref, adj_is_ref, adj_c_ref, scatter_ref,
                            ew1_ref, eb1_ref, ew2_ref, eb2_ref, ew3_ref, eb3_ref,
                            o_ref, *, num_relations, eh):
    x = node_ref[...]                                                          # (N, eh)

    # --- RGCN (basis weights pre-folded): out = x@W_root + b + sum_r A_r @ (x@W_r) ---
    msg = jnp.dot(x, w_relcat_ref[...], preferred_element_type=jnp.float32)    # (N, R*eh)
    ent = jnp.dot(x, w_root_ref[...], preferred_element_type=jnp.float32) + b_rgcn_ref[...]
    for r in range(num_relations):                                             # static unroll
        ent = ent + jnp.dot(adj_rel_ref[r], msg[:, r * eh:(r + 1) * eh],
                            preferred_element_type=jnp.float32)
    ent = ent + x                                                              # + node_embeds

    # --- movie-side GCN hops on gathered node_features (gather == one-hot matmul) ---
    nf = jnp.dot(gather_ref[...], ent, preferred_element_type=jnp.float32)     # (M, eh)
    ts1 = jnp.dot(adj_ts_ref[...], nf, preferred_element_type=jnp.float32)
    ts2 = jnp.dot(adj_ts_ref[...], ts1, preferred_element_type=jnp.float32)
    is1 = jnp.dot(adj_is_ref[...], nf, preferred_element_type=jnp.float32)
    is2 = jnp.dot(adj_is_ref[...], is1, preferred_element_type=jnp.float32)
    # (conv_ts3 / conv_is3 exist in the torch reference but never feed the output)
    movie_mean = ((ts1 + ts2) * 0.5 + (is1 + is2) * 0.5) * 0.5                 # (M, eh)

    # --- entity-side GCN hops ---
    c1 = jnp.dot(adj_c_ref[...], ent, preferred_element_type=jnp.float32)
    c2 = jnp.dot(adj_c_ref[...], c1, preferred_element_type=jnp.float32)
    c3 = jnp.dot(adj_c_ref[...], c2, preferred_element_type=jnp.float32)
    ent = (c1 + c2 + c3 + ent) * 0.25

    # --- index_add_ expressed as a scatter (one-hot^T) matmul ---
    ent = ent + jnp.dot(scatter_ref[...], movie_mean, preferred_element_type=jnp.float32)

    # --- entity_proj1 (Linear -> ReLU -> Linear) + residual, then entity_proj2 ---
    h = jnp.maximum(jnp.dot(ent, ew1_ref[...], preferred_element_type=jnp.float32)
                    + eb1_ref[...], 0.0)
    ent = jnp.dot(h, ew2_ref[...], preferred_element_type=jnp.float32) + eb2_ref[...] + ent
    o_ref[...] = jnp.dot(ent, ew3_ref[...], preferred_element_type=jnp.float32) + eb3_ref[...]


def _proj_chain_kernel(x_ref, w1_ref, b1_ref, w2_ref, b2_ref, w3_ref, b3_ref, o_ref):
    # (Linear -> ReLU -> Linear) + residual, then output Linear -- fused, VMEM-resident.
    x = x_ref[...]
    h = jnp.maximum(jnp.dot(x, w1_ref[...], preferred_element_type=jnp.float32)
                    + b1_ref[...], 0.0)
    x = jnp.dot(h, w2_ref[...], preferred_element_type=jnp.float32) + b2_ref[...] + x
    o_ref[...] = jnp.dot(x, w3_ref[...], preferred_element_type=jnp.float32) + b3_ref[...]


def _xattn_cl_kernel(tok_ref, ent_ref, wc_ref, prompt_ref, loss_ref, *, hidden_size, temperature):
    tok = tok_ref[...]                                                         # (B, T, H)
    ent = ent_ref[...]                                                         # (B, E, H)
    bsz = tok.shape[0]
    inv_h = 1.0 / float(hidden_size)

    # q = cross_attn(token);  attn[b,e,t] = <ent[b,e,:], q[b,t,:]> / hidden_size
    # (computed directly in (B, E, T) layout so the softmax axis is the lane axis and
    #  no transposed contractions are needed)
    q = jnp.einsum("bth,hk->btk", tok, wc_ref[...], preferred_element_type=jnp.float32)
    attn_et = jnp.einsum("bek,btk->bet", ent, q, preferred_element_type=jnp.float32) * inv_h

    # softmax over the token axis (torch: softmax(attn_weights, dim=1) on (B, T, E))
    m = jnp.max(attn_et, axis=-1, keepdims=True)
    p = jnp.exp(attn_et - m)
    w = p * pl.reciprocal(jnp.sum(p, axis=-1, keepdims=True), approx=True)     # (B, E, T)

    # token_weights @ token_embeds
    twe = jnp.einsum("bet,bth->beh", w, tok, preferred_element_type=jnp.float32)  # (B, E, H)
    prompt_ref[...] = twe + ent

    token_rep = jnp.mean(twe, axis=1)                                          # (B, H)
    entity_rep = jnp.mean(ent, axis=1)                                         # (B, H)

    # InfoNCE (token -> entity, labels = arange) on cosine similarities / temperature
    eps = 1e-8
    tn = token_rep / jnp.maximum(
        jnp.sqrt(jnp.sum(token_rep * token_rep, axis=-1, keepdims=True)), eps)
    en = entity_rep / jnp.maximum(
        jnp.sqrt(jnp.sum(entity_rep * entity_rep, axis=-1, keepdims=True)), eps)
    logits = jnp.einsum("bh,ch->bc", tn, en,
                        preferred_element_type=jnp.float32) / temperature      # (B, B)
    mm = jnp.max(logits, axis=-1, keepdims=True)
    lse = jnp.log(jnp.sum(jnp.exp(logits - mm), axis=-1, keepdims=True)) + mm  # (B, 1)
    eye = (jax.lax.broadcasted_iota(jnp.int32, logits.shape, 0)
           == jax.lax.broadcasted_iota(jnp.int32, logits.shape, 1)).astype(logits.dtype)
    diag = jnp.sum(logits * eye, axis=-1, keepdims=True)                       # (B, 1)
    loss_ref[...] = jnp.sum(lse - diag, axis=0, keepdims=True) / float(bsz)    # (1, 1)


# ----------------------------- pallas_call wrappers -----------------------------

_ARB = pltpu.CompilerParams(dimension_semantics=("arbitrary",))


def _full_specs(shapes):
    specs = []
    for s in shapes:
        nd = len(s)
        specs.append(pl.BlockSpec(s, lambda *args, _nd=nd: (0,) * _nd))
    return specs


def pallas_entity_pipeline(node, adj_rel, w_relcat, w_root, b_rgcn,
                           gather_mat, adj_ts, adj_is, adj_c, scatter_mat,
                           ew1, eb1, ew2, eb2, ew3, eb3):
    N, eh = node.shape
    R = adj_rel.shape[0]
    M = adj_ts.shape[0]
    Hm = ew1.shape[1]
    H = ew3.shape[1]
    kernel = functools.partial(_entity_pipeline_kernel, num_relations=R, eh=eh)
    shapes = [(N, eh), (R, N, N), (eh, R * eh), (eh, eh), (1, eh),
              (M, N), (M, M), (M, M), (N, N), (N, M),
              (eh, Hm), (1, Hm), (Hm, eh), (1, eh), (eh, H), (1, H)]
    return pl.pallas_call(
        kernel,
        out_shape=jax.ShapeDtypeStruct((N, H), jnp.float32),
        grid=(1,),
        in_specs=_full_specs(shapes),
        out_specs=pl.BlockSpec((N, H), lambda i: (0, 0)),
        compiler_params=_ARB,
    )(node, adj_rel, w_relcat, w_root, b_rgcn.reshape(1, eh),
      gather_mat, adj_ts, adj_is, adj_c, scatter_mat,
      ew1, eb1.reshape(1, Hm), ew2, eb2.reshape(1, eh), ew3, eb3.reshape(1, H))


def pallas_proj_chain(x, w1, b1, w2, b2, w3, b3):
    Mrows, K = x.shape
    Hm = w1.shape[1]
    Nout = w3.shape[1]
    shapes = [(Mrows, K), (K, Hm), (1, Hm), (Hm, K), (1, K), (K, Nout), (1, Nout)]
    return pl.pallas_call(
        _proj_chain_kernel,
        out_shape=jax.ShapeDtypeStruct((Mrows, Nout), jnp.float32),
        grid=(1,),
        in_specs=_full_specs(shapes),
        out_specs=pl.BlockSpec((Mrows, Nout), lambda i: (0, 0)),
        compiler_params=_ARB,
    )(x, w1, b1.reshape(1, Hm), w2, b2.reshape(1, K), w3, b3.reshape(1, Nout))


def pallas_cross_attention_and_loss(token_h, entity_embeds, w_cross, hidden_size,
                                    temperature=0.07):
    B, T, H = token_h.shape
    E = entity_embeds.shape[1]
    kernel = functools.partial(_xattn_cl_kernel, hidden_size=hidden_size,
                               temperature=temperature)
    prompt, loss = pl.pallas_call(
        kernel,
        out_shape=(jax.ShapeDtypeStruct((B, E, H), jnp.float32),
                   jax.ShapeDtypeStruct((1, 1), jnp.float32)),
        grid=(1,),
        in_specs=_full_specs([(B, T, H), (B, E, H), (H, H)]),
        out_specs=(pl.BlockSpec((B, E, H), lambda i: (0, 0, 0)),
                   pl.BlockSpec((1, 1), lambda i: (0, 0))),
        compiler_params=_ARB,
    )(token_h, entity_embeds, w_cross)
    return prompt, loss[0, 0]


# ----------------------------- graph glue (plain JAX) -----------------------------

def gcn_norm_adj(edge_index, num_nodes):
    # CustomGCNConv semantics: add self loops, symmetric D^-1/2 A D^-1/2, sum-aggregate
    src = jnp.concatenate([edge_index[0], jnp.arange(num_nodes)])
    dst = jnp.concatenate([edge_index[1], jnp.arange(num_nodes)])
    deg = jnp.zeros((num_nodes,), jnp.float32).at[dst].add(1.0)
    dinv = deg ** -0.5
    norm = dinv[src] * dinv[dst]
    return jnp.zeros((num_nodes, num_nodes), jnp.float32).at[dst, src].add(norm)


def rgcn_rel_adj(edge_index, edge_type, num_nodes, num_relations):
    # per-relation mean-aggregation adjacency (PyG RGCNConv default aggr='mean')
    src, dst = edge_index
    adj = jnp.zeros((num_relations, num_nodes, num_nodes), jnp.float32)
    adj = adj.at[edge_type, dst, src].add(1.0)
    deg = jnp.sum(adj, axis=-1, keepdims=True)
    return adj / jnp.maximum(deg, 1.0)


# ----------------------------- parameters -----------------------------

def make_params(key, *, hidden_size, token_hidden_size, n_layer, n_block,
                n_entity, num_relations, num_bases):
    eh = hidden_size // 2
    keys = iter(jax.random.split(key, 32))

    def lin(k, fin, fout):
        k1, k2 = jax.random.split(k)
        w = jax.random.normal(k1, (fin, fout), jnp.float32) * (1.0 / math.sqrt(fin))
        b = jax.random.normal(k2, (fout,), jnp.float32) * 0.02
        return w, b

    stdv = math.sqrt(6.0 / (n_entity + eh))
    p = {}
    p["node_embeds"] = jax.random.uniform(next(keys), (n_entity, eh), jnp.float32, -stdv, stdv)
    # RGCN (basis decomposition): W_r = sum_b comp[r, b] * basis[b]
    basis = jax.random.normal(next(keys), (num_bases, eh, eh), jnp.float32) * (1.0 / math.sqrt(eh))
    comp = jax.random.normal(next(keys), (num_relations, num_bases), jnp.float32) * (1.0 / math.sqrt(num_bases))
    p["rgcn_w_rel"] = jnp.einsum("rb,bio->rio", comp, basis)
    p["rgcn_root"] = jax.random.normal(next(keys), (eh, eh), jnp.float32) * (1.0 / math.sqrt(eh))
    p["rgcn_bias"] = jnp.zeros((eh,), jnp.float32)
    p["entity_proj1_w1"], p["entity_proj1_b1"] = lin(next(keys), eh, eh // 2)
    p["entity_proj1_w2"], p["entity_proj1_b2"] = lin(next(keys), eh // 2, eh)
    p["entity_proj2_w"], p["entity_proj2_b"] = lin(next(keys), eh, hidden_size)
    p["token_proj1_w1"], p["token_proj1_b1"] = lin(next(keys), token_hidden_size, token_hidden_size // 2)
    p["token_proj1_w2"], p["token_proj1_b2"] = lin(next(keys), token_hidden_size // 2, token_hidden_size)
    p["token_proj2_w"], p["token_proj2_b"] = lin(next(keys), token_hidden_size, hidden_size)
    p["cross_attn_w"] = jax.random.normal(next(keys), (hidden_size, hidden_size), jnp.float32) * (1.0 / math.sqrt(hidden_size))
    p["prompt_proj1_w1"], p["prompt_proj1_b1"] = lin(next(keys), hidden_size, hidden_size // 2)
    p["prompt_proj1_w2"], p["prompt_proj1_b2"] = lin(next(keys), hidden_size // 2, hidden_size)
    p["prompt_proj2_w"], p["prompt_proj2_b"] = lin(next(keys), hidden_size, n_layer * n_block * hidden_size)
    return p


# ----------------------------- model forward -----------------------------

def get_entity_embeds(params, graphs, sorted_indices, idx_to_id_tensor):
    node = params["node_embeds"]
    N, eh = node.shape
    M = graphs["adj_ts"].shape[0]
    R = graphs["adj_rel"].shape[0]
    # index_select / index_add_ as one-hot gather / scatter matrices (fused into the kernel)
    gather_mat = (sorted_indices[:, None] == jnp.arange(N)[None, :]).astype(jnp.float32)        # (M, N)
    scatter_mat = (jnp.arange(N)[:, None] == idx_to_id_tensor[:M][None, :]).astype(jnp.float32)  # (N, M)
    # concatenate per-relation weights along the output dim -> one wide matmul in-kernel
    w_relcat = jnp.transpose(params["rgcn_w_rel"], (1, 0, 2)).reshape(eh, R * eh)
    return pallas_entity_pipeline(
        node, graphs["adj_rel"], w_relcat, params["rgcn_root"], params["rgcn_bias"],
        gather_mat, graphs["adj_ts"], graphs["adj_is"], graphs["adj_c"], scatter_mat,
        params["entity_proj1_w1"], params["entity_proj1_b1"],
        params["entity_proj1_w2"], params["entity_proj1_b2"],
        params["entity_proj2_w"], params["entity_proj2_b"])


def forward(params, graphs, sorted_indices, idx_to_id_tensor, entity_ids, token_embeds,
            *, hidden_size, n_layer, n_block, n_head):
    # output_entity=True path; use_rec_prefix / use_conv_prefix default to False.
    # TODO(synk): rec/conv prefix branches are not exercised by this forward configuration.
    head_dim = hidden_size // n_head
    B, entity_len = entity_ids.shape
    T, th = token_embeds.shape[1], token_embeds.shape[2]

    ent_table = get_entity_embeds(params, graphs, sorted_indices, idx_to_id_tensor)
    entity_embeds = jnp.take(ent_table, entity_ids, axis=0)                  # (B, E, H)

    # fused token path: proj1 residual MLP + proj2 linear in one kernel
    tok2d = token_embeds.reshape(B * T, th)
    tok2d = pallas_proj_chain(tok2d,
                              params["token_proj1_w1"], params["token_proj1_b1"],
                              params["token_proj1_w2"], params["token_proj1_b2"],
                              params["token_proj2_w"], params["token_proj2_b"])
    token_h = tok2d.reshape(B, T, hidden_size)                               # (B, T, H)

    # fused cross-attention + contrastive loss (all batches in one grid step)
    prompt_embeds, loss_cl = pallas_cross_attention_and_loss(
        token_h, entity_embeds, params["cross_attn_w"], hidden_size, temperature=0.07)

    # fused prompt path: proj1 residual MLP + proj2 linear (128-lane-dense output)
    prompt_len = entity_len
    p2d = prompt_embeds.reshape(B * prompt_len, hidden_size)
    p2d = pallas_proj_chain(p2d,
                            params["prompt_proj1_w1"], params["prompt_proj1_b1"],
                            params["prompt_proj1_w2"], params["prompt_proj1_b2"],
                            params["prompt_proj2_w"], params["prompt_proj2_b"])
    prompt = p2d.reshape(B, prompt_len, n_layer, n_block, n_head, head_dim)
    prompt = jnp.transpose(prompt, (2, 3, 0, 4, 1, 5))                       # (L, Bl, B, nh, P, hd)
    return prompt, loss_cl


# ----------------------------- main -----------------------------

if __name__ == "__main__":
    hidden_size = 32
    token_hidden_size = 32
    n_head = 2
    n_layer = 2
    n_block = 2
    n_entity = 16
    n_movie = 8
    num_relations = 3
    num_bases = 2
    B, entity_len, token_len = 2, 4, 8

    root = jax.random.PRNGKey(0)
    k_param, k_kg, k_rel, k_c, k_ts, k_is, k_eid, k_tok = jax.random.split(root, 8)

    params = make_params(k_param, hidden_size=hidden_size, token_hidden_size=token_hidden_size,
                         n_layer=n_layer, n_block=n_block, n_entity=n_entity,
                         num_relations=num_relations, num_bases=num_bases)

    # deterministic synthetic graphs
    edge_index = jax.random.randint(k_kg, (2, 24), 0, n_entity)
    edge_type = jax.random.randint(k_rel, (24,), 0, num_relations)
    edge_index_c = jax.random.randint(k_c, (2, 20), 0, n_entity)
    edge_index_t_s = jax.random.randint(k_ts, (2, 12), 0, n_movie)
    edge_index_i_s = jax.random.randint(k_is, (2, 12), 0, n_movie)

    idx_to_id_tensor = jnp.arange(n_movie) * 2     # movie idx -> entity id (even ids)
    sorted_indices = idx_to_id_tensor              # keys 0..n_movie-1 are already sorted

    graphs = {
        "adj_rel": rgcn_rel_adj(edge_index, edge_type, n_entity, num_relations),
        "adj_c": gcn_norm_adj(edge_index_c, n_entity),
        "adj_ts": gcn_norm_adj(edge_index_t_s, n_movie),
        "adj_is": gcn_norm_adj(edge_index_i_s, n_movie),
    }

    entity_ids = jax.random.randint(k_eid, (B, entity_len), 0, n_entity)
    token_embeds = jax.random.normal(k_tok, (B, token_len, token_hidden_size), jnp.float32)

    fwd = jax.jit(functools.partial(forward, hidden_size=hidden_size, n_layer=n_layer,
                                    n_block=n_block, n_head=n_head))
    prompt, loss_cl = fwd(params, graphs, sorted_indices, idx_to_id_tensor,
                          entity_ids, token_embeds)
    jax.block_until_ready((prompt, loss_cl))
    assert prompt.shape == (n_layer, n_block, B, n_head, entity_len, hidden_size // n_head)
    assert loss_cl.shape == ()
    print("KERNEL_OK")
</pallas_src>

<mosaic_0001>
module attributes {stable_mosaic.version = 11 : i64} {
  func.func @_entity_pipeline_kernel(%arg0: i32, %arg1: memref<16x16xf32, #tpu.memory_space<vmem>>, %arg2: memref<3x16x16xf32, #tpu.memory_space<vmem>>, %arg3: memref<16x48xf32, #tpu.memory_space<vmem>>, %arg4: memref<16x16xf32, #tpu.memory_space<vmem>>, %arg5: memref<1x16xf32, #tpu.memory_space<vmem>>, %arg6: memref<8x16xf32, #tpu.memory_space<vmem>>, %arg7: memref<8x8xf32, #tpu.memory_space<vmem>>, %arg8: memref<8x8xf32, #tpu.memory_space<vmem>>, %arg9: memref<16x16xf32, #tpu.memory_space<vmem>>, %arg10: memref<16x8xf32, #tpu.memory_space<vmem>>, %arg11: memref<16x8xf32, #tpu.memory_space<vmem>>, %arg12: memref<1x8xf32, #tpu.memory_space<vmem>>, %arg13: memref<8x16xf32, #tpu.memory_space<vmem>>, %arg14: memref<1x16xf32, #tpu.memory_space<vmem>>, %arg15: memref<16x32xf32, #tpu.memory_space<vmem>>, %arg16: memref<1x32xf32, #tpu.memory_space<vmem>>, %arg17: memref<16x32xf32, #tpu.memory_space<vmem>>) attributes {dimension_semantics = [#tpu.dimension_semantics<arbitrary>], iteration_bounds = array<i64: 1>, scalar_prefetch = 0 : i64, scratch_operands = 0 : i64, tpu.core_type = #tpu.core_type<tc>, window_params = [{pipeline_mode = #tpu.pipeline_mode<synchronous>, transform_indices = @transform_0, window_bounds = array<i64: 16, 16>}, {pipeline_mode = #tpu.pipeline_mode<synchronous>, transform_indices = @transform_1, window_bounds = array<i64: 3, 16, 16>}, {pipeline_mode = #tpu.pipeline_mode<synchronous>, transform_indices = @transform_2, window_bounds = array<i64: 16, 48>}, {pipeline_mode = #tpu.pipeline_mode<synchronous>, transform_indices = @transform_3, window_bounds = array<i64: 16, 16>}, {pipeline_mode = #tpu.pipeline_mode<synchronous>, transform_indices = @transform_4, window_bounds = array<i64: 1, 16>}, {pipeline_mode = #tpu.pipeline_mode<synchronous>, transform_indices = @transform_5, window_bounds = array<i64: 8, 16>}, {pipeline_mode = #tpu.pipeline_mode<synchronous>, transform_indices = @transform_6, window_bounds = array<i64: 8, 8>}, {pipeline_mode = #tpu.pipeline_mode<synchronous>, transform_indices = @transform_7, window_bounds = array<i64: 8, 8>}, {pipeline_mode = #tpu.pipeline_mode<synchronous>, transform_indices = @transform_8, window_bounds = array<i64: 16, 16>}, {pipeline_mode = #tpu.pipeline_mode<synchronous>, transform_indices = @transform_9, window_bounds = array<i64: 16, 8>}, {pipeline_mode = #tpu.pipeline_mode<synchronous>, transform_indices = @transform_10, window_bounds = array<i64: 16, 8>}, {pipeline_mode = #tpu.pipeline_mode<synchronous>, transform_indices = @transform_11, window_bounds = array<i64: 1, 8>}, {pipeline_mode = #tpu.pipeline_mode<synchronous>, transform_indices = @transform_12, window_bounds = array<i64: 8, 16>}, {pipeline_mode = #tpu.pipeline_mode<synchronous>, transform_indices = @transform_13, window_bounds = array<i64: 1, 16>}, {pipeline_mode = #tpu.pipeline_mode<synchronous>, transform_indices = @transform_14, window_bounds = array<i64: 16, 32>}, {pipeline_mode = #tpu.pipeline_mode<synchronous>, transform_indices = @transform_15, window_bounds = array<i64: 1, 32>}, {pipeline_mode = #tpu.pipeline_mode<synchronous>, transform_indices = @transform_16, window_bounds = array<i64: 16, 32>}]} {
    %c0 = arith.constant 0 : index
    %c0_0 = arith.constant 0 : index
    %0 = vector.load %arg1[%c0, %c0_0] : memref<16x16xf32, #tpu.memory_space<vmem>>, vector<16x16xf32>
    %c0_1 = arith.constant 0 : index
    %c0_2 = arith.constant 0 : index
    %1 = vector.load %arg3[%c0_1, %c0_2] : memref<16x48xf32, #tpu.memory_space<vmem>>, vector<16x48xf32>
    %cst = arith.constant dense<0.000000e+00> : vector<16x48xf32>
    %2 = tpu.matmul %0, %1, %cst {dimension_numbers = #tpu.dot_dimension_numbers<[1], [0], [0], [1], [0, 0, 1, 1], [], []>} : vector<16x16xf32>, vector<16x48xf32>, vector<16x48xf32> -> vector<16x48xf32>
    %c0_3 = arith.constant 0 : index
    %c0_4 = arith.constant 0 : index
    %3 = vector.load %arg4[%c0_3, %c0_4] : memref<16x16xf32, #tpu.memory_space<vmem>>, vector<16x16xf32>
    %cst_5 = arith.constant dense<0.000000e+00> : vector<16x16xf32>
    %4 = tpu.matmul %0, %3, %cst_5 {dimension_numbers = #tpu.dot_dimension_numbers<[1], [0], [0], [1], [0, 0, 1, 1], [], []>} : vector<16x16xf32>, vector<16x16xf32>, vector<16x16xf32> -> vector<16x16xf32>
    %c0_6 = arith.constant 0 : index
    %c0_7 = arith.constant 0 : index
    %5 = vector.load %arg5[%c0_6, %c0_7] : memref<1x16xf32, #tpu.memory_space<vmem>>, vector<1x16xf32>
    %6 = vector.broadcast %5 : vector<1x16xf32> to vector<16x16xf32>
    %7 = arith.addf %4, %6 : vector<16x16xf32>
    %c0_8 = arith.constant 0 : index
    %c0_9 = arith.constant 0 : index
    %c0_10 = arith.constant 0 : index
    %8 = vector.load %arg2[%c0_8, %c0_9, %c0_10] : memref<3x16x16xf32, #tpu.memory_space<vmem>>, vector<1x16x16xf32>
    %9 = vector.shape_cast %8 : vector<1x16x16xf32> to vector<16x16xf32>
    %10 = vector.extract_strided_slice %2 {offsets = [0, 0], sizes = [16, 16], strides = [1, 1]} : vector<16x48xf32> to vector<16x16xf32>
    %cst_11 = arith.constant dense<0.000000e+00> : vector<16x16xf32>
    %11 = tpu.matmul %9, %10, %cst_11 {dimension_numbers = #tpu.dot_dimension_numbers<[1], [0], [0], [1], [0, 0, 1, 1], [], []>} : vector<16x16xf32>, vector<16x16xf32>, vector<16x16xf32> -> vector<16x16xf32>
    %12 = arith.addf %7, %11 : vector<16x16xf32>
    %c1 = arith.constant 1 : index
    %c0_12 = arith.constant 0 : index
    %c0_13 = arith.constant 0 : index
    %13 = vector.load %arg2[%c1, %c0_12, %c0_13] : memref<3x16x16xf32, #tpu.memory_space<vmem>>, vector<1x16x16xf32>
    %14 = vector.shape_cast %13 : vector<1x16x16xf32> to vector<16x16xf32>
    %15 = vector.extract_strided_slice %2 {offsets = [0, 16], sizes = [16, 16], strides = [1, 1]} : vector<16x48xf32> to vector<16x16xf32>
    %cst_14 = arith.constant dense<0.000000e+00> : vector<16x16xf32>
    %16 = tpu.matmul %14, %15, %cst_14 {dimension_numbers = #tpu.dot_dimension_numbers<[1], [0], [0], [1], [0, 0, 1, 1], [], []>} : vector<16x16xf32>, vector<16x16xf32>, vector<16x16xf32> -> vector<16x16xf32>
    %17 = arith.addf %12, %16 : vector<16x16xf32>
    %c2 = arith.constant 2 : index
    %c0_15 = arith.constant 0 : index
    %c0_16 = arith.constant 0 : index
    %18 = vector.load %arg2[%c2, %c0_15, %c0_16] : memref<3x16x16xf32, #tpu.memory_space<vmem>>, vector<1x16x16xf32>
    %19 = vector.shape_cast %18 : vector<1x16x16xf32> to vector<16x16xf32>
    %20 = vector.extract_strided_slice %2 {offsets = [0, 32], sizes = [16, 16], strides = [1, 1]} : vector<16x48xf32> to vector<16x16xf32>
    %cst_17 = arith.constant dense<0.000000e+00> : vector<16x16xf32>
    %21 = tpu.matmul %19, %20, %cst_17 {dimension_numbers = #tpu.dot_dimension_numbers<[1], [0], [0], [1], [0, 0, 1, 1], [], []>} : vector<16x16xf32>, vector<16x16xf32>, vector<16x16xf32> -> vector<16x16xf32>
    %22 = arith.addf %17, %21 : vector<16x16xf32>
    %23 = arith.addf %22, %0 : vector<16x16xf32>
    %c0_18 = arith.constant 0 : index
    %c0_19 = arith.constant 0 : index
    %24 = vector.load %arg6[%c0_18, %c0_19] : memref<8x16xf32, #tpu.memory_space<vmem>>, vector<8x16xf32>
    %cst_20 = arith.constant dense<0.000000e+00> : vector<8x16xf32>
    %25 = tpu.matmul %24, %23, %cst_20 {dimension_numbers = #tpu.dot_dimension_numbers<[1], [0], [0], [1], [0, 0, 1, 1], [], []>} : vector<8x16xf32>, vector<16x16xf32>, vector<8x16xf32> -> vector<8x16xf32>
    %c0_21 = arith.constant 0 : index
    %c0_22 = arith.constant 0 : index
    %26 = vector.load %arg7[%c0_21, %c0_22] : memref<8x8xf32, #tpu.memory_space<vmem>>, vector<8x8xf32>
    %cst_23 = arith.constant dense<0.000000e+00> : vector<8x16xf32>
    %27 = tpu.matmul %26, %25, %cst_23 {dimension_numbers = #tpu.dot_dimension_numbers<[1], [0], [0], [1], [0, 0, 1, 1], [], []>} : vector<8x8xf32>, vector<8x16xf32>, vector<8x16xf32> -> vector<8x16xf32>
    %c0_24 = arith.constant 0 : index
    %c0_25 = arith.constant 0 : index
    %28 = vector.load %arg7[%c0_24, %c0_25] : memref<8x8xf32, #tpu.memory_space<vmem>>, vector<8x8xf32>
    %cst_26 = arith.constant dense<0.000000e+00> : vector<8x16xf32>
    %29 = tpu.matmul %28, %27, %cst_26 {dimension_numbers = #tpu.dot_dimension_numbers<[1], [0], [0], [1], [0, 0, 1, 1], [], []>} : vector<8x8xf32>, vector<8x16xf32>, vector<8x16xf32> -> vector<8x16xf32>
    %c0_27 = arith.constant 0 : index
    %c0_28 = arith.constant 0 : index
    %30 = vector.load %arg8[%c0_27, %c0_28] : memref<8x8xf32, #tpu.memory_space<vmem>>, vector<8x8xf32>
    %cst_29 = arith.constant dense<0.000000e+00> : vector<8x16xf32>
    %31 = tpu.matmul %30, %25, %cst_29 {dimension_numbers = #tpu.dot_dimension_numbers<[1], [0], [0], [1], [0, 0, 1, 1], [], []>} : vector<8x8xf32>, vector<8x16xf32>, vector<8x16xf32> -> vector<8x16xf32>
    %c0_30 = arith.constant 0 : index
    %c0_31 = arith.constant 0 : index
    %32 = vector.load %arg8[%c0_30, %c0_31] : memref<8x8xf32, #tpu.memory_space<vmem>>, vector<8x8xf32>
    %cst_32 = arith.constant dense<0.000000e+00> : vector<8x16xf32>
    %33 = tpu.matmul %32, %31, %cst_32 {dimension_numbers = #tpu.dot_dimension_numbers<[1], [0], [0], [1], [0, 0, 1, 1], [], []>} : vector<8x8xf32>, vector<8x16xf32>, vector<8x16xf32> -> vector<8x16xf32>
    %34 = arith.addf %27, %29 : vector<8x16xf32>
    %cst_33 = arith.constant 5.000000e-01 : f32
    %35 = vector.broadcast %cst_33 : f32 to vector<8x16xf32>
    %36 = arith.mulf %34, %35 : vector<8x16xf32>
    %37 = arith.addf %31, %33 : vector<8x16xf32>
    %cst_34 = arith.constant 5.000000e-01 : f32
    %38 = vector.broadcast %cst_34 : f32 to vector<8x16xf32>
    %39 = arith.mulf %37, %38 : vector<8x16xf32>
    %40 = arith.addf %36, %39 : vector<8x16xf32>
    %cst_35 = arith.constant 5.000000e-01 : f32
    %41 = vector.broadcast %cst_35 : f32 to vector<8x16xf32>
    %42 = arith.mulf %40, %41 : vector<8x16xf32>
    %c0_36 = arith.constant 0 : index
    %c0_37 = arith.constant 0 : index
    %43 = vector.load %arg9[%c0_36, %c0_37] : memref<16x16xf32, #tpu.memory_space<vmem>>, vector<16x16xf32>
    %cst_38 = arith.constant dense<0.000000e+00> : vector<16x16xf32>
    %44 = tpu.matmul %43, %23, %cst_38 {dimension_numbers = #tpu.dot_dimension_numbers<[1], [0], [0], [1], [0, 0, 1, 1], [], []>} : vector<16x16xf32>, vector<16x16xf32>, vector<16x16xf32> -> vector<16x16xf32>
    %c0_39 = arith.constant 0 : index
    %c0_40 = arith.constant 0 : index
    %45 = vector.load %arg9[%c0_39, %c0_40] : memref<16x16xf32, #tpu.memory_space<vmem>>, vector<16x16xf32>
    %cst_41 = arith.constant dense<0.000000e+00> : vector<16x16xf32>
    %46 = tpu.matmul %45, %44, %cst_41 {dimension_numbers = #tpu.dot_dimension_numbers<[1], [0], [0], [1], [0, 0, 1, 1], [], []>} : vector<16x16xf32>, vector<16x16xf32>, vector<16x16xf32> -> vector<16x16xf32>
    %c0_42 = arith.constant 0 : index
    %c0_43 = arith.constant 0 : index
    %47 = vector.load %arg9[%c0_42, %c0_43] : memref<16x16xf32, #tpu.memory_space<vmem>>, vector<16x16xf32>
    %cst_44 = arith.constant dense<0.000000e+00> : vector<16x16xf32>
    %48 = tpu.matmul %47, %46, %cst_44 {dimension_numbers = #tpu.dot_dimension_numbers<[1], [0], [0], [1], [0, 0, 1, 1], [], []>} : vector<16x16xf32>, vector<16x16xf32>, vector<16x16xf32> -> vector<16x16xf32>
    %49 = arith.addf %44, %46 : vector<16x16xf32>
    %50 = arith.addf %49, %48 : vector<16x16xf32>
    %51 = arith.addf %50, %23 : vector<16x16xf32>
    %cst_45 = arith.constant 2.500000e-01 : f32
    %52 = vector.broadcast %cst_45 : f32 to vector<16x16xf32>
    %53 = arith.mulf %51, %52 : vector<16x16xf32>
    %c0_46 = arith.constant 0 : index
    %c0_47 = arith.constant 0 : index
    %54 = vector.load %arg10[%c0_46, %c0_47] : memref<16x8xf32, #tpu.memory_space<vmem>>, vector<16x8xf32>
    %cst_48 = arith.constant dense<0.000000e+00> : vector<16x16xf32>
    %55 = tpu.matmul %54, %42, %cst_48 {dimension_numbers = #tpu.dot_dimension_numbers<[1], [0], [0], [1], [0, 0, 1, 1], [], []>} : vector<16x8xf32>, vector<8x16xf32>, vector<16x16xf32> -> vector<16x16xf32>
    %56 = arith.addf %53, %55 : vector<16x16xf32>
    %c0_49 = arith.constant 0 : index
    %c0_50 = arith.constant 0 : index
    %57 = vector.load %arg11[%c0_49, %c0_50] : memref<16x8xf32, #tpu.memory_space<vmem>>, vector<16x8xf32>
    %cst_51 = arith.constant dense<0.000000e+00> : vector<16x8xf32>
    %58 = tpu.matmul %56, %57, %cst_51 {dimension_numbers = #tpu.dot_dimension_numbers<[1], [0], [0], [1], [0, 0, 1, 1], [], []>} : vector<16x16xf32>, vector<16x8xf32>, vector<16x8xf32> -> vector<16x8xf32>
    %c0_52 = arith.constant 0 : index
    %c0_53 = arith.constant 0 : index
    %59 = vector.load %arg12[%c0_52, %c0_53] : memref<1x8xf32, #tpu.memory_space<vmem>>, vector<1x8xf32>
    %60 = vector.broadcast %59 : vector<1x8xf32> to vector<16x8xf32>
    %61 = arith.addf %58, %60 : vector<16x8xf32>
    %cst_54 = arith.constant 0.000000e+00 : f32
    %62 = vector.broadcast %cst_54 : f32 to vector<16x8xf32>
    %63 = arith.maximumf %61, %62 : vector<16x8xf32>
    %c0_55 = arith.constant 0 : index
    %c0_56 = arith.constant 0 : index
    %64 = vector.load %arg13[%c0_55, %c0_56] : memref<8x16xf32, #tpu.memory_space<vmem>>, vector<8x16xf32>
    %cst_57 = arith.constant dense<0.000000e+00> : vector<16x16xf32>
    %65 = tpu.matmul %63, %64, %cst_57 {dimension_numbers = #tpu.dot_dimension_numbers<[1], [0], [0], [1], [0, 0, 1, 1], [], []>} : vector<16x8xf32>, vector<8x16xf32>, vector<16x16xf32> -> vector<16x16xf32>
    %c0_58 = arith.constant 0 : index
    %c0_59 = arith.constant 0 : index
    %66 = vector.load %arg14[%c0_58, %c0_59] : memref<1x16xf32, #tpu.memory_space<vmem>>, vector<1x16xf32>
    %67 = vector.broadcast %66 : vector<1x16xf32> to vector<16x16xf32>
    %68 = arith.addf %65, %67 : vector<16x16xf32>
    %69 = arith.addf %68, %56 : vector<16x16xf32>
    %c0_60 = arith.constant 0 : index
    %c0_61 = arith.constant 0 : index
    %70 = vector.load %arg15[%c0_60, %c0_61] : memref<16x32xf32, #tpu.memory_space<vmem>>, vector<16x32xf32>
    %cst_62 = arith.constant dense<0.000000e+00> : vector<16x32xf32>
    %71 = tpu.matmul %69, %70, %cst_62 {dimension_numbers = #tpu.dot_dimension_numbers<[1], [0], [0], [1], [0, 0, 1, 1], [], []>} : vector<16x16xf32>, vector<16x32xf32>, vector<16x32xf32> -> vector<16x32xf32>
    %c0_63 = arith.constant 0 : index
    %c0_64 = arith.constant 0 : index
    %72 = vector.load %arg16[%c0_63, %c0_64] : memref<1x32xf32, #tpu.memory_space<vmem>>, vector<1x32xf32>
    %73 = vector.broadcast %72 : vector<1x32xf32> to vector<16x32xf32>
    %74 = arith.addf %71, %73 : vector<16x32xf32>
    %c0_65 = arith.constant 0 : index
    %c0_66 = arith.constant 0 : index
    %75 = vector.load %arg17[%c0_65, %c0_66] : memref<16x32xf32, #tpu.memory_space<vmem>>, vector<16x32xf32>
    tpu.vector_store %arg17[%c0_65, %c0_66], %74 {strides = array<i32>} : memref<16x32xf32, #tpu.memory_space<vmem>>, vector<16x32xf32>,
    return
  }
  func.func @transform_0(%arg0: i32) -> (i32, i32) {
    %c0_i32 = arith.constant 0 : i32
    %c0_i32_0 = arith.constant 0 : i32
    %c0_i32_1 = arith.constant 0 : i32
    return %c0_i32, %c0_i32_0 : i32, i32
  }
  func.func @transform_1(%arg0: i32) -> (i32, i32, i32) {
    %c0_i32 = arith.constant 0 : i32
    %c0_i32_0 = arith.constant 0 : i32
    %c0_i32_1 = arith.constant 0 : i32
    %c0_i32_2 = arith.constant 0 : i32
    return %c0_i32, %c0_i32_0, %c0_i32_1 : i32, i32, i32
  }
  func.func @transform_2(%arg0: i32) -> (i32, i32) {
    %c0_i32 = arith.constant 0 : i32
    %c0_i32_0 = arith.constant 0 : i32
    %c0_i32_1 = arith.constant 0 : i32
    return %c0_i32, %c0_i32_0 : i32, i32
  }
  func.func @transform_3(%arg0: i32) -> (i32, i32) {
    %c0_i32 = arith.constant 0 : i32
    %c0_i32_0 = arith.constant 0 : i32
    %c0_i32_1 = arith.constant 0 : i32
    return %c0_i32, %c0_i32_0 : i32, i32
  }
  func.func @transform_4(%arg0: i32) -> (i32, i32) {
    %c0_i32 = arith.constant 0 : i32
    %c0_i32_0 = arith.constant 0 : i32
    %c0_i32_1 = arith.constant 0 : i32
    return %c0_i32, %c0_i32_0 : i32, i32
  }
  func.func @transform_5(%arg0: i32) -> (i32, i32) {
    %c0_i32 = arith.constant 0 : i32
    %c0_i32_0 = arith.constant 0 : i32
    %c0_i32_1 = arith.constant 0 : i32
    return %c0_i32, %c0_i32_0 : i32, i32
  }
  func.func @transform_6(%arg0: i32) -> (i32, i32) {
    %c0_i32 = arith.constant 0 : i32
    %c0_i32_0 = arith.constant 0 : i32
    %c0_i32_1 = arith.constant 0 : i32
    return %c0_i32, %c0_i32_0 : i32, i32
  }
  func.func @transform_7(%arg0: i32) -> (i32, i32) {
    %c0_i32 = arith.constant 0 : i32
    %c0_i32_0 = arith.constant 0 : i32
    %c0_i32_1 = arith.constant 0 : i32
    return %c0_i32, %c0_i32_0 : i32, i32
  }
  func.func @transform_8(%arg0: i32) -> (i32, i32) {
    %c0_i32 = arith.constant 0 : i32
    %c0_i32_0 = arith.constant 0 : i32
    %c0_i32_1 = arith.constant 0 : i32
    return %c0_i32, %c0_i32_0 : i32, i32
  }
  func.func @transform_9(%arg0: i32) -> (i32, i32) {
    %c0_i32 = arith.constant 0 : i32
    %c0_i32_0 = arith.constant 0 : i32
    %c0_i32_1 = arith.constant 0 : i32
    return %c0_i32, %c0_i32_0 : i32, i32
  }
  func.func @transform_10(%arg0: i32) -> (i32, i32) {
    %c0_i32 = arith.constant 0 : i32
    %c0_i32_0 = arith.constant 0 : i32
    %c0_i32_1 = arith.constant 0 : i32
    return %c0_i32, %c0_i32_0 : i32, i32
  }
  func.func @transform_11(%arg0: i32) -> (i32, i32) {
    %c0_i32 = arith.constant 0 : i32
    %c0_i32_0 = arith.constant 0 : i32
    %c0_i32_1 = arith.constant 0 : i32
    return %c0_i32, %c0_i32_0 : i32, i32
  }
  func.func @transform_12(%arg0: i32) -> (i32, i32) {
    %c0_i32 = arith.constant 0 : i32
    %c0_i32_0 = arith.constant 0 : i32
    %c0_i32_1 = arith.constant 0 : i32
    return %c0_i32, %c0_i32_0 : i32, i32
  }
  func.func @transform_13(%arg0: i32) -> (i32, i32) {
    %c0_i32 = arith.constant 0 : i32
    %c0_i32_0 = arith.constant 0 : i32
    %c0_i32_1 = arith.constant 0 : i32
    return %c0_i32, %c0_i32_0 : i32, i32
  }
  func.func @transform_14(%arg0: i32) -> (i32, i32) {
    %c0_i32 = arith.constant 0 : i32
    %c0_i32_0 = arith.constant 0 : i32
    %c0_i32_1 = arith.constant 0 : i32
    return %c0_i32, %c0_i32_0 : i32, i32
  }
  func.func @transform_15(%arg0: i32) -> (i32, i32) {
    %c0_i32 = arith.constant 0 : i32
    %c0_i32_0 = arith.constant 0 : i32
    %c0_i32_1 = arith.constant 0 : i32
    return %c0_i32, %c0_i32_0 : i32, i32
  }
  func.func @transform_16(%arg0: i32) -> (i32, i32) {
    %c0_i32 = arith.constant 0 : i32
    %c0_i32_0 = arith.constant 0 : i32
    %c0_i32_1 = arith.constant 0 : i32
    return %c0_i32, %c0_i32_0 : i32, i32
  }
}

module attributes {stable_mosaic.version = 11 : i64} {
  func.func @_proj_chain_kernel(%arg0: i32, %arg1: memref<16x32xf32, #tpu.memory_space<vmem>>, %arg2: memref<32x16xf32, #tpu.memory_space<vmem>>, %arg3: memref<1x16xf32, #tpu.memory_space<vmem>>, %arg4: memref<16x32xf32, #tpu.memory_space<vmem>>, %arg5: memref<1x32xf32, #tpu.memory_space<vmem>>, %arg6: memref<32x32xf32, #tpu.memory_space<vmem>>, %arg7: memref<1x32xf32, #tpu.memory_space<vmem>>, %arg8: memref<16x32xf32, #tpu.memory_space<vmem>>) attributes {dimension_semantics = [#tpu.dimension_semantics<arbitrary>], iteration_bounds = array<i64: 1>, scalar_prefetch = 0 : i64, scratch_operands = 0 : i64, tpu.core_type = #tpu.core_type<tc>, window_params = [{pipeline_mode = #tpu.pipeline_mode<synchronous>, transform_indices = @transform_0, window_bounds = array<i64: 16, 32>}, {pipeline_mode = #tpu.pipeline_mode<synchronous>, transform_indices = @transform_1, window_bounds = array<i64: 32, 16>}, {pipeline_mode = #tpu.pipeline_mode<synchronous>, transform_indices = @transform_2, window_bounds = array<i64: 1, 16>}, {pipeline_mode = #tpu.pipeline_mode<synchronous>, transform_indices = @transform_3, window_bounds = array<i64: 16, 32>}, {pipeline_mode = #tpu.pipeline_mode<synchronous>, transform_indices = @transform_4, window_bounds = array<i64: 1, 32>}, {pipeline_mode = #tpu.pipeline_mode<synchronous>, transform_indices = @transform_5, window_bounds = array<i64: 32, 32>}, {pipeline_mode = #tpu.pipeline_mode<synchronous>, transform_indices = @transform_6, window_bounds = array<i64: 1, 32>}, {pipeline_mode = #tpu.pipeline_mode<synchronous>, transform_indices = @transform_7, window_bounds = array<i64: 16, 32>}]} {
    %c0 = arith.constant 0 : index
    %c0_0 = arith.constant 0 : index
    %0 = vector.load %arg1[%c0, %c0_0] : memref<16x32xf32, #tpu.memory_space<vmem>>, vector<16x32xf32>
    %c0_1 = arith.constant 0 : index
    %c0_2 = arith.constant 0 : index
    %1 = vector.load %arg2[%c0_1, %c0_2] : memref<32x16xf32, #tpu.memory_space<vmem>>, vector<32x16xf32>
    %cst = arith.constant dense<0.000000e+00> : vector<16x16xf32>
    %2 = tpu.matmul %0, %1, %cst {dimension_numbers = #tpu.dot_dimension_numbers<[1], [0], [0], [1], [0, 0, 1, 1], [], []>} : vector<16x32xf32>, vector<32x16xf32>, vector<16x16xf32> -> vector<16x16xf32>
    %c0_3 = arith.constant 0 : index
    %c0_4 = arith.constant 0 : index
    %3 = vector.load %arg3[%c0_3, %c0_4] : memref<1x16xf32, #tpu.memory_space<vmem>>, vector<1x16xf32>
    %4 = vector.broadcast %3 : vector<1x16xf32> to vector<16x16xf32>
    %5 = arith.addf %2, %4 : vector<16x16xf32>
    %cst_5 = arith.constant 0.000000e+00 : f32
    %6 = vector.broadcast %cst_5 : f32 to vector<16x16xf32>
    %7 = arith.maximumf %5, %6 : vector<16x16xf32>
    %c0_6 = arith.constant 0 : index
    %c0_7 = arith.constant 0 : index
    %8 = vector.load %arg4[%c0_6, %c0_7] : memref<16x32xf32, #tpu.memory_space<vmem>>, vector<16x32xf32>
    %cst_8 = arith.constant dense<0.000000e+00> : vector<16x32xf32>
    %9 = tpu.matmul %7, %8, %cst_8 {dimension_numbers = #tpu.dot_dimension_numbers<[1], [0], [0], [1], [0, 0, 1, 1], [], []>} : vector<16x16xf32>, vector<16x32xf32>, vector<16x32xf32> -> vector<16x32xf32>
    %c0_9 = arith.constant 0 : index
    %c0_10 = arith.constant 0 : index
    %10 = vector.load %arg5[%c0_9, %c0_10] : memref<1x32xf32, #tpu.memory_space<vmem>>, vector<1x32xf32>
    %11 = vector.broadcast %10 : vector<1x32xf32> to vector<16x32xf32>
    %12 = arith.addf %9, %11 : vector<16x32xf32>
    %13 = arith.addf %12, %0 : vector<16x32xf32>
    %c0_11 = arith.constant 0 : index
    %c0_12 = arith.constant 0 : index
    %14 = vector.load %arg6[%c0_11, %c0_12] : memref<32x32xf32, #tpu.memory_space<vmem>>, vector<32x32xf32>
    %cst_13 = arith.constant dense<0.000000e+00> : vector<16x32xf32>
    %15 = tpu.matmul %13, %14, %cst_13 {dimension_numbers = #tpu.dot_dimension_numbers<[1], [0], [0], [1], [0, 0, 1, 1], [], []>} : vector<16x32xf32>, vector<32x32xf32>, vector<16x32xf32> -> vector<16x32xf32>
    %c0_14 = arith.constant 0 : index
    %c0_15 = arith.constant 0 : index
    %16 = vector.load %arg7[%c0_14, %c0_15] : memref<1x32xf32, #tpu.memory_space<vmem>>, vector<1x32xf32>
    %17 = vector.broadcast %16 : vector<1x32xf32> to vector<16x32xf32>
    %18 = arith.addf %15, %17 : vector<16x32xf32>
    %c0_16 = arith.constant 0 : index
    %c0_17 = arith.constant 0 : index
    %19 = vector.load %arg8[%c0_16, %c0_17] : memref<16x32xf32, #tpu.memory_space<vmem>>, vector<16x32xf32>
    tpu.vector_store %arg8[%c0_16, %c0_17], %18 {strides = array<i32>} : memref<16x32xf32, #tpu.memory_space<vmem>>, vector<16x32xf32>,
    return
  }
  func.func @transform_0(%arg0: i32) -> (i32, i32) {
    %c0_i32 = arith.constant 0 : i32
    %c0_i32_0 = arith.constant 0 : i32
    %c0_i32_1 = arith.constant 0 : i32
    return %c0_i32, %c0_i32_0 : i32, i32
  }
  func.func @transform_1(%arg0: i32) -> (i32, i32) {
    %c0_i32 = arith.constant 0 : i32
    %c0_i32_0 = arith.constant 0 : i32
    %c0_i32_1 = arith.constant 0 : i32
    return %c0_i32, %c0_i32_0 : i32, i32
  }
  func.func @transform_2(%arg0: i32) -> (i32, i32) {
    %c0_i32 = arith.constant 0 : i32
    %c0_i32_0 = arith.constant 0 : i32
    %c0_i32_1 = arith.constant 0 : i32
    return %c0_i32, %c0_i32_0 : i32, i32
  }
  func.func @transform_3(%arg0: i32) -> (i32, i32) {
    %c0_i32 = arith.constant 0 : i32
    %c0_i32_0 = arith.constant 0 : i32
    %c0_i32_1 = arith.constant 0 : i32
    return %c0_i32, %c0_i32_0 : i32, i32
  }
  func.func @transform_4(%arg0: i32) -> (i32, i32) {
    %c0_i32 = arith.constant 0 : i32
    %c0_i32_0 = arith.constant 0 : i32
    %c0_i32_1 = arith.constant 0 : i32
    return %c0_i32, %c0_i32_0 : i32, i32
  }
  func.func @transform_5(%arg0: i32) -> (i32, i32) {
    %c0_i32 = arith.constant 0 : i32
    %c0_i32_0 = arith.constant 0 : i32
    %c0_i32_1 = arith.constant 0 : i32
    return %c0_i32, %c0_i32_0 : i32, i32
  }
  func.func @transform_6(%arg0: i32) -> (i32, i32) {
    %c0_i32 = arith.constant 0 : i32
    %c0_i32_0 = arith.constant 0 : i32
    %c0_i32_1 = arith.constant 0 : i32
    return %c0_i32, %c0_i32_0 : i32, i32
  }
  func.func @transform_7(%arg0: i32) -> (i32, i32) {
    %c0_i32 = arith.constant 0 : i32
    %c0_i32_0 = arith.constant 0 : i32
    %c0_i32_1 = arith.constant 0 : i32
    return %c0_i32, %c0_i32_0 : i32, i32
  }
}

module attributes {stable_mosaic.version = 11 : i64} {
  func.func @_xattn_cl_kernel(%arg0: i32, %arg1: memref<2x8x32xf32, #tpu.memory_space<vmem>>, %arg2: memref<2x4x32xf32, #tpu.memory_space<vmem>>, %arg3: memref<32x32xf32, #tpu.memory_space<vmem>>, %arg4: memref<2x4x32xf32, #tpu.memory_space<vmem>>, %arg5: memref<1x1xf32, #tpu.memory_space<vmem>>) attributes {dimension_semantics = [#tpu.dimension_semantics<arbitrary>], iteration_bounds = array<i64: 1>, scalar_prefetch = 0 : i64, scratch_operands = 0 : i64, tpu.core_type = #tpu.core_type<tc>, window_params = [{pipeline_mode = #tpu.pipeline_mode<synchronous>, transform_indices = @transform_0, window_bounds = array<i64: 2, 8, 32>}, {pipeline_mode = #tpu.pipeline_mode<synchronous>, transform_indices = @transform_1, window_bounds = array<i64: 2, 4, 32>}, {pipeline_mode = #tpu.pipeline_mode<synchronous>, transform_indices = @transform_2, window_bounds = array<i64: 32, 32>}, {pipeline_mode = #tpu.pipeline_mode<synchronous>, transform_indices = @transform_3, window_bounds = array<i64: 2, 4, 32>}, {pipeline_mode = #tpu.pipeline_mode<synchronous>, transform_indices = @transform_4, window_bounds = array<i64: 1, 1>}]} {
    %c0 = arith.constant 0 : index
    %c0_0 = arith.constant 0 : index
    %c0_1 = arith.constant 0 : index
    %0 = vector.load %arg1[%c0, %c0_0, %c0_1] : memref<2x8x32xf32, #tpu.memory_space<vmem>>, vector<2x8x32xf32>
    %c0_2 = arith.constant 0 : index
    %c0_3 = arith.constant 0 : index
    %c0_4 = arith.constant 0 : index
    %1 = vector.load %arg2[%c0_2, %c0_3, %c0_4] : memref<2x4x32xf32, #tpu.memory_space<vmem>>, vector<2x4x32xf32>
    %c0_5 = arith.constant 0 : index
    %c0_6 = arith.constant 0 : index
    %2 = vector.load %arg3[%c0_5, %c0_6] : memref<32x32xf32, #tpu.memory_space<vmem>>, vector<32x32xf32>
    "tpu.trace_start"() <{level = 10 : i32, message = "bth,hk->btk"}> : () -> ()
    %cst = arith.constant dense<0.000000e+00> : vector<2x8x32xf32>
    %3 = tpu.matmul %0, %2, %cst {dimension_numbers = #tpu.dot_dimension_numbers<[2], [0], [0, 1], [1], [0, 0, 0, 1, 1, 1], [], []>} : vector<2x8x32xf32>, vector<32x32xf32>, vector<2x8x32xf32> -> vector<2x8x32xf32>
    "tpu.trace_stop"() : () -> ()
    "tpu.trace_start"() <{level = 10 : i32, message = "bek,btk->bet"}> : () -> ()
    %cst_7 = arith.constant dense<0.000000e+00> : vector<2x4x8xf32>
    %4 = tpu.matmul %1, %3, %cst_7 {dimension_numbers = #tpu.dot_dimension_numbers<[2], [2], [1], [1], [0, 0, 0, 1, 1, 1], [0], [0]>} : vector<2x4x32xf32>, vector<2x8x32xf32>, vector<2x4x8xf32> -> vector<2x4x8xf32>
    "tpu.trace_stop"() : () -> ()
    %cst_8 = arith.constant 3.125000e-02 : f32
    %5 = vector.broadcast %cst_8 : f32 to vector<2x4x8xf32>
    %6 = arith.mulf %4, %5 : vector<2x4x8xf32>
    %cst_9 = arith.constant dense<0xFF800000> : vector<2x4xf32>
    %7 = vector.multi_reduction <maximumf>, %6, %cst_9 [2] : vector<2x4x8xf32> to vector<2x4xf32>
    %8 = vector.shape_cast %7 : vector<2x4xf32> to vector<2x4x1xf32>
    %9 = vector.broadcast %8 : vector<2x4x1xf32> to vector<2x4x8xf32>
    %10 = arith.subf %6, %9 : vector<2x4x8xf32>
    %11 = math.exp %10 : vector<2x4x8xf32>
    %cst_10 = arith.constant dense<0.000000e+00> : vector<2x4xf32>
    %12 = vector.multi_reduction <add>, %11, %cst_10 [2] : vector<2x4x8xf32> to vector<2x4xf32>
    %13 = vector.shape_cast %12 : vector<2x4xf32> to vector<2x4x1xf32>
    %14 = tpu.reciprocal %13 {approx = true} : vector<2x4x1xf32> -> vector<2x4x1xf32>
    %15 = vector.broadcast %14 : vector<2x4x1xf32> to vector<2x4x8xf32>
    %16 = arith.mulf %11, %15 : vector<2x4x8xf32>
    "tpu.trace_start"() <{level = 10 : i32, message = "bet,bth->beh"}> : () -> ()
    %cst_11 = arith.constant dense<0.000000e+00> : vector<2x4x32xf32>
    %17 = tpu.matmul %16, %0, %cst_11 {dimension_numbers = #tpu.dot_dimension_numbers<[2], [1], [1], [2], [0, 0, 0, 1, 1, 2], [0], [0]>} : vector<2x4x8xf32>, vector<2x8x32xf32>, vector<2x4x32xf32> -> vector<2x4x32xf32>
    "tpu.trace_stop"() : () -> ()
    %18 = arith.addf %17, %1 : vector<2x4x32xf32>
    %c0_12 = arith.constant 0 : index
    %c0_13 = arith.constant 0 : index
    %c0_14 = arith.constant 0 : index
    %19 = vector.load %arg4[%c0_12, %c0_13, %c0_14] : memref<2x4x32xf32, #tpu.memory_space<vmem>>, vector<2x4x32xf32>
    tpu.vector_store %arg4[%c0_12, %c0_13, %c0_14], %18 {strides = array<i32>} : memref<2x4x32xf32, #tpu.memory_space<vmem>>, vector<2x4x32xf32>,
    %cst_15 = arith.constant dense<0.000000e+00> : vector<2x32xf32>
    %20 = vector.multi_reduction <add>, %17, %cst_15 [1] : vector<2x4x32xf32> to vector<2x32xf32>
    %cst_16 = arith.constant 4.000000e+00 : f32
    %21 = vector.broadcast %cst_16 : f32 to vector<2x32xf32>
    %22 = arith.divf %20, %21 : vector<2x32xf32>
    %cst_17 = arith.constant dense<0.000000e+00> : vector<2x32xf32>
    %23 = vector.multi_reduction <add>, %1, %cst_17 [1] : vector<2x4x32xf32> to vector<2x32xf32>
    %cst_18 = arith.constant 4.000000e+00 : f32
    %24 = vector.broadcast %cst_18 : f32 to vector<2x32xf32>
    %25 = arith.divf %23, %24 : vector<2x32xf32>
    %26 = arith.mulf %22, %22 : vector<2x32xf32>
    %cst_19 = arith.constant dense<0.000000e+00> : vector<2xf32>
    %27 = vector.multi_reduction <add>, %26, %cst_19 [1] : vector<2x32xf32> to vector<2xf32>
    %28 = vector.shape_cast %27 : vector<2xf32> to vector<2x1xf32>
    %29 = math.sqrt %28 : vector<2x1xf32>
    %cst_20 = arith.constant 9.99999993E-9 : f32
    %30 = vector.broadcast %cst_20 : f32 to vector<2x1xf32>
    %31 = arith.maximumf %29, %30 : vector<2x1xf32>
    %32 = vector.broadcast %31 : vector<2x1xf32> to vector<2x32xf32>
    %33 = arith.divf %22, %32 : vector<2x32xf32>
    %34 = arith.mulf %25, %25 : vector<2x32xf32>
    %cst_21 = arith.constant dense<0.000000e+00> : vector<2xf32>
    %35 = vector.multi_reduction <add>, %34, %cst_21 [1] : vector<2x32xf32> to vector<2xf32>
    %36 = vector.shape_cast %35 : vector<2xf32> to vector<2x1xf32>
    %37 = math.sqrt %36 : vector<2x1xf32>
    %cst_22 = arith.constant 9.99999993E-9 : f32
    %38 = vector.broadcast %cst_22 : f32 to vector<2x1xf32>
    %39 = arith.maximumf %37, %38 : vector<2x1xf32>
    %40 = vector.broadcast %39 : vector<2x1xf32> to vector<2x32xf32>
    %41 = arith.divf %25, %40 : vector<2x32xf32>
    "tpu.trace_start"() <{level = 10 : i32, message = "bh,ch->bc"}> : () -> ()
    %cst_23 = arith.constant dense<0.000000e+00> : vector<2x2xf32>
    %42 = tpu.matmul %33, %41, %cst_23 {dimension_numbers = #tpu.dot_dimension_numbers<[1], [1], [0], [0], [0, 0, 1, 0], [], []>} : vector<2x32xf32>, vector<2x32xf32>, vector<2x2xf32> -> vector<2x2xf32>
    "tpu.trace_stop"() : () -> ()
    %cst_24 = arith.constant 7.000000e-02 : f32
    %43 = vector.broadcast %cst_24 : f32 to vector<2x2xf32>
    %44 = arith.divf %42, %43 : vector<2x2xf32>
    %cst_25 = arith.constant dense<0xFF800000> : vector<2xf32>
    %45 = vector.multi_reduction <maximumf>, %44, %cst_25 [1] : vector<2x2xf32> to vector<2xf32>
    %46 = vector.shape_cast %45 : vector<2xf32> to vector<2x1xf32>
    %47 = vector.broadcast %46 : vector<2x1xf32> to vector<2x2xf32>
    %48 = arith.subf %44, %47 : vector<2x2xf32>
    %49 = math.exp %48 : vector<2x2xf32>
    %cst_26 = arith.constant dense<0.000000e+00> : vector<2xf32>
    %50 = vector.multi_reduction <add>, %49, %cst_26 [1] : vector<2x2xf32> to vector<2xf32>
    %51 = vector.shape_cast %50 : vector<2xf32> to vector<2x1xf32>
    %52 = math.log %51 : vector<2x1xf32>
    %53 = arith.addf %52, %46 : vector<2x1xf32>
    %54 = tpu.iota {dimensions = array<i32: 0>} : vector<2x2xi32>
    %55 = tpu.iota {dimensions = array<i32: 1>} : vector<2x2xi32>
    %56 = arith.cmpi eq, %54, %55 : vector<2x2xi32>
    %57 = arith.extui %56 : vector<2x2xi1> to vector<2x2xi32>
    %58 = arith.sitofp %57 : vector<2x2xi32> to vector<2x2xf32>
    %59 = arith.mulf %44, %58 : vector<2x2xf32>
    %cst_27 = arith.constant dense<0.000000e+00> : vector<2xf32>
    %60 = vector.multi_reduction <add>, %59, %cst_27 [1] : vector<2x2xf32> to vector<2xf32>
    %61 = vector.shape_cast %60 : vector<2xf32> to vector<2x1xf32>
    %62 = arith.subf %53, %61 : vector<2x1xf32>
    %cst_28 = arith.constant dense<0.000000e+00> : vector<1xf32>
    %63 = vector.multi_reduction <add>, %62, %cst_28 [0] : vector<2x1xf32> to vector<1xf32>
    %64 = vector.shape_cast %63 : vector<1xf32> to vector<1x1xf32>
    %cst_29 = arith.constant 2.000000e+00 : f32
    %65 = vector.broadcast %cst_29 : f32 to vector<1x1xf32>
    %66 = arith.divf %64, %65 : vector<1x1xf32>
    %c0_30 = arith.constant 0 : index
    %c0_31 = arith.constant 0 : index
    %67 = vector.load %arg5[%c0_30, %c0_31] : memref<1x1xf32, #tpu.memory_space<vmem>>, vector<1x1xf32>
    tpu.vector_store %arg5[%c0_30, %c0_31], %66 {strides = array<i32>} : memref<1x1xf32, #tpu.memory_space<vmem>>, vector<1x1xf32>,
    return
  }
  func.func @transform_0(%arg0: i32) -> (i32, i32, i32) {
    %c0_i32 = arith.constant 0 : i32
    %c0_i32_0 = arith.constant 0 : i32
    %c0_i32_1 = arith.constant 0 : i32
    %c0_i32_2 = arith.constant 0 : i32
    return %c0_i32, %c0_i32_0, %c0_i32_1 : i32, i32, i32
  }
  func.func @transform_1(%arg0: i32) -> (i32, i32, i32) {
    %c0_i32 = arith.constant 0 : i32
    %c0_i32_0 = arith.constant 0 : i32
    %c0_i32_1 = arith.constant 0 : i32
    %c0_i32_2 = arith.constant 0 : i32
    return %c0_i32, %c0_i32_0, %c0_i32_1 : i32, i32, i32
  }
  func.func @transform_2(%arg0: i32) -> (i32, i32) {
    %c0_i32 = arith.constant 0 : i32
    %c0_i32_0 = arith.constant 0 : i32
    %c0_i32_1 = arith.constant 0 : i32
    return %c0_i32, %c0_i32_0 : i32, i32
  }
  func.func @transform_3(%arg0: i32) -> (i32, i32, i32) {
    %c0_i32 = arith.constant 0 : i32
    %c0_i32_0 = arith.constant 0 : i32
    %c0_i32_1 = arith.constant 0 : i32
    %c0_i32_2 = arith.constant 0 : i32
    return %c0_i32, %c0_i32_0, %c0_i32_1 : i32, i32, i32
  }
  func.func @transform_4(%arg0: i32) -> (i32, i32) {
    %c0_i32 = arith.constant 0 : i32
    %c0_i32_0 = arith.constant 0 : i32
    %c0_i32_1 = arith.constant 0 : i32
    return %c0_i32, %c0_i32_0 : i32, i32
  }
}

module attributes {stable_mosaic.version = 11 : i64} {
  func.func @_proj_chain_kernel(%arg0: i32, %arg1: memref<8x32xf32, #tpu.memory_space<vmem>>, %arg2: memref<32x16xf32, #tpu.memory_space<vmem>>, %arg3: memref<1x16xf32, #tpu.memory_space<vmem>>, %arg4: memref<16x32xf32, #tpu.memory_space<vmem>>, %arg5: memref<1x32xf32, #tpu.memory_space<vmem>>, %arg6: memref<32x128xf32, #tpu.memory_space<vmem>>, %arg7: memref<1x128xf32, #tpu.memory_space<vmem>>, %arg8: memref<8x128xf32, #tpu.memory_space<vmem>>) attributes {dimension_semantics = [#tpu.dimension_semantics<arbitrary>], iteration_bounds = array<i64: 1>, scalar_prefetch = 0 : i64, scratch_operands = 0 : i64, tpu.core_type = #tpu.core_type<tc>, window_params = [{pipeline_mode = #tpu.pipeline_mode<synchronous>, transform_indices = @transform_0, window_bounds = array<i64: 8, 32>}, {pipeline_mode = #tpu.pipeline_mode<synchronous>, transform_indices = @transform_1, window_bounds = array<i64: 32, 16>}, {pipeline_mode = #tpu.pipeline_mode<synchronous>, transform_indices = @transform_2, window_bounds = array<i64: 1, 16>}, {pipeline_mode = #tpu.pipeline_mode<synchronous>, transform_indices = @transform_3, window_bounds = array<i64: 16, 32>}, {pipeline_mode = #tpu.pipeline_mode<synchronous>, transform_indices = @transform_4, window_bounds = array<i64: 1, 32>}, {pipeline_mode = #tpu.pipeline_mode<synchronous>, transform_indices = @transform_5, window_bounds = array<i64: 32, 128>}, {pipeline_mode = #tpu.pipeline_mode<synchronous>, transform_indices = @transform_6, window_bounds = array<i64: 1, 128>}, {pipeline_mode = #tpu.pipeline_mode<synchronous>, transform_indices = @transform_7, window_bounds = array<i64: 8, 128>}]} {
    %c0 = arith.constant 0 : index
    %c0_0 = arith.constant 0 : index
    %0 = vector.load %arg1[%c0, %c0_0] : memref<8x32xf32, #tpu.memory_space<vmem>>, vector<8x32xf32>
    %c0_1 = arith.constant 0 : index
    %c0_2 = arith.constant 0 : index
    %1 = vector.load %arg2[%c0_1, %c0_2] : memref<32x16xf32, #tpu.memory_space<vmem>>, vector<32x16xf32>
    %cst = arith.constant dense<0.000000e+00> : vector<8x16xf32>
    %2 = tpu.matmul %0, %1, %cst {dimension_numbers = #tpu.dot_dimension_numbers<[1], [0], [0], [1], [0, 0, 1, 1], [], []>} : vector<8x32xf32>, vector<32x16xf32>, vector<8x16xf32> -> vector<8x16xf32>
    %c0_3 = arith.constant 0 : index
    %c0_4 = arith.constant 0 : index
    %3 = vector.load %arg3[%c0_3, %c0_4] : memref<1x16xf32, #tpu.memory_space<vmem>>, vector<1x16xf32>
    %4 = vector.broadcast %3 : vector<1x16xf32> to vector<8x16xf32>
    %5 = arith.addf %2, %4 : vector<8x16xf32>
    %cst_5 = arith.constant 0.000000e+00 : f32
    %6 = vector.broadcast %cst_5 : f32 to vector<8x16xf32>
    %7 = arith.maximumf %5, %6 : vector<8x16xf32>
    %c0_6 = arith.constant 0 : index
    %c0_7 = arith.constant 0 : index
    %8 = vector.load %arg4[%c0_6, %c0_7] : memref<16x32xf32, #tpu.memory_space<vmem>>, vector<16x32xf32>
    %cst_8 = arith.constant dense<0.000000e+00> : vector<8x32xf32>
    %9 = tpu.matmul %7, %8, %cst_8 {dimension_numbers = #tpu.dot_dimension_numbers<[1], [0], [0], [1], [0, 0, 1, 1], [], []>} : vector<8x16xf32>, vector<16x32xf32>, vector<8x32xf32> -> vector<8x32xf32>
    %c0_9 = arith.constant 0 : index
    %c0_10 = arith.constant 0 : index
    %10 = vector.load %arg5[%c0_9, %c0_10] : memref<1x32xf32, #tpu.memory_space<vmem>>, vector<1x32xf32>
    %11 = vector.broadcast %10 : vector<1x32xf32> to vector<8x32xf32>
    %12 = arith.addf %9, %11 : vector<8x32xf32>
    %13 = arith.addf %12, %0 : vector<8x32xf32>
    %c0_11 = arith.constant 0 : index
    %c0_12 = arith.constant 0 : index
    %14 = vector.load %arg6[%c0_11, %c0_12] : memref<32x128xf32, #tpu.memory_space<vmem>>, vector<32x128xf32>
    %cst_13 = arith.constant dense<0.000000e+00> : vector<8x128xf32>
    %15 = tpu.matmul %13, %14, %cst_13 {dimension_numbers = #tpu.dot_dimension_numbers<[1], [0], [0], [1], [0, 0, 1, 1], [], []>} : vector<8x32xf32>, vector<32x128xf32>, vector<8x128xf32> -> vector<8x128xf32>
    %c0_14 = arith.constant 0 : index
    %c0_15 = arith.constant 0 : index
    %16 = vector.load %arg7[%c0_14, %c0_15] : memref<1x128xf32, #tpu.memory_space<vmem>>, vector<1x128xf32>
    %17 = vector.broadcast %16 : vector<1x128xf32> to vector<8x128xf32>
    %18 = arith.addf %15, %17 : vector<8x128xf32>
    %c0_16 = arith.constant 0 : index
    %c0_17 = arith.constant 0 : index
    %19 = vector.load %arg8[%c0_16, %c0_17] : memref<8x128xf32, #tpu.memory_space<vmem>>, vector<8x128xf32>
    tpu.vector_store %arg8[%c0_16, %c0_17], %18 {strides = array<i32>} : memref<8x128xf32, #tpu.memory_space<vmem>>, vector<8x128xf32>,
    return
  }
  func.func @transform_0(%arg0: i32) -> (i32, i32) {
    %c0_i32 = arith.constant 0 : i32
    %c0_i32_0 = arith.constant 0 : i32
    %c0_i32_1 = arith.constant 0 : i32
    return %c0_i32, %c0_i32_0 : i32, i32
  }
  func.func @transform_1(%arg0: i32) -> (i32, i32) {
    %c0_i32 = arith.constant 0 : i32
    %c0_i32_0 = arith.constant 0 : i32
    %c0_i32_1 = arith.constant 0 : i32
    return %c0_i32, %c0_i32_0 : i32, i32
  }
  func.func @transform_2(%arg0: i32) -> (i32, i32) {
    %c0_i32 = arith.constant 0 : i32
    %c0_i32_0 = arith.constant 0 : i32
    %c0_i32_1 = arith.constant 0 : i32
    return %c0_i32, %c0_i32_0 : i32, i32
  }
  func.func @transform_3(%arg0: i32) -> (i32, i32) {
    %c0_i32 = arith.constant 0 : i32
    %c0_i32_0 = arith.constant 0 : i32
    %c0_i32_1 = arith.constant 0 : i32
    return %c0_i32, %c0_i32_0 : i32, i32
  }
  func.func @transform_4(%arg0: i32) -> (i32, i32) {
    %c0_i32 = arith.constant 0 : i32
    %c0_i32_0 = arith.constant 0 : i32
    %c0_i32_1 = arith.constant 0 : i32
    return %c0_i32, %c0_i32_0 : i32, i32
  }
  func.func @transform_5(%arg0: i32) -> (i32, i32) {
    %c0_i32 = arith.constant 0 : i32
    %c0_i32_0 = arith.constant 0 : i32
    %c0_i32_1 = arith.constant 0 : i32
    return %c0_i32, %c0_i32_0 : i32, i32
  }
  func.func @transform_6(%arg0: i32) -> (i32, i32) {
    %c0_i32 = arith.constant 0 : i32
    %c0_i32_0 = arith.constant 0 : i32
    %c0_i32_1 = arith.constant 0 : i32
    return %c0_i32, %c0_i32_0 : i32, i32
  }
  func.func @transform_7(%arg0: i32) -> (i32, i32) {
    %c0_i32 = arith.constant 0 : i32
    %c0_i32_0 = arith.constant 0 : i32
    %c0_i32_1 = arith.constant 0 : i32
    return %c0_i32, %c0_i32_0 : i32, i32
  }
}

</mosaic_0001>

<llo_original>
// kernel: forward.5
$region0: #{forward.5}
  #allocation0 [shape = 'u32[]', space=smem, size = 0x4, offset = 0x4, fixed_abs, tag = 'smem constant byte address 0x4 - core index']
  #allocation1 [shape = 'u32[144,128]{1,0:T(1,128)}', space=vmem, size = 0x12000, scoped, tag = 'internal scratch']
  %s0 = inlined_call_operand.vmem [shape: f32[16,32], index: 0, kind: input, shape index: {}]
  %s1 = inlined_call_operand.vmem [shape: f32[32,16], index: 1, kind: input, shape index: {}]
  %s2 = inlined_call_operand.vmem [shape: f32[1,16], index: 2, kind: input, shape index: {}]
  %s3 = inlined_call_operand.vmem [shape: f32[16,32], index: 3, kind: input, shape index: {}]
  %s4 = inlined_call_operand.vmem [shape: f32[1,32], index: 4, kind: input, shape index: {}]
  %s5 = inlined_call_operand.vmem [shape: f32[32,32], index: 5, kind: input, shape index: {}]
  %s6 = inlined_call_operand.vmem [shape: f32[1,32], index: 6, kind: input, shape index: {}]
  %s7 = inlined_call_operand.vmem [shape: f32[16,32], index: 7, kind: output, shape index: {}]
  %s8 = sld [smem:[#allocation0]]
  $region38: #{forward.5} parent=0
    _
  %s10 = ssub.s32 1, %s8
  %s11 = scalar_select 0, %s10, %s8
  // Predicated region
  $region2: #{forward.5} parent=0 // pred_check
    _
  $region3: #{forward.5} parent=0 // pred_check_branch
    %13 = sbr.rel (0) target = $region5
  $region4: #{forward.5} parent=0 // pred_region
    _
  $region5: #{forward.5} parent=0 // pred_fallthru
    _
  // Predicated region
  $region6: #{forward.5} parent=0 // pred_check
    _
  $region7: #{forward.5} parent=0 // pred_check_branch
    %15 = sbr.rel (0) target = $region9
  $region8: #{forward.5} parent=0 // pred_region
    _
  $region9: #{forward.5} parent=0 // pred_fallthru
    _
  // Predicated region
  $region10: #{forward.5} parent=0 // pred_check
    _
  $region11: #{forward.5} parent=0 // pred_check_branch
    %17 = sbr.rel (0) target = $region13
  $region12: #{forward.5} parent=0 // pred_region
    _
  $region13: #{forward.5} parent=0 // pred_fallthru
    _
  // Predicated region
  $region14: #{forward.5} parent=0 // pred_check
    _
  $region15: #{forward.5} parent=0 // pred_check_branch
    %19 = sbr.rel (0) target = $region17
  $region16: #{forward.5} parent=0 // pred_region
    _
  $region17: #{forward.5} parent=0 // pred_fallthru
    _
  // Predicated region
  $region18: #{forward.5} parent=0 // pred_check
    _
  $region19: #{forward.5} parent=0 // pred_check_branch
    %21 = sbr.rel (0) target = $region21
  $region20: #{forward.5} parent=0 // pred_region
    _
  $region21: #{forward.5} parent=0 // pred_fallthru
    _
  // Predicated region
  $region22: #{forward.5} parent=0 // pred_check
    _
  $region23: #{forward.5} parent=0 // pred_check_branch
    %23 = sbr.rel (0) target = $region25
  $region24: #{forward.5} parent=0 // pred_region
    _
  $region25: #{forward.5} parent=0 // pred_fallthru
    _
  // Predicated region
  $region26: #{forward.5} parent=0 // pred_check
    _
  $region27: #{forward.5} parent=0 // pred_check_branch
    %25 = sbr.rel (0) target = $region29
  $region28: #{forward.5} parent=0 // pred_region
    _
  $region29: #{forward.5} parent=0 // pred_fallthru
    _
  %v26 = vld [vmem:[%s0] sm:$0xff]
  %v27 = vld [vmem:[%s0 + $0x8] sm:$0xff]
  %v28 = vld [vmem:[%s1] sm:$0xff]
  %v29 = vld [vmem:[%s1 + $0x8] sm:$0xff]
  %v30 = vld [vmem:[%s1 + $0x10] sm:$0xff]
  %v31 = vld [vmem:[%s1 + $0x18] sm:$0xff]
  %v32 = vld [vmem:[%s2] sm:$0x1]
  %v34 = vlaneseq
  %v35 = vshrl.u32 %v34, 7
  %v36 = vsub.s32 0, %v35
  %v37 = vrot.slane %v32, %v36
  %vm39 = vcmask 261120
  %v41 = vsel %vm39, %v26, 0
  %v44 = vsel %vm39, %v27, 0
  %46 = vmatprep.subr.mxu0 0.0
  %47 = vmatpush1.msra.mxu0 0.0
  %48 = vmatprep.subr.mxu0 0.0
  %49 = vmatpush1.msra.mxu0 0.0
  %50 = vmatprep.subr.mxu0 0.0
  %51 = vmatpush1.msra.mxu0 0.0
  %52 = vmatprep.subr.mxu0 0.0
  %53 = vmatpush1.msra.mxu0 0.0
  %54 = vmatprep.subr.mxu0 0.0
  %55 = vmatpush1.msra.mxu0 0.0
  %56 = vmatprep.subr.mxu0 0.0
  %57 = vmatpush1.msra.mxu0 0.0
  %58 = vmatprep.subr.mxu0 0.0
  %59 = vmatpush1.msra.mxu0 0.0
  %60 = vmatprep.subr.mxu0 0.0
  %61 = vmatpush1.msra.mxu0 0.0
  %62 = vmatprep.subr.mxu0 0.0
  %63 = vmatpush1.msra.mxu0 0.0
  %64 = vmatprep.subr.mxu0 0.0
  %65 = vmatpush1.msra.mxu0 0.0
  %66 = vmatprep.subr.mxu0 0.0
  %67 = vmatpush1.msra.mxu0 0.0
  %68 = vmatprep.subr.mxu0 0.0
  %69 = vmatpush1.msra.mxu0 0.0
  %70 = vmatprep.subr.mxu0 0.0
  %71 = vmatpush1.msra.mxu0 %v31
  %72 = vmatprep.subr.mxu0 0.0
  %73 = vmatpush1.msra.mxu0 %v30
  %74 = vmatprep.subr.mxu0 0.0
  %75 = vmatpush1.msra.mxu0 %v29
  %76 = vmatprep.subr.mxu0 0.0
  %77 = vmatpush1.msra.mxu0 %v28
  %78 = vmatprep.subr.mxu0 0.0
  %79 = vmatpush2.msra.mxu0 0.0
  %80 = vmatprep.subr.mxu0 0.0
  %81 = vmatpush2.msra.mxu0 0.0
  %82 = vmatprep.subr.mxu0 0.0
  %83 = vmatpush2.msra.mxu0 0.0
  %84 = vmatprep.subr.mxu0 0.0
  %85 = vmatpush2.msra.mxu0 0.0
  %86 = vmatprep.subr.mxu0 0.0
  %87 = vmatpush2.msra.mxu0 0.0
  %88 = vmatprep.subr.mxu0 0.0
  %89 = vmatpush2.msra.mxu0 0.0
  %90 = vmatprep.subr.mxu0 0.0
  %91 = vmatpush2.msra.mxu0 0.0
  %92 = vmatprep.subr.mxu0 0.0
  %93 = vmatpush2.msra.mxu0 0.0
  %94 = vmatprep.subr.mxu0 0.0
  %95 = vmatpush2.msra.mxu0 0.0
  %96 = vmatprep.subr.mxu0 0.0
  %97 = vmatpush2.msra.mxu0 0.0
  %98 = vmatprep.subr.mxu0 0.0
  %99 = vmatpush2.msra.mxu0 0.0
  %100 = vmatprep.subr.mxu0 0.0
  %101 = vmatpush2.msra.mxu0 0.0
  %102 = vmatprep.subr.mxu0 0.0
  %103 = vmatpush2.msra.mxu0 0.0
  %104 = vmatprep.subr.mxu0 0.0
  %105 = vmatpush2.msra.mxu0 0.0
  %106 = vmatprep.subr.mxu0 0.0
  %107 = vmatpush2.msra.mxu0 0.0
  %108 = vmatprep.subr.mxu0 0.0
  %109 = vmatpush2.msra.mxu0 0.0
  %110 = vmatprep.mubr.f32.mxu0 0.0
  %111 = vmatmul.mubr.f32.gmra.mxu0 %v41
  %v112 = vpop.f32.mrf.mxu0
  %v113 = vadd.f32 %v37, %v112
  %v114 = vpop.f32.mrf.mxu0
  %115 = vmatprep.mubr.f32.mxu0 0.0
  %116 = vmatmul.mubr.f32.gmra.mxu0 %v44
  %v117 = vpop.f32.mrf.mxu0
  %v118 = vadd.f32 %v37, %v117
  %v119 = vpop.f32.mrf.mxu0
  %120 = vdwg.mxu0
  %v121 = vmax.f32 %v113, 0.0
  %v122 = vmax.f32 %v118, 0.0
  %v123 = vld [vmem:[%s3] sm:$0xff]
  %v124 = vld [vmem:[%s3 + $0x8] sm:$0xff]
  %v125 = vld [vmem:[%s4] sm:$0x1]
  %v127 = vlaneseq
  %v128 = vshrl.u32 %v127, 7
  %v129 = vsub.s32 0, %v128
  %v130 = vrot.slane %v125, %v129
  %vm132 = vcmask 130048
  %v134 = vsel %vm132, %v121, 0
  %v137 = vsel %vm132, %v122, 0
  %139 = vmatprep.subr.mxu0 0.0
  %140 = vmatpush1.msra.mxu0 0.0
  %141 = vmatprep.subr.mxu0 0.0
  %142 = vmatpush1.msra.mxu0 0.0
  %143 = vmatprep.subr.mxu0 0.0
  %144 = vmatpush1.msra.mxu0 0.0
  %145 = vmatprep.subr.mxu0 0.0
  %146 = vmatpush1.msra.mxu0 0.0
  %147 = vmatprep.subr.mxu0 0.0
  %148 = vmatpush1.msra.mxu0 0.0
  %149 = vmatprep.subr.mxu0 0.0
  %150 = vmatpush1.msra.mxu0 0.0
  %151 = vmatprep.subr.mxu0 0.0
  %152 = vmatpush1.msra.mxu0 0.0
  %153 = vmatprep.subr.mxu0 0.0
  %154 = vmatpush1.msra.mxu0 0.0
  %155 = vmatprep.subr.mxu0 0.0
  %156 = vmatpush1.msra.mxu0 0.0
  %157 = vmatprep.subr.mxu0 0.0
  %158 = vmatpush1.msra.mxu0 0.0
  %159 = vmatprep.subr.mxu0 0.0
  %160 = vmatpush1.msra.mxu0 0.0
  %161 = vmatprep.subr.mxu0 0.0
  %162 = vmatpush1.msra.mxu0 0.0
  %163 = vmatprep.subr.mxu0 0.0
  %164 = vmatpush1.msra.mxu0 0.0
  %165 = vmatprep.subr.mxu0 0.0
  %166 = vmatpush1.msra.mxu0 0.0
  %167 = vmatprep.subr.mxu0 0.0
  %168 = vmatpush1.msra.mxu0 %v124
  %169 = vmatprep.subr.mxu0 0.0
  %170 = vmatpush1.msra.mxu0 %v123
  %171 = vmatprep.subr.mxu0 0.0
  %172 = vmatpush2.msra.mxu0 0.0
  %173 = vmatprep.subr.mxu0 0.0
  %174 = vmatpush2.msra.mxu0 0.0
  %175 = vmatprep.subr.mxu0 0.0
  %176 = vmatpush2.msra.mxu0 0.0
  %177 = vmatprep.subr.mxu0 0.0
  %178 = vmatpush2.msra.mxu0 0.0
  %179 = vmatprep.subr.mxu0 0.0
  %180 = vmatpush2.msra.mxu0 0.0
  %181 = vmatprep.subr.mxu0 0.0
  %182 = vmatpush2.msra.mxu0 0.0
  %183 = vmatprep.subr.mxu0 0.0
  %184 = vmatpush2.msra.mxu0 0.0
  %185 = vmatprep.subr.mxu0 0.0
  %186 = vmatpush2.msra.mxu0 0.0
  %187 = vmatprep.subr.mxu0 0.0
  %188 = vmatpush2.msra.mxu0 0.0
  %189 = vmatprep.subr.mxu0 0.0
  %190 = vmatpush2.msra.mxu0 0.0
  %191 = vmatprep.subr.mxu0 0.0
  %192 = vmatpush2.msra.mxu0 0.0
  %193 = vmatprep.subr.mxu0 0.0
  %194 = vmatpush2.msra.mxu0 0.0
  %195 = vmatprep.subr.mxu0 0.0
  %196 = vmatpush2.msra.mxu0 0.0
  %197 = vmatprep.subr.mxu0 0.0
  %198 = vmatpush2.msra.mxu0 0.0
  %199 = vmatprep.subr.mxu0 0.0
  %200 = vmatpush2.msra.mxu0 0.0
  %201 = vmatprep.subr.mxu0 0.0
  %202 = vmatpush2.msra.mxu0 0.0
  %203 = vmatprep.mubr.f32.mxu0 0.0
  %204 = vmatmul.mubr.f32.gmra.mxu0 %v134
  %v205 = vpop.f32.mrf.mxu0
  %v206 = vadd.f32 %v130, %v205
  %v207 = vpop.f32.mrf.mxu0
  %208 = vmatprep.mubr.f32.mxu0 0.0
  %209 = vmatmul.mubr.f32.gmra.mxu0 %v137
  %v210 = vpop.f32.mrf.mxu0
  %v211 = vadd.f32 %v130, %v210
  %v212 = vpop.f32.mrf.mxu0
  %213 = vdwg.mxu0
  %v214 = vadd.f32 %v206, %v26
  %v215 = vadd.f32 %v211, %v27
  %v216 = vld [vmem:[%s5] sm:$0xff]
  %v217 = vld [vmem:[%s5 + $0x8] sm:$0xff]
  %v218 = vld [vmem:[%s5 + $0x10] sm:$0xff]
  %v219 = vld [vmem:[%s5 + $0x18] sm:$0xff]
  %v220 = vld [vmem:[%s6] sm:$0x1]
  %v222 = vlaneseq
  %v223 = vshrl.u32 %v222, 7
  %v224 = vsub.s32 0, %v223
  %v225 = vrot.slane %v220, %v224
  %v228 = vsel %vm39, %v214, 0
  %v231 = vsel %vm39, %v215, 0
  %233 = vmatprep.subr.mxu0 0.0
  %234 = vmatpush1.msra.mxu0 0.0
  %235 = vmatprep.subr.mxu0 0.0
  %236 = vmatpush1.msra.mxu0 0.0
  %237 = vmatprep.subr.mxu0 0.0
  %238 = vmatpush1.msra.mxu0 0.0
  %239 = vmatprep.subr.mxu0 0.0
  %240 = vmatpush1.msra.mxu0 0.0
  %241 = vmatprep.subr.mxu0 0.0
  %242 = vmatpush1.msra.mxu0 0.0
  %243 = vmatprep.subr.mxu0 0.0
  %244 = vmatpush1.msra.mxu0 0.0
  %245 = vmatprep.subr.mxu0 0.0
  %246 = vmatpush1.msra.mxu0 0.0
  %247 = vmatprep.subr.mxu0 0.0
  %248 = vmatpush1.msra.mxu0 0.0
  %249 = vmatprep.subr.mxu0 0.0
  %250 = vmatpush1.msra.mxu0 0.0
  %251 = vmatprep.subr.mxu0 0.0
  %252 = vmatpush1.msra.mxu0 0.0
  %253 = vmatprep.subr.mxu0 0.0
  %254 = vmatpush1.msra.mxu0 0.0
  %255 = vmatprep.subr.mxu0 0.0
  %256 = vmatpush1.msra.mxu0 0.0
  %257 = vmatprep.subr.mxu0 0.0
  %258 = vmatpush1.msra.mxu0 %v219
  %259 = vmatprep.subr.mxu0 0.0
  %260 = vmatpush1.msra.mxu0 %v218
  %261 = vmatprep.subr.mxu0 0.0
  %262 = vmatpush1.msra.mxu0 %v217
  %263 = vmatprep.subr.mxu0 0.0
  %264 = vmatpush1.msra.mxu0 %v216
  %265 = vmatprep.subr.mxu0 0.0
  %266 = vmatpush2.msra.mxu0 0.0
  %267 = vmatprep.subr.mxu0 0.0
  %268 = vmatpush2.msra.mxu0 0.0
  %269 = vmatprep.subr.mxu0 0.0
  %270 = vmatpush2.msra.mxu0 0.0
  %271 = vmatprep.subr.mxu0 0.0
  %272 = vmatpush2.msra.mxu0 0.0
  %273 = vmatprep.subr.mxu0 0.0
  %274 = vmatpush2.msra.mxu0 0.0
  %275 = vmatprep.subr.mxu0 0.0
  %276 = vmatpush2.msra.mxu0 0.0
  %277 = vmatprep.subr.mxu0 0.0
  %278 = vmatpush2.msra.mxu0 0.0
  %279 = vmatprep.subr.mxu0 0.0
  %280 = vmatpush2.msra.mxu0 0.0
  %281 = vmatprep.subr.mxu0 0.0
  %282 = vmatpush2.msra.mxu0 0.0
  %283 = vmatprep.subr.mxu0 0.0
  %284 = vmatpush2.msra.mxu0 0.0
  %285 = vmatprep.subr.mxu0 0.0
  %286 = vmatpush2.msra.mxu0 0.0
  %287 = vmatprep.subr.mxu0 0.0
  %288 = vmatpush2.msra.mxu0 0.0
  %289 = vmatprep.subr.mxu0 0.0
  %290 = vmatpush2.msra.mxu0 0.0
  %291 = vmatprep.subr.mxu0 0.0
  %292 = vmatpush2.msra.mxu0 0.0
  %293 = vmatprep.subr.mxu0 0.0
  %294 = vmatpush2.msra.mxu0 0.0
  %295 = vmatprep.subr.mxu0 0.0
  %296 = vmatpush2.msra.mxu0 0.0
  %297 = vmatprep.mubr.f32.mxu0 0.0
  %298 = vmatmul.mubr.f32.gmra.mxu0 %v228
  %v299 = vpop.f32.mrf.mxu0
  %v300 = vadd.f32 %v225, %v299
  %v301 = vpop.f32.mrf.mxu0
  %302 = vmatprep.mubr.f32.mxu0 0.0
  %303 = vmatmul.mubr.f32.gmra.mxu0 %v231
  %v304 = vpop.f32.mrf.mxu0
  %v305 = vadd.f32 %v225, %v304
  %v306 = vpop.f32.mrf.mxu0
  %307 = vdwg.mxu0
  %308 = vst.msk [vmem:[%s7] sm:$0xff] %vm39, %v300
  %309 = vst.msk [vmem:[%s7 + $0x8] sm:$0xff] %vm39, %v305
  // Predicated region
  $region30: #{forward.5} parent=0 // pred_check
    _
  $region31: #{forward.5} parent=0 // pred_check_branch
    %311 = sbr.rel (0) target = $region33
  $region32: #{forward.5} parent=0 // pred_region
    _
  $region33: #{forward.5} parent=0 // pred_fallthru
    _
  // Predicated region
  $region34: #{forward.5} parent=0 // pred_check
    _
  $region35: #{forward.5} parent=0 // pred_check_branch
    %313 = sbr.rel (0) target = $region37
  $region36: #{forward.5} parent=0 // pred_region
    _
  $region37: #{forward.5} parent=0 // pred_fallthru
    _

// kernel: forward.6
$region0: #{forward.6}
  #allocation0 [shape = 'u32[]', space=smem, size = 0x4, offset = 0x4, fixed_abs, tag = 'smem constant byte address 0x4 - core index']
  #allocation1 [shape = 'u32[144,128]{1,0:T(1,128)}', space=vmem, size = 0x12000, scoped, tag = 'internal scratch']
  %s0 = inlined_call_operand.vmem [shape: f32[2,8,32], index: 0, kind: input, shape index: {}]
  %s1 = inlined_call_operand.vmem [shape: f32[2,4,32], index: 1, kind: input, shape index: {}]
  %s2 = inlined_call_operand.vmem [shape: f32[32,32], index: 2, kind: input, shape index: {}]
  %s3 = inlined_call_operand.vmem [shape: f32[2,4,32], index: 3, kind: output, shape index: {0}]
  %s4 = inlined_call_operand.hbm [shape: f32[1,1], index: 4, kind: output, shape index: {1}]
  %5 = xla_tuple %s3, %s4
  %s6 = sld [smem:[#allocation0]]
  $region30: #{forward.6} parent=0
    _
  %s8 = ssub.s32 1, %s6
  %s9 = scalar_select 0, %s8, %s6
  $region1: #{forward.6} parent=0
    #allocation2 [shape = 'u8[512]{0}', space=vmem, size = 0x400, scoped, tag = 'output window, operand 1, single buffered']
    #allocation3 [shape = 's32[1]{0}', space=sflag, size = 0x4, scoped, tag = 'scoped memory for forward.6']
    %10 = vsyncpa [#allocation3], 0
    // Predicated region
    $region2: #{forward.6} parent=1 // pred_check
      _
    $region3: #{forward.6} parent=1 // pred_check_branch
      %12 = sbr.rel (0) target = $region5
    $region4: #{forward.6} parent=1 // pred_region
      _
    $region5: #{forward.6} parent=1 // pred_fallthru
      _
    // Predicated region
    $region6: #{forward.6} parent=1 // pred_check
      _
    $region7: #{forward.6} parent=1 // pred_check_branch
      %14 = sbr.rel (0) target = $region9
    $region8: #{forward.6} parent=1 // pred_region
      _
    $region9: #{forward.6} parent=1 // pred_fallthru
      _
    // Predicated region
    $region10: #{forward.6} parent=1 // pred_check
      _
    $region11: #{forward.6} parent=1 // pred_check_branch
      %16 = sbr.rel (0) target = $region13
    $region12: #{forward.6} parent=1 // pred_region
      _
    $region13: #{forward.6} parent=1 // pred_fallthru
      _
    %v17 = vld [vmem:[%s0] sm:$0xff]
    %v18 = vld [vmem:[%s0 + $0x8] sm:$0xff]
    %v19 = vld [vmem:[%s1] sm:$0xf]
    %v20 = vld [vmem:[%s1 + $0x4] sm:$0xf]
    %v21 = vld [vmem:[%s2] sm:$0xff]
    %v22 = vld [vmem:[%s2 + $0x8] sm:$0xff]
    %v23 = vld [vmem:[%s2 + $0x10] sm:$0xff]
    %v24 = vld [vmem:[%s2 + $0x18] sm:$0xff]
    %vm25 = vcmask 261120
    %v27 = vsel %vm25, %v17, 0
    %v30 = vsel %vm25, %v18, 0
    %32 = vmatprep.subr.mxu0 0.0
    %33 = vmatpush1.msra.mxu0 0.0
    %34 = vmatprep.subr.mxu0 0.0
    %35 = vmatpush1.msra.mxu0 0.0
    %36 = vmatprep.subr.mxu0 0.0
    %37 = vmatpush1.msra.mxu0 0.0
    %38 = vmatprep.subr.mxu0 0.0
    %39 = vmatpush1.msra.mxu0 0.0
    %40 = vmatprep.subr.mxu0 0.0
    %41 = vmatpush1.msra.mxu0 0.0
    %42 = vmatprep.subr.mxu0 0.0
    %43 = vmatpush1.msra.mxu0 0.0
    %44 = vmatprep.subr.mxu0 0.0
    %45 = vmatpush1.msra.mxu0 0.0
    %46 = vmatprep.subr.mxu0 0.0
    %47 = vmatpush1.msra.mxu0 0.0
    %48 = vmatprep.subr.mxu0 0.0
    %49 = vmatpush1.msra.mxu0 0.0
    %50 = vmatprep.subr.mxu0 0.0
    %51 = vmatpush1.msra.mxu0 0.0
    %52 = vmatprep.subr.mxu0 0.0
    %53 = vmatpush1.msra.mxu0 0.0
    %54 = vmatprep.subr.mxu0 0.0
    %55 = vmatpush1.msra.mxu0 0.0
    %56 = vmatprep.subr.mxu0 0.0
    %57 = vmatpush1.msra.mxu0 %v24
    %58 = vmatprep.subr.mxu0 0.0
    %59 = vmatpush1.msra.mxu0 %v23
    %60 = vmatprep.subr.mxu0 0.0
    %61 = vmatpush1.msra.mxu0 %v22
    %62 = vmatprep.subr.mxu0 0.0
    %63 = vmatpush1.msra.mxu0 %v21
    %64 = vmatprep.subr.mxu0 0.0
    %65 = vmatpush2.msra.mxu0 0.0
    %66 = vmatprep.subr.mxu0 0.0
    %67 = vmatpush2.msra.mxu0 0.0
    %68 = vmatprep.subr.mxu0 0.0
    %69 = vmatpush2.msra.mxu0 0.0
    %70 = vmatprep.subr.mxu0 0.0
    %71 = vmatpush2.msra.mxu0 0.0
    %72 = vmatprep.subr.mxu0 0.0
    %73 = vmatpush2.msra.mxu0 0.0
    %74 = vmatprep.subr.mxu0 0.0
    %75 = vmatpush2.msra.mxu0 0.0
    %76 = vmatprep.subr.mxu0 0.0
    %77 = vmatpush2.msra.mxu0 0.0
    %78 = vmatprep.subr.mxu0 0.0
    %79 = vmatpush2.msra.mxu0 0.0
    %80 = vmatprep.subr.mxu0 0.0
    %81 = vmatpush2.msra.mxu0 0.0
    %82 = vmatprep.subr.mxu0 0.0
    %83 = vmatpush2.msra.mxu0 0.0
    %84 = vmatprep.subr.mxu0 0.0
    %85 = vmatpush2.msra.mxu0 0.0
    %86 = vmatprep.subr.mxu0 0.0
    %87 = vmatpush2.msra.mxu0 0.0
    %88 = vmatprep.subr.mxu0 0.0
    %89 = vmatpush2.msra.mxu0 0.0
    %90 = vmatprep.subr.mxu0 0.0
    %91 = vmatpush2.msra.mxu0 0.0
    %92 = vmatprep.subr.mxu0 0.0
    %93 = vmatpush2.msra.mxu0 0.0
    %94 = vmatprep.subr.mxu0 0.0
    %95 = vmatpush2.msra.mxu0 0.0
    %96 = vmatprep.mubr.f32.mxu0 0.0
    %97 = vmatmul.mubr.f32.gmra.mxu0 %v27
    %v98 = vpop.f32.mrf.mxu0
    %v99 = vadd.f32 0.0, %v98
    %v100 = vpop.f32.mrf.mxu0
    %101 = vmatprep.mubr.f32.mxu0 0.0
    %102 = vmatmul.mubr.f32.gmra.mxu0 %v30
    %v103 = vpop.f32.mrf.mxu0
    %v104 = vadd.f32 0.0, %v103
    %v105 = vpop.f32.mrf.mxu0
    %106 = vdwg.mxu0
    %v108 = vsel %vm25, %v19, 0
    %v111 = vsel %vm25, %v99, 0
    %113 = vmatprep.subr.mxu0 0.0
    %114 = vmatpush1.xpose.msra.mxu0 0.0
    %115 = vmatprep.subr.mxu0 0.0
    %116 = vmatpush1.xpose.msra.mxu0 0.0
    %117 = vmatprep.subr.mxu0 0.0
    %118 = vmatpush1.xpose.msra.mxu0 0.0
    %119 = vmatprep.subr.mxu0 0.0
    %120 = vmatpush1.xpose.msra.mxu0 0.0
    %121 = vmatprep.subr.mxu0 0.0
    %122 = vmatpush1.xpose.msra.mxu0 0.0
    %123 = vmatprep.subr.mxu0 0.0
    %124 = vmatpush1.xpose.msra.mxu0 0.0
    %125 = vmatprep.subr.mxu0 0.0
    %126 = vmatpush1.xpose.msra.mxu0 0.0
    %127 = vmatprep.subr.mxu0 0.0
    %128 = vmatpush1.xpose.msra.mxu0 0.0
    %129 = vmatprep.subr.mxu0 0.0
    %130 = vmatpush1.xpose.msra.mxu0 0.0
    %131 = vmatprep.subr.mxu0 0.0
    %132 = vmatpush1.xpose.msra.mxu0 0.0
    %133 = vmatprep.subr.mxu0 0.0
    %134 = vmatpush1.xpose.msra.mxu0 0.0
    %135 = vmatprep.subr.mxu0 0.0
    %136 = vmatpush1.xpose.msra.mxu0 0.0
    %137 = vmatprep.subr.mxu0 0.0
    %138 = vmatpush1.xpose.msra.mxu0 0.0
    %139 = vmatprep.subr.mxu0 0.0
    %140 = vmatpush1.xpose.msra.mxu0 0.0
    %141 = vmatprep.subr.mxu0 0.0
    %142 = vmatpush1.xpose.msra.mxu0 0.0
    %143 = vmatprep.subr.mxu0 0.0
    %144 = vmatpush1.xpose.msra.mxu0 %v111
    %145 = vmatprep.subr.mxu0 0.0
    %146 = vmatpush2.xpose.msra.mxu0 0.0
    %147 = vmatprep.subr.mxu0 0.0
    %148 = vmatpush2.xpose.msra.mxu0 0.0
    %149 = vmatprep.subr.mxu0 0.0
    %150 = vmatpush2.xpose.msra.mxu0 0.0
    %151 = vmatprep.subr.mxu0 0.0
    %152 = vmatpush2.xpose.msra.mxu0 0.0
    %153 = vmatprep.subr.mxu0 0.0
    %154 = vmatpush2.xpose.msra.mxu0 0.0
    %155 = vmatprep.subr.mxu0 0.0
    %156 = vmatpush2.xpose.msra.mxu0 0.0
    %157 = vmatprep.subr.mxu0 0.0
    %158 = vmatpush2.xpose.msra.mxu0 0.0
    %159 = vmatprep.subr.mxu0 0.0
    %160 = vmatpush2.xpose.msra.mxu0 0.0
    %161 = vmatprep.subr.mxu0 0.0
    %162 = vmatpush2.xpose.msra.mxu0 0.0
    %163 = vmatprep.subr.mxu0 0.0
    %164 = vmatpush2.xpose.msra.mxu0 0.0
    %165 = vmatprep.subr.mxu0 0.0
    %166 = vmatpush2.xpose.msra.mxu0 0.0
    %167 = vmatprep.subr.mxu0 0.0
    %168 = vmatpush2.xpose.msra.mxu0 0.0
    %169 = vmatprep.subr.mxu0 0.0
    %170 = vmatpush2.xpose.msra.mxu0 0.0
    %171 = vmatprep.subr.mxu0 0.0
    %172 = vmatpush2.xpose.msra.mxu0 0.0
    %173 = vmatprep.subr.mxu0 0.0
    %174 = vmatpush2.xpose.msra.mxu0 0.0
    %175 = vmatprep.subr.mxu0 0.0
    %176 = vmatpush2.xpose.msra.mxu0 0.0
    %177 = vmatprep.mubr.f32.mxu0 0.0
    %178 = vmatmul.mubr.f32.gmra.mxu0 %v108
    %v179 = vpop.f32.mrf.mxu0
    %v180 = vadd.f32 0.0, %v179
    %v181 = vpop.f32.mrf.mxu0
    %182 = vdwg.mxu0
    %v184 = vsel %vm25, %v20, 0
    %v187 = vsel %vm25, %v104, 0
    %189 = vmatprep.subr.mxu0 0.0
    %190 = vmatpush1.xpose.msra.mxu0 0.0
    %191 = vmatprep.subr.mxu0 0.0
    %192 = vmatpush1.xpose.msra.mxu0 0.0
    %193 = vmatprep.subr.mxu0 0.0
    %194 = vmatpush1.xpose.msra.mxu0 0.0
    %195 = vmatprep.subr.mxu0 0.0
    %196 = vmatpush1.xpose.msra.mxu0 0.0
    %197 = vmatprep.subr.mxu0 0.0
    %198 = vmatpush1.xpose.msra.mxu0 0.0
    %199 = vmatprep.subr.mxu0 0.0
    %200 = vmatpush1.xpose.msra.mxu0 0.0
    %201 = vmatprep.subr.mxu0 0.0
    %202 = vmatpush1.xpose.msra.mxu0 0.0
    %203 = vmatprep.subr.mxu0 0.0
    %204 = vmatpush1.xpose.msra.mxu0 0.0
    %205 = vmatprep.subr.mxu0 0.0
    %206 = vmatpush1.xpose.msra.mxu0 0.0
    %207 = vmatprep.subr.mxu0 0.0
    %208 = vmatpush1.xpose.msra.mxu0 0.0
    %209 = vmatprep.subr.mxu0 0.0
    %210 = vmatpush1.xpose.msra.mxu0 0.0
    %211 = vmatprep.subr.mxu0 0.0
    %212 = vmatpush1.xpose.msra.mxu0 0.0
    %213 = vmatprep.subr.mxu0 0.0
    %214 = vmatpush1.xpose.msra.mxu0 0.0
    %215 = vmatprep.subr.mxu0 0.0
    %216 = vmatpush1.xpose.msra.mxu0 0.0
    %217 = vmatprep.subr.mxu0 0.0
    %218 = vmatpush1.xpose.msra.mxu0 0.0
    %219 = vmatprep.subr.mxu0 0.0
    %220 = vmatpush1.xpose.msra.mxu0 %v187
    %221 = vmatprep.subr.mxu0 0.0
    %222 = vmatpush2.xpose.msra.mxu0 0.0
    %223 = vmatprep.subr.mxu0 0.0
    %224 = vmatpush2.xpose.msra.mxu0 0.0
    %225 = vmatprep.subr.mxu0 0.0
    %226 = vmatpush2.xpose.msra.mxu0 0.0
    %227 = vmatprep.subr.mxu0 0.0
    %228 = vmatpush2.xpose.msra.mxu0 0.0
    %229 = vmatprep.subr.mxu0 0.0
    %230 = vmatpush2.xpose.msra.mxu0 0.0
    %231 = vmatprep.subr.mxu0 0.0
    %232 = vmatpush2.xpose.msra.mxu0 0.0
    %233 = vmatprep.subr.mxu0 0.0
    %234 = vmatpush2.xpose.msra.mxu0 0.0
    %235 = vmatprep.subr.mxu0 0.0
    %236 = vmatpush2.xpose.msra.mxu0 0.0
    %237 = vmatprep.subr.mxu0 0.0
    %238 = vmatpush2.xpose.msra.mxu0 0.0
    %239 = vmatprep.subr.mxu0 0.0
    %240 = vmatpush2.xpose.msra.mxu0 0.0
    %241 = vmatprep.subr.mxu0 0.0
    %242 = vmatpush2.xpose.msra.mxu0 0.0
    %243 = vmatprep.subr.mxu0 0.0
    %244 = vmatpush2.xpose.msra.mxu0 0.0
    %245 = vmatprep.subr.mxu0 0.0
    %246 = vmatpush2.xpose.msra.mxu0 0.0
    %247 = vmatprep.subr.mxu0 0.0
    %248 = vmatpush2.xpose.msra.mxu0 0.0
    %249 = vmatprep.subr.mxu0 0.0
    %250 = vmatpush2.xpose.msra.mxu0 0.0
    %251 = vmatprep.subr.mxu0 0.0
    %252 = vmatpush2.xpose.msra.mxu0 0.0
    %253 = vmatprep.mubr.f32.mxu0 0.0
    %254 = vmatmul.mubr.f32.gmra.mxu0 %v184
    %v255 = vpop.f32.mrf.mxu0
    %v256 = vadd.f32 0.0, %v255
    %v257 = vpop.f32.mrf.mxu0
    %258 = vdwg.mxu0
    %v259 = vmul.f32 %v180, 0.03125
    %v260 = vmul.f32 %v256, 0.03125
    %vm261 = vcmask 60416
    %v262 = vsel %vm261, %v259, -inf
    %263 = vmax.xlane.f32.xlu0 %v262
    %v264 = vpop.xlane.xlu0 %263
    %v265 = vsel %vm261, %v260, -inf
    %266 = vmax.xlane.f32.xlu0 %v265
    %v267 = vpop.xlane.xlu0 %266
    %v268 = vsub.f32 %v259, %v264
    %v269 = vsub.f32 %v260, %v267
    %v270 = vmul.f32 %v268, 1.442695
    %v271 = vpow.pop %v270
    %v272 = vmul.f32 %v269, 1.442695
    %v273 = vpow.pop %v272
    %v274 = vsel %vm261, %v271, 0.0
    %275 = vadd.xlane.f32.xlu0 %v274
    %v276 = vpop.xlane.xlu0 %275
    %v277 = vsel %vm261, %v273, 0.0
    %278 = vadd.xlane.f32.xlu0 %v277
    %v279 = vpop.xlane.xlu0 %278
    %v280 = vrcp.pop %v276
    %v281 = vrcp.pop %v279
    %v282 = vmul.f32 %v271, %v280
    %v283 = vmul.f32 %v273, %v281
    %vm284 = vcmask 64512
    %v286 = vsel %vm284, %v282, 0
    %288 = vmatprep.subr.mxu0 0.0
    %289 = vmatpush1.msra.mxu0 0.0
    %290 = vmatprep.subr.mxu0 0.0
    %291 = vmatpush1.msra.mxu0 0.0
    %292 = vmatprep.subr.mxu0 0.0
    %293 = vmatpush1.msra.mxu0 0.0
    %294 = vmatprep.subr.mxu0 0.0
    %295 = vmatpush1.msra.mxu0 0.0
    %296 = vmatprep.subr.mxu0 0.0
    %297 = vmatpush1.msra.mxu0 0.0
    %298 = vmatprep.subr.mxu0 0.0
    %299 = vmatpush1.msra.mxu0 0.0
    %300 = vmatprep.subr.mxu0 0.0
    %301 = vmatpush1.msra.mxu0 0.0
    %302 = vmatprep.subr.mxu0 0.0
    %303 = vmatpush1.msra.mxu0 0.0
    %304 = vmatprep.subr.mxu0 0.0
    %305 = vmatpush1.msra.mxu0 0.0
    %306 = vmatprep.subr.mxu0 0.0
    %307 = vmatpush1.msra.mxu0 0.0
    %308 = vmatprep.subr.mxu0 0.0
    %309 = vmatpush1.msra.mxu0 0.0
    %310 = vmatprep.subr.mxu0 0.0
    %311 = vmatpush1.msra.mxu0 0.0
    %312 = vmatprep.subr.mxu0 0.0
    %313 = vmatpush1.msra.mxu0 0.0
    %314 = vmatprep.subr.mxu0 0.0
    %315 = vmatpush1.msra.mxu0 0.0
    %316 = vmatprep.subr.mxu0 0.0
    %317 = vmatpush1.msra.mxu0 0.0
    %318 = vmatprep.subr.mxu0 0.0
    %319 = vmatpush1.msra.mxu0 %v17
    %320 = vmatprep.subr.mxu0 0.0
    %321 = vmatpush2.msra.mxu0 0.0
    %322 = vmatprep.subr.mxu0 0.0
    %323 = vmatpush2.msra.mxu0 0.0
    %324 = vmatprep.subr.mxu0 0.0
    %325 = vmatpush2.msra.mxu0 0.0
    %326 = vmatprep.subr.mxu0 0.0
    %327 = vmatpush2.msra.mxu0 0.0
    %328 = vmatprep.subr.mxu0 0.0
    %329 = vmatpush2.msra.mxu0 0.0
    %330 = vmatprep.subr.mxu0 0.0
    %331 = vmatpush2.msra.mxu0 0.0
    %332 = vmatprep.subr.mxu0 0.0
    %333 = vmatpush2.msra.mxu0 0.0
    %334 = vmatprep.subr.mxu0 0.0
    %335 = vmatpush2.msra.mxu0 0.0
    %336 = vmatprep.subr.mxu0 0.0
    %337 = vmatpush2.msra.mxu0 0.0
    %338 = vmatprep.subr.mxu0 0.0
    %339 = vmatpush2.msra.mxu0 0.0
    %340 = vmatprep.subr.mxu0 0.0
    %341 = vmatpush2.msra.mxu0 0.0
    %342 = vmatprep.subr.mxu0 0.0
    %343 = vmatpush2.msra.mxu0 0.0
    %344 = vmatprep.subr.mxu0 0.0
    %345 = vmatpush2.msra.mxu0 0.0
    %346 = vmatprep.subr.mxu0 0.0
    %347 = vmatpush2.msra.mxu0 0.0
    %348 = vmatprep.subr.mxu0 0.0
    %349 = vmatpush2.msra.mxu0 0.0
    %350 = vmatprep.subr.mxu0 0.0
    %351 = vmatpush2.msra.mxu0 0.0
    %352 = vmatprep.mubr.f32.mxu0 0.0
    %353 = vmatmul.mubr.f32.gmra.mxu0 %v286
    %v354 = vpop.f32.mrf.mxu0
    %v355 = vadd.f32 0.0, %v354
    %v356 = vpop.f32.mrf.mxu0
    %357 = vdwg.mxu0
    %v359 = vsel %vm284, %v283, 0
    %361 = vmatprep.subr.mxu0 0.0
    %362 = vmatpush1.msra.mxu0 0.0
    %363 = vmatprep.subr.mxu0 0.0
    %364 = vmatpush1.msra.mxu0 0.0
    %365 = vmatprep.subr.mxu0 0.0
    %366 = vmatpush1.msra.mxu0 0.0
    %367 = vmatprep.subr.mxu0 0.0
    %368 = vmatpush1.msra.mxu0 0.0
    %369 = vmatprep.subr.mxu0 0.0
    %370 = vmatpush1.msra.mxu0 0.0
    %371 = vmatprep.subr.mxu0 0.0
    %372 = vmatpush1.msra.mxu0 0.0
    %373 = vmatprep.subr.mxu0 0.0
    %374 = vmatpush1.msra.mxu0 0.0
    %375 = vmatprep.subr.mxu0 0.0
    %376 = vmatpush1.msra.mxu0 0.0
    %377 = vmatprep.subr.mxu0 0.0
    %378 = vmatpush1.msra.mxu0 0.0
    %379 = vmatprep.subr.mxu0 0.0
    %380 = vmatpush1.msra.mxu0 0.0
    %381 = vmatprep.subr.mxu0 0.0
    %382 = vmatpush1.msra.mxu0 0.0
    %383 = vmatprep.subr.mxu0 0.0
    %384 = vmatpush1.msra.mxu0 0.0
    %385 = vmatprep.subr.mxu0 0.0
    %386 = vmatpush1.msra.mxu0 0.0
    %387 = vmatprep.subr.mxu0 0.0
    %388 = vmatpush1.msra.mxu0 0.0
    %389 = vmatprep.subr.mxu0 0.0
    %390 = vmatpush1.msra.mxu0 0.0
    %391 = vmatprep.subr.mxu0 0.0
    %392 = vmatpush1.msra.mxu0 %v18
    %393 = vmatprep.subr.mxu0 0.0
    %394 = vmatpush2.msra.mxu0 0.0
    %395 = vmatprep.subr.mxu0 0.0
    %396 = vmatpush2.msra.mxu0 0.0
    %397 = vmatprep.subr.mxu0 0.0
    %398 = vmatpush2.msra.mxu0 0.0
    %399 = vmatprep.subr.mxu0 0.0
    %400 = vmatpush2.msra.mxu0 0.0
    %401 = vmatprep.subr.mxu0 0.0
    %402 = vmatpush2.msra.mxu0 0.0
    %403 = vmatprep.subr.mxu0 0.0
    %404 = vmatpush2.msra.mxu0 0.0
    %405 = vmatprep.subr.mxu0 0.0
    %406 = vmatpush2.msra.mxu0 0.0
    %407 = vmatprep.subr.mxu0 0.0
    %408 = vmatpush2.msra.mxu0 0.0
    %409 = vmatprep.subr.mxu0 0.0
    %410 = vmatpush2.msra.mxu0 0.0
    %411 = vmatprep.subr.mxu0 0.0
    %412 = vmatpush2.msra.mxu0 0.0
    %413 = vmatprep.subr.mxu0 0.0
    %414 = vmatpush2.msra.mxu0 0.0
    %415 = vmatprep.subr.mxu0 0.0
    %416 = vmatpush2.msra.mxu0 0.0
    %417 = vmatprep.subr.mxu0 0.0
    %418 = vmatpush2.msra.mxu0 0.0
    %419 = vmatprep.subr.mxu0 0.0
    %420 = vmatpush2.msra.mxu0 0.0
    %421 = vmatprep.subr.mxu0 0.0
    %422 = vmatpush2.msra.mxu0 0.0
    %423 = vmatprep.subr.mxu0 0.0
    %424 = vmatpush2.msra.mxu0 0.0
    %425 = vmatprep.mubr.f32.mxu0 0.0
    %426 = vmatmul.mubr.f32.gmra.mxu0 %v359
    %v427 = vpop.f32.mrf.mxu0
    %v428 = vadd.f32 0.0, %v427
    %v429 = vpop.f32.mrf.mxu0
    %430 = vdwg.mxu0
    %v431 = vadd.f32 %v355, %v19
    %v432 = vadd.f32 %v428, %v20
    %vm433 = vcmask 257024
    %434 = vst.msk [vmem:[%s3] sm:$0xf] %vm433, %v431
    %435 = vst.msk [vmem:[%s3 + $0x4] sm:$0xf] %vm433, %v432
    %v436 = vsel %vm433, %v355, 0.0
    %v437 = vrot.slane %v436, 4
    %v438 = vadd.f32 %v436, %v437
    %v439 = vrot.slane %v438, 2
    %v440 = vadd.f32 %v438, %v439
    %v441 = vrot.slane %v440, 1
    %v442 = vadd.f32 %v440, %v441
    %v443 = vsel %vm433, %v428, 0.0
    %v444 = vrot.slane %v443, 4
    %v445 = vadd.f32 %v443, %v444
    %v446 = vrot.slane %v445, 2
    %v447 = vadd.f32 %v445, %v446
    %v448 = vrot.slane %v447, 1
    %v449 = vadd.f32 %v447, %v448
    %v450 = vrcp.pop 4.0
    %v451 = vmul.f32 %v442, %v450
    %v452 = vmul.f32 %v449, %v450
    %v453 = vsel %vm433, %v19, 0.0
    %v454 = vrot.slane %v453, 4
    %v455 = vadd.f32 %v453, %v454
    %v456 = vrot.slane %v455, 2
    %v457 = vadd.f32 %v455, %v456
    %v458 = vrot.slane %v457, 1
    %v459 = vadd.f32 %v457, %v458
    %v460 = vsel %vm433, %v20, 0.0
    %v461 = vrot.slane %v460, 4
    %v462 = vadd.f32 %v460, %v461
    %v463 = vrot.slane %v462, 2
    %v464 = vadd.f32 %v462, %v463
    %v465 = vrot.slane %v464, 1
    %v466 = vadd.f32 %v464, %v465
    %v467 = vmul.f32 %v459, %v450
    %v468 = vmul.f32 %v466, %v450
    %v469 = vmul.f32 %v451, %v451
    %v470 = vmul.f32 %v452, %v452
    %vm473 = vcmask 1041409
    %v474 = vsel %vm473, %v470, %v469
    %vm476 = vcmask 254976
    %v477 = vsel %vm476, %v474, 0.0
    %478 = vadd.xlane.f32.xlu0 %v477
    %v479 = vpop.xlane.xlu0 %478
    %v480 = vrsqrt.pop %v479
    %v481 = vmul.f32 %v479, %v480
    %vm482 = vcmp.eq.f32.partialorder %v479, inf
    %v483 = vsel %vm482, %v479, %v481
    %vm484 = vcmp.eq.f32.partialorder %v479, 0.0
    %v485 = vand.u32 %v479, 2147483648
    %v486 = vsel %vm484, %v485, %v483
    %v487 = vmax.f32 %v486, 1e-08
    %v489 = vrot.slane %v487, 1
    %v492 = vrcp.pop %v487
    %v493 = vmul.f32 %v451, %v492
    %v494 = vrcp.pop %v489
    %v495 = vmul.f32 %v452, %v494
    %v496 = vmul.f32 %v467, %v467
    %v497 = vmul.f32 %v468, %v468
    %v500 = vsel %vm473, %v497, %v496
    %v502 = vsel %vm476, %v500, 0.0
    %503 = vadd.xlane.f32.xlu0 %v502
    %v504 = vpop.xlane.xlu0 %503
    %v505 = vrsqrt.pop %v504
    %v506 = vmul.f32 %v504, %v505
    %vm507 = vcmp.eq.f32.partialorder %v504, inf
    %v508 = vsel %vm507, %v504, %v506
    %vm509 = vcmp.eq.f32.partialorder %v504, 0.0
    %v510 = vand.u32 %v504, 2147483648
    %v511 = vsel %vm509, %v510, %v508
    %v512 = vmax.f32 %v511, 1e-08
    %v514 = vrot.slane %v512, 1
    %v517 = vrcp.pop %v512
    %v518 = vmul.f32 %v467, %v517
    %v519 = vrcp.pop %v514
    %v520 = vmul.f32 %v468, %v519
    %v523 = vrot.slane %v495, 7
    %v524 = vsel %vm473, %v523, %v493
    %v527 = vrot.slane %v520, 7
    %v528 = vsel %vm473, %v527, %v518
    %v529 = vsel %vm25, %v524, 0
    %v531 = vsel %vm25, %v528, 0
    %533 = vmatprep.subr.mxu0 0.0
    %534 = vmatpush1.xpose.msra.mxu0 0.0
    %535 = vmatprep.subr.mxu0 0.0
    %536 = vmatpush1.xpose.msra.mxu0 0.0
    %537 = vmatprep.subr.mxu0 0.0
    %538 = vmatpush1.xpose.msra.mxu0 0.0
    %539 = vmatprep.subr.mxu0 0.0
    %540 = vmatpush1.xpose.msra.mxu0 0.0
    %541 = vmatprep.subr.mxu0 0.0
    %542 = vmatpush1.xpose.msra.mxu0 0.0
    %543 = vmatprep.subr.mxu0 0.0
    %544 = vmatpush1.xpose.msra.mxu0 0.0
    %545 = vmatprep.subr.mxu0 0.0
    %546 = vmatpush1.xpose.msra.mxu0 0.0
    %547 = vmatprep.subr.mxu0 0.0
    %548 = vmatpush1.xpose.msra.mxu0 0.0
    %549 = vmatprep.subr.mxu0 0.0
    %550 = vmatpush1.xpose.msra.mxu0 0.0
    %551 = vmatprep.subr.mxu0 0.0
    %552 = vmatpush1.xpose.msra.mxu0 0.0
    %553 = vmatprep.subr.mxu0 0.0
    %554 = vmatpush1.xpose.msra.mxu0 0.0
    %555 = vmatprep.subr.mxu0 0.0
    %556 = vmatpush1.xpose.msra.mxu0 0.0
    %557 = vmatprep.subr.mxu0 0.0
    %558 = vmatpush1.xpose.msra.mxu0 0.0
    %559 = vmatprep.subr.mxu0 0.0
    %560 = vmatpush1.xpose.msra.mxu0 0.0
    %561 = vmatprep.subr.mxu0 0.0
    %562 = vmatpush1.xpose.msra.mxu0 0.0
    %563 = vmatprep.subr.mxu0 0.0
    %564 = vmatpush1.xpose.msra.mxu0 %v531
    %565 = vmatprep.subr.mxu0 0.0
    %566 = vmatpush2.xpose.msra.mxu0 0.0
    %567 = vmatprep.subr.mxu0 0.0
    %568 = vmatpush2.xpose.msra.mxu0 0.0
    %569 = vmatprep.subr.mxu0 0.0
    %570 = vmatpush2.xpose.msra.mxu0 0.0
    %571 = vmatprep.subr.mxu0 0.0
    %572 = vmatpush2.xpose.msra.mxu0 0.0
    %573 = vmatprep.subr.mxu0 0.0
    %574 = vmatpush2.xpose.msra.mxu0 0.0
    %575 = vmatprep.subr.mxu0 0.0
    %576 = vmatpush2.xpose.msra.mxu0 0.0
    %577 = vmatprep.subr.mxu0 0.0
    %578 = vmatpush2.xpose.msra.mxu0 0.0
    %579 = vmatprep.subr.mxu0 0.0
    %580 = vmatpush2.xpose.msra.mxu0 0.0
    %581 = vmatprep.subr.mxu0 0.0
    %582 = vmatpush2.xpose.msra.mxu0 0.0
    %583 = vmatprep.subr.mxu0 0.0
    %584 = vmatpush2.xpose.msra.mxu0 0.0
    %585 = vmatprep.subr.mxu0 0.0
    %586 = vmatpush2.xpose.msra.mxu0 0.0
    %587 = vmatprep.subr.mxu0 0.0
    %588 = vmatpush2.xpose.msra.mxu0 0.0
    %589 = vmatprep.subr.mxu0 0.0
    %590 = vmatpush2.xpose.msra.mxu0 0.0
    %591 = vmatprep.subr.mxu0 0.0
    %592 = vmatpush2.xpose.msra.mxu0 0.0
    %593 = vmatprep.subr.mxu0 0.0
    %594 = vmatpush2.xpose.msra.mxu0 0.0
    %595 = vmatprep.subr.mxu0 0.0
    %596 = vmatpush2.xpose.msra.mxu0 0.0
    %597 = vmatprep.mubr.f32.mxu0 0.0
    %598 = vmatmul.mubr.f32.gmra.mxu0 %v529
    %v599 = vpop.f32.mrf.mxu0
    %v600 = vadd.f32 0.0, %v599
    %v601 = vpop.f32.mrf.mxu0
    %602 = vdwg.mxu0
    %v603 = vrcp.pop 0.07
    %v604 = vmul.f32 %v600, %v603
    %vm605 = vcmask 9216
    %v606 = vsel %vm605, %v604, -inf
    %607 = vmax.xlane.f32.xlu0 %v606
    %v608 = vpop.xlane.xlu0 %607
    %v609 = vsub.f32 %v604, %v608
    %v610 = vmul.f32 %v609, 1.442695
    %v611 = vpow.pop %v610
    %v612 = vsel %vm605, %v611, 0.0
    %613 = vadd.xlane.f32.xlu0 %v612
    %v614 = vpop.xlane.xlu0 %613
    %v615 = vlog2.pop %v614
    %v616 = vmul.f32 %v615, 0.6931472
    %v617 = vadd.f32 %v616, %v608
    %v618 = vlaneseq
    %v619 = vshrl.u32 %v618, 7
    %v620 = vlaneseq
    %v621 = vand.u32 %v620, 127
    %vm622 = vcmp.eq.s32.totalorder %v619, %v621
    %v623 = vsel %vm622, 1, 0
    %v624 = vcvt.s32.f32 %v623
    %v625 = vmul.f32 %v604, %v624
    %v626 = vsel %vm605, %v625, 0.0
    %627 = vadd.xlane.f32.xlu0 %v626
    %v628 = vpop.xlane.xlu0 %627
    %v629 = vsub.f32 %v617, %v628
    %vm630 = vcmask 1041408
    %v631 = vsel %vm630, %v629, 0.0
    %v632 = vrot.slane %v631, 4
    %v633 = vadd.f32 %v631, %v632
    %v634 = vrot.slane %v633, 2
    %v635 = vadd.f32 %v633, %v634
    %v636 = vrot.slane %v635, 1
    %v637 = vadd.f32 %v635, %v636
    %v638 = vrcp.pop 2.0
    %v639 = vmul.f32 %v637, %v638
    %vm640 = vcmask 0
    %641 = vst.msk [vmem:[#allocation2] sm:$0x1] %vm640, %v639
    // Predicated region
    $region14: #{forward.6} parent=1 // pred_check
      _
    $region15: #{forward.6} parent=1 // pred_check_branch
      %643 = sbr.rel (0) target = $region17
    $region16: #{forward.6} parent=1 // pred_region
      _
    $region17: #{forward.6} parent=1 // pred_fallthru
      _
    // Predicated region
    $region18: #{forward.6} parent=1 // pred_check
      _
    $region19: #{forward.6} parent=1 // pred_check_branch
      %645 = sbr.rel (0) target = $region21
    $region20: #{forward.6} parent=1 // pred_region
      %s647 = ssub.s32 16, 16
      %648 = vsyncadd [#allocation3], %s647
      %s650 = sshll.u32 [#allocation2], 4
      %s651 = int_to_ptr.vmem [resolvable:$true] %s650
      %653 = dma.vmem_to_hbm [thread:$0]  %s651, 16, %s4, [#allocation3]
    $region21: #{forward.6} parent=1 // pred_fallthru
      _
    // Predicated region
    $region22: #{forward.6} parent=1 // pred_check
      _
    $region23: #{forward.6} parent=1 // pred_check_branch
      %655 = sbr.rel (0) target = $region25
    $region24: #{forward.6} parent=1 // pred_region
      _
    $region25: #{forward.6} parent=1 // pred_fallthru
      _
    // Predicated region
    $region26: #{forward.6} parent=1 // pred_check
      _
    $region27: #{forward.6} parent=1 // pred_check_branch
      %657 = sbr.rel (0) target = $region29
    $region28: #{forward.6} parent=1 // pred_region
      %658 = dma.done [#allocation3], 16
    $region29: #{forward.6} parent=1 // pred_fallthru
      _
    %659 = vsyncpa [#allocation3], 1

// kernel: forward.7
$region0: #{forward.7}
  #allocation0 [shape = 'u32[]', space=smem, size = 0x4, offset = 0x4, fixed_abs, tag = 'smem constant byte address 0x4 - core index']
  #allocation1 [shape = 'u32[144,128]{1,0:T(1,128)}', space=vmem, size = 0x12000, scoped, tag = 'internal scratch']
  %s0 = inlined_call_operand.vmem [shape: f32[8,32], index: 0, kind: input, shape index: {}]
  %s1 = inlined_call_operand.vmem [shape: f32[32,16], index: 1, kind: input, shape index: {}]
  %s2 = inlined_call_operand.vmem [shape: f32[1,16], index: 2, kind: input, shape index: {}]
  %s3 = inlined_call_operand.vmem [shape: f32[16,32], index: 3, kind: input, shape index: {}]
  %s4 = inlined_call_operand.vmem [shape: f32[1,32], index: 4, kind: input, shape index: {}]
  %s5 = inlined_call_operand.vmem [shape: f32[32,128], index: 5, kind: input, shape index: {}]
  %s6 = inlined_call_operand.vmem [shape: f32[1,128], index: 6, kind: input, shape index: {}]
  %s7 = inlined_call_operand.vmem [shape: f32[8,128], index: 7, kind: output, shape index: {}]
  %s8 = sld [smem:[#allocation0]]
  $region38: #{forward.7} parent=0
    _
  %s10 = ssub.s32 1, %s8
  %s11 = scalar_select 0, %s10, %s8
  // Predicated region
  $region2: #{forward.7} parent=0 // pred_check
    _
  $region3: #{forward.7} parent=0 // pred_check_branch
    %13 = sbr.rel (0) target = $region5
  $region4: #{forward.7} parent=0 // pred_region
    _
  $region5: #{forward.7} parent=0 // pred_fallthru
    _
  // Predicated region
  $region6: #{forward.7} parent=0 // pred_check
    _
  $region7: #{forward.7} parent=0 // pred_check_branch
    %15 = sbr.rel (0) target = $region9
  $region8: #{forward.7} parent=0 // pred_region
    _
  $region9: #{forward.7} parent=0 // pred_fallthru
    _
  // Predicated region
  $region10: #{forward.7} parent=0 // pred_check
    _
  $region11: #{forward.7} parent=0 // pred_check_branch
    %17 = sbr.rel (0) target = $region13
  $region12: #{forward.7} parent=0 // pred_region
    _
  $region13: #{forward.7} parent=0 // pred_fallthru
    _
  // Predicated region
  $region14: #{forward.7} parent=0 // pred_check
    _
  $region15: #{forward.7} parent=0 // pred_check_branch
    %19 = sbr.rel (0) target = $region17
  $region16: #{forward.7} parent=0 // pred_region
    _
  $region17: #{forward.7} parent=0 // pred_fallthru
    _
  // Predicated region
  $region18: #{forward.7} parent=0 // pred_check
    _
  $region19: #{forward.7} parent=0 // pred_check_branch
    %21 = sbr.rel (0) target = $region21
  $region20: #{forward.7} parent=0 // pred_region
    _
  $region21: #{forward.7} parent=0 // pred_fallthru
    _
  // Predicated region
  $region22: #{forward.7} parent=0 // pred_check
    _
  $region23: #{forward.7} parent=0 // pred_check_branch
    %23 = sbr.rel (0) target = $region25
  $region24: #{forward.7} parent=0 // pred_region
    _
  $region25: #{forward.7} parent=0 // pred_fallthru
    _
  // Predicated region
  $region26: #{forward.7} parent=0 // pred_check
    _
  $region27: #{forward.7} parent=0 // pred_check_branch
    %25 = sbr.rel (0) target = $region29
  $region28: #{forward.7} parent=0 // pred_region
    _
  $region29: #{forward.7} parent=0 // pred_fallthru
    _
  %v26 = vld [vmem:[%s0] sm:$0xff]
  %v27 = vld [vmem:[%s1] sm:$0xff]
  %v28 = vld [vmem:[%s1 + $0x8] sm:$0xff]
  %v29 = vld [vmem:[%s1 + $0x10] sm:$0xff]
  %v30 = vld [vmem:[%s1 + $0x18] sm:$0xff]
  %v31 = vld [vmem:[%s2] sm:$0x1]
  %v33 = vlaneseq
  %v34 = vshrl.u32 %v33, 7
  %v35 = vsub.s32 0, %v34
  %v36 = vrot.slane %v31, %v35
  %vm38 = vcmask 261120
  %v40 = vsel %vm38, %v26, 0
  %42 = vmatprep.subr.mxu0 0.0
  %43 = vmatpush1.msra.mxu0 0.0
  %44 = vmatprep.subr.mxu0 0.0
  %45 = vmatpush1.msra.mxu0 0.0
  %46 = vmatprep.subr.mxu0 0.0
  %47 = vmatpush1.msra.mxu0 0.0
  %48 = vmatprep.subr.mxu0 0.0
  %49 = vmatpush1.msra.mxu0 0.0
  %50 = vmatprep.subr.mxu0 0.0
  %51 = vmatpush1.msra.mxu0 0.0
  %52 = vmatprep.subr.mxu0 0.0
  %53 = vmatpush1.msra.mxu0 0.0
  %54 = vmatprep.subr.mxu0 0.0
  %55 = vmatpush1.msra.mxu0 0.0
  %56 = vmatprep.subr.mxu0 0.0
  %57 = vmatpush1.msra.mxu0 0.0
  %58 = vmatprep.subr.mxu0 0.0
  %59 = vmatpush1.msra.mxu0 0.0
  %60 = vmatprep.subr.mxu0 0.0
  %61 = vmatpush1.msra.mxu0 0.0
  %62 = vmatprep.subr.mxu0 0.0
  %63 = vmatpush1.msra.mxu0 0.0
  %64 = vmatprep.subr.mxu0 0.0
  %65 = vmatpush1.msra.mxu0 0.0
  %66 = vmatprep.subr.mxu0 0.0
  %67 = vmatpush1.msra.mxu0 %v30
  %68 = vmatprep.subr.mxu0 0.0
  %69 = vmatpush1.msra.mxu0 %v29
  %70 = vmatprep.subr.mxu0 0.0
  %71 = vmatpush1.msra.mxu0 %v28
  %72 = vmatprep.subr.mxu0 0.0
  %73 = vmatpush1.msra.mxu0 %v27
  %74 = vmatprep.subr.mxu0 0.0
  %75 = vmatpush2.msra.mxu0 0.0
  %76 = vmatprep.subr.mxu0 0.0
  %77 = vmatpush2.msra.mxu0 0.0
  %78 = vmatprep.subr.mxu0 0.0
  %79 = vmatpush2.msra.mxu0 0.0
  %80 = vmatprep.subr.mxu0 0.0
  %81 = vmatpush2.msra.mxu0 0.0
  %82 = vmatprep.subr.mxu0 0.0
  %83 = vmatpush2.msra.mxu0 0.0
  %84 = vmatprep.subr.mxu0 0.0
  %85 = vmatpush2.msra.mxu0 0.0
  %86 = vmatprep.subr.mxu0 0.0
  %87 = vmatpush2.msra.mxu0 0.0
  %88 = vmatprep.subr.mxu0 0.0
  %89 = vmatpush2.msra.mxu0 0.0
  %90 = vmatprep.subr.mxu0 0.0
  %91 = vmatpush2.msra.mxu0 0.0
  %92 = vmatprep.subr.mxu0 0.0
  %93 = vmatpush2.msra.mxu0 0.0
  %94 = vmatprep.subr.mxu0 0.0
  %95 = vmatpush2.msra.mxu0 0.0
  %96 = vmatprep.subr.mxu0 0.0
  %97 = vmatpush2.msra.mxu0 0.0
  %98 = vmatprep.subr.mxu0 0.0
  %99 = vmatpush2.msra.mxu0 0.0
  %100 = vmatprep.subr.mxu0 0.0
  %101 = vmatpush2.msra.mxu0 0.0
  %102 = vmatprep.subr.mxu0 0.0
  %103 = vmatpush2.msra.mxu0 0.0
  %104 = vmatprep.subr.mxu0 0.0
  %105 = vmatpush2.msra.mxu0 0.0
  %106 = vmatprep.mubr.f32.mxu0 0.0
  %107 = vmatmul.mubr.f32.gmra.mxu0 %v40
  %v108 = vpop.f32.mrf.mxu0
  %v109 = vadd.f32 %v36, %v108
  %v110 = vpop.f32.mrf.mxu0
  %111 = vdwg.mxu0
  %v112 = vmax.f32 %v109, 0.0
  %v113 = vld [vmem:[%s3] sm:$0xff]
  %v114 = vld [vmem:[%s3 + $0x8] sm:$0xff]
  %v115 = vld [vmem:[%s4] sm:$0x1]
  %v117 = vlaneseq
  %v118 = vshrl.u32 %v117, 7
  %v119 = vsub.s32 0, %v118
  %v120 = vrot.slane %v115, %v119
  %vm122 = vcmask 130048
  %v124 = vsel %vm122, %v112, 0
  %126 = vmatprep.subr.mxu0 0.0
  %127 = vmatpush1.msra.mxu0 0.0
  %128 = vmatprep.subr.mxu0 0.0
  %129 = vmatpush1.msra.mxu0 0.0
  %130 = vmatprep.subr.mxu0 0.0
  %131 = vmatpush1.msra.mxu0 0.0
  %132 = vmatprep.subr.mxu0 0.0
  %133 = vmatpush1.msra.mxu0 0.0
  %134 = vmatprep.subr.mxu0 0.0
  %135 = vmatpush1.msra.mxu0 0.0
  %136 = vmatprep.subr.mxu0 0.0
  %137 = vmatpush1.msra.mxu0 0.0
  %138 = vmatprep.subr.mxu0 0.0
  %139 = vmatpush1.msra.mxu0 0.0
  %140 = vmatprep.subr.mxu0 0.0
  %141 = vmatpush1.msra.mxu0 0.0
  %142 = vmatprep.subr.mxu0 0.0
  %143 = vmatpush1.msra.mxu0 0.0
  %144 = vmatprep.subr.mxu0 0.0
  %145 = vmatpush1.msra.mxu0 0.0
  %146 = vmatprep.subr.mxu0 0.0
  %147 = vmatpush1.msra.mxu0 0.0
  %148 = vmatprep.subr.mxu0 0.0
  %149 = vmatpush1.msra.mxu0 0.0
  %150 = vmatprep.subr.mxu0 0.0
  %151 = vmatpush1.msra.mxu0 0.0
  %152 = vmatprep.subr.mxu0 0.0
  %153 = vmatpush1.msra.mxu0 0.0
  %154 = vmatprep.subr.mxu0 0.0
  %155 = vmatpush1.msra.mxu0 %v114
  %156 = vmatprep.subr.mxu0 0.0
  %157 = vmatpush1.msra.mxu0 %v113
  %158 = vmatprep.subr.mxu0 0.0
  %159 = vmatpush2.msra.mxu0 0.0
  %160 = vmatprep.subr.mxu0 0.0
  %161 = vmatpush2.msra.mxu0 0.0
  %162 = vmatprep.subr.mxu0 0.0
  %163 = vmatpush2.msra.mxu0 0.0
  %164 = vmatprep.subr.mxu0 0.0
  %165 = vmatpush2.msra.mxu0 0.0
  %166 = vmatprep.subr.mxu0 0.0
  %167 = vmatpush2.msra.mxu0 0.0
  %168 = vmatprep.subr.mxu0 0.0
  %169 = vmatpush2.msra.mxu0 0.0
  %170 = vmatprep.subr.mxu0 0.0
  %171 = vmatpush2.msra.mxu0 0.0
  %172 = vmatprep.subr.mxu0 0.0
  %173 = vmatpush2.msra.mxu0 0.0
  %174 = vmatprep.subr.mxu0 0.0
  %175 = vmatpush2.msra.mxu0 0.0
  %176 = vmatprep.subr.mxu0 0.0
  %177 = vmatpush2.msra.mxu0 0.0
  %178 = vmatprep.subr.mxu0 0.0
  %179 = vmatpush2.msra.mxu0 0.0
  %180 = vmatprep.subr.mxu0 0.0
  %181 = vmatpush2.msra.mxu0 0.0
  %182 = vmatprep.subr.mxu0 0.0
  %183 = vmatpush2.msra.mxu0 0.0
  %184 = vmatprep.subr.mxu0 0.0
  %185 = vmatpush2.msra.mxu0 0.0
  %186 = vmatprep.subr.mxu0 0.0
  %187 = vmatpush2.msra.mxu0 0.0
  %188 = vmatprep.subr.mxu0 0.0
  %189 = vmatpush2.msra.mxu0 0.0
  %190 = vmatprep.mubr.f32.mxu0 0.0
  %191 = vmatmul.mubr.f32.gmra.mxu0 %v124
  %v192 = vpop.f32.mrf.mxu0
  %v193 = vadd.f32 %v120, %v192
  %v194 = vpop.f32.mrf.mxu0
  %195 = vdwg.mxu0
  %v196 = vadd.f32 %v193, %v26
  %v197 = vld [vmem:[%s5] sm:$0xff]
  %v198 = vld [vmem:[%s5 + $0x8] sm:$0xff]
  %v199 = vld [vmem:[%s5 + $0x10] sm:$0xff]
  %v200 = vld [vmem:[%s5 + $0x18] sm:$0xff]
  %v201 = vld [vmem:[%s6] sm:$0x1]
  %v203 = vlaneseq
  %v204 = vshrl.u32 %v203, 7
  %v205 = vsub.s32 0, %v204
  %v206 = vrot.slane %v201, %v205
  %v209 = vsel %vm38, %v196, 0
  %211 = vmatprep.subr.mxu0 0.0
  %212 = vmatpush1.msra.mxu0 0.0
  %213 = vmatprep.subr.mxu0 0.0
  %214 = vmatpush1.msra.mxu0 0.0
  %215 = vmatprep.subr.mxu0 0.0
  %216 = vmatpush1.msra.mxu0 0.0
  %217 = vmatprep.subr.mxu0 0.0
  %218 = vmatpush1.msra.mxu0 0.0
  %219 = vmatprep.subr.mxu0 0.0
  %220 = vmatpush1.msra.mxu0 0.0
  %221 = vmatprep.subr.mxu0 0.0
  %222 = vmatpush1.msra.mxu0 0.0
  %223 = vmatprep.subr.mxu0 0.0
  %224 = vmatpush1.msra.mxu0 0.0
  %225 = vmatprep.subr.mxu0 0.0
  %226 = vmatpush1.msra.mxu0 0.0
  %227 = vmatprep.subr.mxu0 0.0
  %228 = vmatpush1.msra.mxu0 0.0
  %229 = vmatprep.subr.mxu0 0.0
  %230 = vmatpush1.msra.mxu0 0.0
  %231 = vmatprep.subr.mxu0 0.0
  %232 = vmatpush1.msra.mxu0 0.0
  %233 = vmatprep.subr.mxu0 0.0
  %234 = vmatpush1.msra.mxu0 0.0
  %235 = vmatprep.subr.mxu0 0.0
  %236 = vmatpush1.msra.mxu0 %v200
  %237 = vmatprep.subr.mxu0 0.0
  %238 = vmatpush1.msra.mxu0 %v199
  %239 = vmatprep.subr.mxu0 0.0
  %240 = vmatpush1.msra.mxu0 %v198
  %241 = vmatprep.subr.mxu0 0.0
  %242 = vmatpush1.msra.mxu0 %v197
  %243 = vmatprep.subr.mxu0 0.0
  %244 = vmatpush2.msra.mxu0 0.0
  %245 = vmatprep.subr.mxu0 0.0
  %246 = vmatpush2.msra.mxu0 0.0
  %247 = vmatprep.subr.mxu0 0.0
  %248 = vmatpush2.msra.mxu0 0.0
  %249 = vmatprep.subr.mxu0 0.0
  %250 = vmatpush2.msra.mxu0 0.0
  %251 = vmatprep.subr.mxu0 0.0
  %252 = vmatpush2.msra.mxu0 0.0
  %253 = vmatprep.subr.mxu0 0.0
  %254 = vmatpush2.msra.mxu0 0.0
  %255 = vmatprep.subr.mxu0 0.0
  %256 = vmatpush2.msra.mxu0 0.0
  %257 = vmatprep.subr.mxu0 0.0
  %258 = vmatpush2.msra.mxu0 0.0
  %259 = vmatprep.subr.mxu0 0.0
  %260 = vmatpush2.msra.mxu0 0.0
  %261 = vmatprep.subr.mxu0 0.0
  %262 = vmatpush2.msra.mxu0 0.0
  %263 = vmatprep.subr.mxu0 0.0
  %264 = vmatpush2.msra.mxu0 0.0
  %265 = vmatprep.subr.mxu0 0.0
  %266 = vmatpush2.msra.mxu0 0.0
  %267 = vmatprep.subr.mxu0 0.0
  %268 = vmatpush2.msra.mxu0 0.0
  %269 = vmatprep.subr.mxu0 0.0
  %270 = vmatpush2.msra.mxu0 0.0
  %271 = vmatprep.subr.mxu0 0.0
  %272 = vmatpush2.msra.mxu0 0.0
  %273 = vmatprep.subr.mxu0 0.0
  %274 = vmatpush2.msra.mxu0 0.0
  %275 = vmatprep.mubr.f32.mxu0 0.0
  %276 = vmatmul.mubr.f32.gmra.mxu0 %v209
  %v277 = vpop.f32.mrf.mxu0
  %v278 = vadd.f32 %v206, %v277
  %v279 = vpop.f32.mrf.mxu0
  %280 = vdwg.mxu0
  %281 = vst [vmem:[%s7] sm:$0xff] %v278
  // Predicated region
  $region30: #{forward.7} parent=0 // pred_check
    _
  $region31: #{forward.7} parent=0 // pred_check_branch
    %283 = sbr.rel (0) target = $region33
  $region32: #{forward.7} parent=0 // pred_region
    _
  $region33: #{forward.7} parent=0 // pred_fallthru
    _
  // Predicated region
  $region34: #{forward.7} parent=0 // pred_check
    _
  $region35: #{forward.7} parent=0 // pred_check_branch
    %285 = sbr.rel (0) target = $region37
  $region36: #{forward.7} parent=0 // pred_region
    _
  $region37: #{forward.7} parent=0 // pred_fallthru
    _

// kernel: forward.4
$region0: #{forward.4}
  #allocation0 [shape = 'u32[]', space=smem, size = 0x4, offset = 0x4, fixed_abs, tag = 'smem constant byte address 0x4 - core index']
  #allocation1 [shape = 'u32[144,128]{1,0:T(1,128)}', space=vmem, size = 0x12000, scoped, tag = 'internal scratch']
  %s0 = inlined_call_operand.vmem [shape: f32[16,16], index: 0, kind: input, shape index: {}]
  %s1 = inlined_call_operand.vmem [shape: f32[3,16,16], index: 1, kind: input, shape index: {}]
  %s2 = inlined_call_operand.vmem [shape: f32[16,48], index: 2, kind: input, shape index: {}]
  %s3 = inlined_call_operand.vmem [shape: f32[16,16], index: 3, kind: input, shape index: {}]
  %s4 = inlined_call_operand.vmem [shape: f32[1,16], index: 4, kind: input, shape index: {}]
  %s5 = inlined_call_operand.vmem [shape: f32[8,16], index: 5, kind: input, shape index: {}]
  %s6 = inlined_call_operand.vmem [shape: f32[8,8], index: 6, kind: input, shape index: {}]
  %s7 = inlined_call_operand.vmem [shape: f32[8,8], index: 7, kind: input, shape index: {}]
  %s8 = inlined_call_operand.vmem [shape: f32[16,16], index: 8, kind: input, shape index: {}]
  %s9 = inlined_call_operand.vmem [shape: f32[16,8], index: 9, kind: input, shape index: {}]
  %s10 = inlined_call_operand.vmem [shape: f32[16,8], index: 10, kind: input, shape index: {}]
  %s11 = inlined_call_operand.vmem [shape: f32[1,8], index: 11, kind: input, shape index: {}]
  %s12 = inlined_call_operand.vmem [shape: f32[8,16], index: 12, kind: input, shape index: {}]
  %s13 = inlined_call_operand.vmem [shape: f32[1,16], index: 13, kind: input, shape index: {}]
  %s14 = inlined_call_operand.vmem [shape: f32[16,32], index: 14, kind: input, shape index: {}]
  %s15 = inlined_call_operand.vmem [shape: f32[1,32], index: 15, kind: input, shape index: {}]
  %s16 = inlined_call_operand.vmem [shape: f32[16,32], index: 16, kind: output, shape index: {}]
  %s17 = sld [smem:[#allocation0]]
  $region74: #{forward.4} parent=0
    _
  %s19 = ssub.s32 1, %s17
  %s20 = scalar_select 0, %s19, %s17
  // Predicated region
  $region2: #{forward.4} parent=0 // pred_check
    _
  $region3: #{forward.4} parent=0 // pred_check_branch
    %22 = sbr.rel (0) target = $region5
  $region4: #{forward.4} parent=0 // pred_region
    _
  $region5: #{forward.4} parent=0 // pred_fallthru
    _
  // Predicated region
  $region6: #{forward.4} parent=0 // pred_check
    _
  $region7: #{forward.4} parent=0 // pred_check_branch
    %24 = sbr.rel (0) target = $region9
  $region8: #{forward.4} parent=0 // pred_region
    _
  $region9: #{forward.4} parent=0 // pred_fallthru
    _
  // Predicated region
  $region10: #{forward.4} parent=0 // pred_check
    _
  $region11: #{forward.4} parent=0 // pred_check_branch
    %26 = sbr.rel (0) target = $region13
  $region12: #{forward.4} parent=0 // pred_region
    _
  $region13: #{forward.4} parent=0 // pred_fallthru
    _
  // Predicated region
  $region14: #{forward.4} parent=0 // pred_check
    _
  $region15: #{forward.4} parent=0 // pred_check_branch
    %28 = sbr.rel (0) target = $region17
  $region16: #{forward.4} parent=0 // pred_region
    _
  $region17: #{forward.4} parent=0 // pred_fallthru
    _
  // Predicated region
  $region18: #{forward.4} parent=0 // pred_check
    _
  $region19: #{forward.4} parent=0 // pred_check_branch
    %30 = sbr.rel (0) target = $region21
  $region20: #{forward.4} parent=0 // pred_region
    _
  $region21: #{forward.4} parent=0 // pred_fallthru
    _
  // Predicated region
  $region22: #{forward.4} parent=0 // pred_check
    _
  $region23: #{forward.4} parent=0 // pred_check_branch
    %32 = sbr.rel (0) target = $region25
  $region24: #{forward.4} parent=0 // pred_region
    _
  $region25: #{forward.4} parent=0 // pred_fallthru
    _
  // Predicated region
  $region26: #{forward.4} parent=0 // pred_check
    _
  $region27: #{forward.4} parent=0 // pred_check_branch
    %34 = sbr.rel (0) target = $region29
  $region28: #{forward.4} parent=0 // pred_region
    _
  $region29: #{forward.4} parent=0 // pred_fallthru
    _
  // Predicated region
  $region30: #{forward.4} parent=0 // pred_check
    _
  $region31: #{forward.4} parent=0 // pred_check_branch
    %36 = sbr.rel (0) target = $region33
  $region32: #{forward.4} parent=0 // pred_region
    _
  $region33: #{forward.4} parent=0 // pred_fallthru
    _
  // Predicated region
  $region34: #{forward.4} parent=0 // pred_check
    _
  $region35: #{forward.4} parent=0 // pred_check_branch
    %38 = sbr.rel (0) target = $region37
  $region36: #{forward.4} parent=0 // pred_region
    _
  $region37: #{forward.4} parent=0 // pred_fallthru
    _
  // Predicated region
  $region38: #{forward.4} parent=0 // pred_check
    _
  $region39: #{forward.4} parent=0 // pred_check_branch
    %40 = sbr.rel (0) target = $region41
  $region40: #{forward.4} parent=0 // pred_region
    _
  $region41: #{forward.4} parent=0 // pred_fallthru
    _
  // Predicated region
  $region42: #{forward.4} parent=0 // pred_check
    _
  $region43: #{forward.4} parent=0 // pred_check_branch
    %42 = sbr.rel (0) target = $region45
  $region44: #{forward.4} parent=0 // pred_region
    _
  $region45: #{forward.4} parent=0 // pred_fallthru
    _
  // Predicated region
  $region46: #{forward.4} parent=0 // pred_check
    _
  $region47: #{forward.4} parent=0 // pred_check_branch
    %44 = sbr.rel (0) target = $region49
  $region48: #{forward.4} parent=0 // pred_region
    _
  $region49: #{forward.4} parent=0 // pred_fallthru
    _
  // Predicated region
  $region50: #{forward.4} parent=0 // pred_check
    _
  $region51: #{forward.4} parent=0 // pred_check_branch
    %46 = sbr.rel (0) target = $region53
  $region52: #{forward.4} parent=0 // pred_region
    _
  $region53: #{forward.4} parent=0 // pred_fallthru
    _
  // Predicated region
  $region54: #{forward.4} parent=0 // pred_check
    _
  $region55: #{forward.4} parent=0 // pred_check_branch
    %48 = sbr.rel (0) target = $region57
  $region56: #{forward.4} parent=0 // pred_region
    _
  $region57: #{forward.4} parent=0 // pred_fallthru
    _
  // Predicated region
  $region58: #{forward.4} parent=0 // pred_check
    _
  $region59: #{forward.4} parent=0 // pred_check_branch
    %50 = sbr.rel (0) target = $region61
  $region60: #{forward.4} parent=0 // pred_region
    _
  $region61: #{forward.4} parent=0 // pred_fallthru
    _
  // Predicated region
  $region62: #{forward.4} parent=0 // pred_check
    _
  $region63: #{forward.4} parent=0 // pred_check_branch
    %52 = sbr.rel (0) target = $region65
  $region64: #{forward.4} parent=0 // pred_region
    _
  $region65: #{forward.4} parent=0 // pred_fallthru
    _
  %v53 = vld [vmem:[%s0] sm:$0xff]
  %v54 = vld [vmem:[%s0 + $0x8] sm:$0xff]
  %v55 = vld [vmem:[%s2] sm:$0xff]
  %v56 = vld [vmem:[%s2 + $0x8] sm:$0xff]
  %vm57 = vcmask 130048
  %v59 = vsel %vm57, %v53, 0
  %v62 = vsel %vm57, %v54, 0
  %64 = vmatprep.subr.mxu0 0.0
  %65 = vmatpush1.msra.mxu0 0.0
  %66 = vmatprep.subr.mxu0 0.0
  %67 = vmatpush1.msra.mxu0 0.0
  %68 = vmatprep.subr.mxu0 0.0
  %69 = vmatpush1.msra.mxu0 0.0
  %70 = vmatprep.subr.mxu0 0.0
  %71 = vmatpush1.msra.mxu0 0.0
  %72 = vmatprep.subr.mxu0 0.0
  %73 = vmatpush1.msra.mxu0 0.0
  %74 = vmatprep.subr.mxu0 0.0
  %75 = vmatpush1.msra.mxu0 0.0
  %76 = vmatprep.subr.mxu0 0.0
  %77 = vmatpush1.msra.mxu0 0.0
  %78 = vmatprep.subr.mxu0 0.0
  %79 = vmatpush1.msra.mxu0 0.0
  %80 = vmatprep.subr.mxu0 0.0
  %81 = vmatpush1.msra.mxu0 0.0
  %82 = vmatprep.subr.mxu0 0.0
  %83 = vmatpush1.msra.mxu0 0.0
  %84 = vmatprep.subr.mxu0 0.0
  %85 = vmatpush1.msra.mxu0 0.0
  %86 = vmatprep.subr.mxu0 0.0
  %87 = vmatpush1.msra.mxu0 0.0
  %88 = vmatprep.subr.mxu0 0.0
  %89 = vmatpush1.msra.mxu0 0.0
  %90 = vmatprep.subr.mxu0 0.0
  %91 = vmatpush1.msra.mxu0 0.0
  %92 = vmatprep.subr.mxu0 0.0
  %93 = vmatpush1.msra.mxu0 %v56
  %94 = vmatprep.subr.mxu0 0.0
  %95 = vmatpush1.msra.mxu0 %v55
  %96 = vmatprep.subr.mxu0 0.0
  %97 = vmatpush2.msra.mxu0 0.0
  %98 = vmatprep.subr.mxu0 0.0
  %99 = vmatpush2.msra.mxu0 0.0
  %100 = vmatprep.subr.mxu0 0.0
  %101 = vmatpush2.msra.mxu0 0.0
  %102 = vmatprep.subr.mxu0 0.0
  %103 = vmatpush2.msra.mxu0 0.0
  %104 = vmatprep.subr.mxu0 0.0
  %105 = vmatpush2.msra.mxu0 0.0
  %106 = vmatprep.subr.mxu0 0.0
  %107 = vmatpush2.msra.mxu0 0.0
  %108 = vmatprep.subr.mxu0 0.0
  %109 = vmatpush2.msra.mxu0 0.0
  %110 = vmatprep.subr.mxu0 0.0
  %111 = vmatpush2.msra.mxu0 0.0
  %112 = vmatprep.subr.mxu0 0.0
  %113 = vmatpush2.msra.mxu0 0.0
  %114 = vmatprep.subr.mxu0 0.0
  %115 = vmatpush2.msra.mxu0 0.0
  %116 = vmatprep.subr.mxu0 0.0
  %117 = vmatpush2.msra.mxu0 0.0
  %118 = vmatprep.subr.mxu0 0.0
  %119 = vmatpush2.msra.mxu0 0.0
  %120 = vmatprep.subr.mxu0 0.0
  %121 = vmatpush2.msra.mxu0 0.0
  %122 = vmatprep.subr.mxu0 0.0
  %123 = vmatpush2.msra.mxu0 0.0
  %124 = vmatprep.subr.mxu0 0.0
  %125 = vmatpush2.msra.mxu0 0.0
  %126 = vmatprep.subr.mxu0 0.0
  %127 = vmatpush2.msra.mxu0 0.0
  %128 = vmatprep.mubr.f32.mxu0 0.0
  %129 = vmatmul.mubr.f32.gmra.mxu0 %v59
  %v130 = vpop.f32.mrf.mxu0
  %v131 = vadd.f32 0.0, %v130
  %v132 = vpop.f32.mrf.mxu0
  %133 = vmatprep.mubr.f32.mxu0 0.0
  %134 = vmatmul.mubr.f32.gmra.mxu0 %v62
  %v135 = vpop.f32.mrf.mxu0
  %v136 = vadd.f32 0.0, %v135
  %v137 = vpop.f32.mrf.mxu0
  %138 = vdwg.mxu0
  %v139 = vld [vmem:[%s3] sm:$0xff]
  %v140 = vld [vmem:[%s3 + $0x8] sm:$0xff]
  %v141 = vld [vmem:[%s4] sm:$0x1]
  %v143 = vlaneseq
  %v144 = vshrl.u32 %v143, 7
  %v145 = vsub.s32 0, %v144
  %v146 = vrot.slane %v141, %v145
  %148 = vmatprep.subr.mxu0 0.0
  %149 = vmatpush1.msra.mxu0 0.0
  %150 = vmatprep.subr.mxu0 0.0
  %151 = vmatpush1.msra.mxu0 0.0
  %152 = vmatprep.subr.mxu0 0.0
  %153 = vmatpush1.msra.mxu0 0.0
  %154 = vmatprep.subr.mxu0 0.0
  %155 = vmatpush1.msra.mxu0 0.0
  %156 = vmatprep.subr.mxu0 0.0
  %157 = vmatpush1.msra.mxu0 0.0
  %158 = vmatprep.subr.mxu0 0.0
  %159 = vmatpush1.msra.mxu0 0.0
  %160 = vmatprep.subr.mxu0 0.0
  %161 = vmatpush1.msra.mxu0 0.0
  %162 = vmatprep.subr.mxu0 0.0
  %163 = vmatpush1.msra.mxu0 0.0
  %164 = vmatprep.subr.mxu0 0.0
  %165 = vmatpush1.msra.mxu0 0.0
  %166 = vmatprep.subr.mxu0 0.0
  %167 = vmatpush1.msra.mxu0 0.0
  %168 = vmatprep.subr.mxu0 0.0
  %169 = vmatpush1.msra.mxu0 0.0
  %170 = vmatprep.subr.mxu0 0.0
  %171 = vmatpush1.msra.mxu0 0.0
  %172 = vmatprep.subr.mxu0 0.0
  %173 = vmatpush1.msra.mxu0 0.0
  %174 = vmatprep.subr.mxu0 0.0
  %175 = vmatpush1.msra.mxu0 0.0
  %176 = vmatprep.subr.mxu0 0.0
  %177 = vmatpush1.msra.mxu0 %v140
  %178 = vmatprep.subr.mxu0 0.0
  %179 = vmatpush1.msra.mxu0 %v139
  %180 = vmatprep.subr.mxu0 0.0
  %181 = vmatpush2.msra.mxu0 0.0
  %182 = vmatprep.subr.mxu0 0.0
  %183 = vmatpush2.msra.mxu0 0.0
  %184 = vmatprep.subr.mxu0 0.0
  %185 = vmatpush2.msra.mxu0 0.0
  %186 = vmatprep.subr.mxu0 0.0
  %187 = vmatpush2.msra.mxu0 0.0
  %188 = vmatprep.subr.mxu0 0.0
  %189 = vmatpush2.msra.mxu0 0.0
  %190 = vmatprep.subr.mxu0 0.0
  %191 = vmatpush2.msra.mxu0 0.0
  %192 = vmatprep.subr.mxu0 0.0
  %193 = vmatpush2.msra.mxu0 0.0
  %194 = vmatprep.subr.mxu0 0.0
  %195 = vmatpush2.msra.mxu0 0.0
  %196 = vmatprep.subr.mxu0 0.0
  %197 = vmatpush2.msra.mxu0 0.0
  %198 = vmatprep.subr.mxu0 0.0
  %199 = vmatpush2.msra.mxu0 0.0
  %200 = vmatprep.subr.mxu0 0.0
  %201 = vmatpush2.msra.mxu0 0.0
  %202 = vmatprep.subr.mxu0 0.0
  %203 = vmatpush2.msra.mxu0 0.0
  %204 = vmatprep.subr.mxu0 0.0
  %205 = vmatpush2.msra.mxu0 0.0
  %206 = vmatprep.subr.mxu0 0.0
  %207 = vmatpush2.msra.mxu0 0.0
  %208 = vmatprep.subr.mxu0 0.0
  %209 = vmatpush2.msra.mxu0 0.0
  %210 = vmatprep.subr.mxu0 0.0
  %211 = vmatpush2.msra.mxu0 0.0
  %212 = vmatprep.mubr.f32.mxu0 0.0
  %213 = vmatmul.mubr.f32.gmra.mxu0 %v59
  %v214 = vpop.f32.mrf.mxu0
  %v215 = vadd.f32 %v146, %v214
  %v216 = vpop.f32.mrf.mxu0
  %217 = vmatprep.mubr.f32.mxu0 0.0
  %218 = vmatmul.mubr.f32.gmra.mxu0 %v62
  %v219 = vpop.f32.mrf.mxu0
  %v220 = vadd.f32 %v146, %v219
  %v221 = vpop.f32.mrf.mxu0
  %222 = vdwg.mxu0
  %v223 = vld [vmem:[%s1] sm:$0xff]
  %v224 = vld [vmem:[%s1 + $0x8] sm:$0xff]
  %v226 = vsel %vm57, %v223, 0
  %v229 = vsel %vm57, %v224, 0
  %231 = vmatprep.subr.mxu0 0.0
  %232 = vmatpush1.msra.mxu0 0.0
  %233 = vmatprep.subr.mxu0 0.0
  %234 = vmatpush1.msra.mxu0 0.0
  %235 = vmatprep.subr.mxu0 0.0
  %236 = vmatpush1.msra.mxu0 0.0
  %237 = vmatprep.subr.mxu0 0.0
  %238 = vmatpush1.msra.mxu0 0.0
  %239 = vmatprep.subr.mxu0 0.0
  %240 = vmatpush1.msra.mxu0 0.0
  %241 = vmatprep.subr.mxu0 0.0
  %242 = vmatpush1.msra.mxu0 0.0
  %243 = vmatprep.subr.mxu0 0.0
  %244 = vmatpush1.msra.mxu0 0.0
  %245 = vmatprep.subr.mxu0 0.0
  %246 = vmatpush1.msra.mxu0 0.0
  %247 = vmatprep.subr.mxu0 0.0
  %248 = vmatpush1.msra.mxu0 0.0
  %249 = vmatprep.subr.mxu0 0.0
  %250 = vmatpush1.msra.mxu0 0.0
  %251 = vmatprep.subr.mxu0 0.0
  %252 = vmatpush1.msra.mxu0 0.0
  %253 = vmatprep.subr.mxu0 0.0
  %254 = vmatpush1.msra.mxu0 0.0
  %255 = vmatprep.subr.mxu0 0.0
  %256 = vmatpush1.msra.mxu0 0.0
  %257 = vmatprep.subr.mxu0 0.0
  %258 = vmatpush1.msra.mxu0 0.0
  %259 = vmatprep.subr.mxu0 0.0
  %260 = vmatpush1.msra.mxu0 %v136
  %261 = vmatprep.subr.mxu0 0.0
  %262 = vmatpush1.msra.mxu0 %v131
  %263 = vmatprep.subr.mxu0 0.0
  %264 = vmatpush2.msra.mxu0 0.0
  %265 = vmatprep.subr.mxu0 0.0
  %266 = vmatpush2.msra.mxu0 0.0
  %267 = vmatprep.subr.mxu0 0.0
  %268 = vmatpush2.msra.mxu0 0.0
  %269 = vmatprep.subr.mxu0 0.0
  %270 = vmatpush2.msra.mxu0 0.0
  %271 = vmatprep.subr.mxu0 0.0
  %272 = vmatpush2.msra.mxu0 0.0
  %273 = vmatprep.subr.mxu0 0.0
  %274 = vmatpush2.msra.mxu0 0.0
  %275 = vmatprep.subr.mxu0 0.0
  %276 = vmatpush2.msra.mxu0 0.0
  %277 = vmatprep.subr.mxu0 0.0
  %278 = vmatpush2.msra.mxu0 0.0
  %279 = vmatprep.subr.mxu0 0.0
  %280 = vmatpush2.msra.mxu0 0.0
  %281 = vmatprep.subr.mxu0 0.0
  %282 = vmatpush2.msra.mxu0 0.0
  %283 = vmatprep.subr.mxu0 0.0
  %284 = vmatpush2.msra.mxu0 0.0
  %285 = vmatprep.subr.mxu0 0.0
  %286 = vmatpush2.msra.mxu0 0.0
  %287 = vmatprep.subr.mxu0 0.0
  %288 = vmatpush2.msra.mxu0 0.0
  %289 = vmatprep.subr.mxu0 0.0
  %290 = vmatpush2.msra.mxu0 0.0
  %291 = vmatprep.subr.mxu0 0.0
  %292 = vmatpush2.msra.mxu0 0.0
  %293 = vmatprep.subr.mxu0 0.0
  %294 = vmatpush2.msra.mxu0 0.0
  %295 = vmatprep.mubr.f32.mxu0 0.0
  %296 = vmatmul.mubr.f32.gmra.mxu0 %v226
  %v297 = vpop.f32.mrf.mxu0
  %v298 = vadd.f32 0.0, %v297
  %v299 = vpop.f32.mrf.mxu0
  %300 = vmatprep.mubr.f32.mxu0 0.0
  %301 = vmatmul.mubr.f32.gmra.mxu0 %v229
  %v302 = vpop.f32.mrf.mxu0
  %v303 = vadd.f32 0.0, %v302
  %v304 = vpop.f32.mrf.mxu0
  %305 = vdwg.mxu0
  %v306 = vadd.f32 %v215, %v298
  %v307 = vadd.f32 %v220, %v303
  %s308 = scalar_lea.vmem %s1, 16
  %v309 = vld [vmem:[%s308] sm:$0xff]
  %v310 = vld [vmem:[%s308 + $0x8] sm:$0xff]
  %313 = vrot.lane.b32.xlu0 %v131, 112
  %v314 = vpop.permute.xlu0 %313
  %315 = vrot.lane.b32.xlu0 %v136, 112
  %v316 = vpop.permute.xlu0 %315
  %v320 = vsel %vm57, %v309, 0
  %v323 = vsel %vm57, %v310, 0
  %325 = vmatprep.subr.mxu0 0.0
  %326 = vmatpush1.msra.mxu0 0.0
  %327 = vmatprep.subr.mxu0 0.0
  %328 = vmatpush1.msra.mxu0 0.0
  %329 = vmatprep.subr.mxu0 0.0
  %330 = vmatpush1.msra.mxu0 0.0
  %331 = vmatprep.subr.mxu0 0.0
  %332 = vmatpush1.msra.mxu0 0.0
  %333 = vmatprep.subr.mxu0 0.0
  %334 = vmatpush1.msra.mxu0 0.0
  %335 = vmatprep.subr.mxu0 0.0
  %336 = vmatpush1.msra.mxu0 0.0
  %337 = vmatprep.subr.mxu0 0.0
  %338 = vmatpush1.msra.mxu0 0.0
  %339 = vmatprep.subr.mxu0 0.0
  %340 = vmatpush1.msra.mxu0 0.0
  %341 = vmatprep.subr.mxu0 0.0
  %342 = vmatpush1.msra.mxu0 0.0
  %343 = vmatprep.subr.mxu0 0.0
  %344 = vmatpush1.msra.mxu0 0.0
  %345 = vmatprep.subr.mxu0 0.0
  %346 = vmatpush1.msra.mxu0 0.0
  %347 = vmatprep.subr.mxu0 0.0
  %348 = vmatpush1.msra.mxu0 0.0
  %349 = vmatprep.subr.mxu0 0.0
  %350 = vmatpush1.msra.mxu0 0.0
  %351 = vmatprep.subr.mxu0 0.0
  %352 = vmatpush1.msra.mxu0 0.0
  %353 = vmatprep.subr.mxu0 0.0
  %354 = vmatpush1.msra.mxu0 %v316
  %355 = vmatprep.subr.mxu0 0.0
  %356 = vmatpush1.msra.mxu0 %v314
  %357 = vmatprep.subr.mxu0 0.0
  %358 = vmatpush2.msra.mxu0 0.0
  %359 = vmatprep.subr.mxu0 0.0
  %360 = vmatpush2.msra.mxu0 0.0
  %361 = vmatprep.subr.mxu0 0.0
  %362 = vmatpush2.msra.mxu0 0.0
  %363 = vmatprep.subr.mxu0 0.0
  %364 = vmatpush2.msra.mxu0 0.0
  %365 = vmatprep.subr.mxu0 0.0
  %366 = vmatpush2.msra.mxu0 0.0
  %367 = vmatprep.subr.mxu0 0.0
  %368 = vmatpush2.msra.mxu0 0.0
  %369 = vmatprep.subr.mxu0 0.0
  %370 = vmatpush2.msra.mxu0 0.0
  %371 = vmatprep.subr.mxu0 0.0
  %372 = vmatpush2.msra.mxu0 0.0
  %373 = vmatprep.subr.mxu0 0.0
  %374 = vmatpush2.msra.mxu0 0.0
  %375 = vmatprep.subr.mxu0 0.0
  %376 = vmatpush2.msra.mxu0 0.0
  %377 = vmatprep.subr.mxu0 0.0
  %378 = vmatpush2.msra.mxu0 0.0
  %379 = vmatprep.subr.mxu0 0.0
  %380 = vmatpush2.msra.mxu0 0.0
  %381 = vmatprep.subr.mxu0 0.0
  %382 = vmatpush2.msra.mxu0 0.0
  %383 = vmatprep.subr.mxu0 0.0
  %384 = vmatpush2.msra.mxu0 0.0
  %385 = vmatprep.subr.mxu0 0.0
  %386 = vmatpush2.msra.mxu0 0.0
  %387 = vmatprep.subr.mxu0 0.0
  %388 = vmatpush2.msra.mxu0 0.0
  %389 = vmatprep.mubr.f32.mxu0 0.0
  %390 = vmatmul.mubr.f32.gmra.mxu0 %v320
  %v391 = vpop.f32.mrf.mxu0
  %v392 = vadd.f32 0.0, %v391
  %v393 = vpop.f32.mrf.mxu0
  %394 = vmatprep.mubr.f32.mxu0 0.0
  %395 = vmatmul.mubr.f32.gmra.mxu0 %v323
  %v396 = vpop.f32.mrf.mxu0
  %v397 = vadd.f32 0.0, %v396
  %v398 = vpop.f32.mrf.mxu0
  %399 = vdwg.mxu0
  %v400 = vadd.f32 %v306, %v392
  %v401 = vadd.f32 %v307, %v397
  %s402 = scalar_lea.vmem %s1, 32
  %v403 = vld [vmem:[%s402] sm:$0xff]
  %v404 = vld [vmem:[%s402 + $0x8] sm:$0xff]
  %405 = vrot.lane.b32.xlu0 %v131, 96
  %v406 = vpop.permute.xlu0 %405
  %407 = vrot.lane.b32.xlu0 %v136, 96
  %v408 = vpop.permute.xlu0 %407
  %v412 = vsel %vm57, %v403, 0
  %v415 = vsel %vm57, %v404, 0
  %417 = vmatprep.subr.mxu0 0.0
  %418 = vmatpush1.msra.mxu0 0.0
  %419 = vmatprep.subr.mxu0 0.0
  %420 = vmatpush1.msra.mxu0 0.0
  %421 = vmatprep.subr.mxu0 0.0
  %422 = vmatpush1.msra.mxu0 0.0
  %423 = vmatprep.subr.mxu0 0.0
  %424 = vmatpush1.msra.mxu0 0.0
  %425 = vmatprep.subr.mxu0 0.0
  %426 = vmatpush1.msra.mxu0 0.0
  %427 = vmatprep.subr.mxu0 0.0
  %428 = vmatpush1.msra.mxu0 0.0
  %429 = vmatprep.subr.mxu0 0.0
  %430 = vmatpush1.msra.mxu0 0.0
  %431 = vmatprep.subr.mxu0 0.0
  %432 = vmatpush1.msra.mxu0 0.0
  %433 = vmatprep.subr.mxu0 0.0
  %434 = vmatpush1.msra.mxu0 0.0
  %435 = vmatprep.subr.mxu0 0.0
  %436 = vmatpush1.msra.mxu0 0.0
  %437 = vmatprep.subr.mxu0 0.0
  %438 = vmatpush1.msra.mxu0 0.0
  %439 = vmatprep.subr.mxu0 0.0
  %440 = vmatpush1.msra.mxu0 0.0
  %441 = vmatprep.subr.mxu0 0.0
  %442 = vmatpush1.msra.mxu0 0.0
  %443 = vmatprep.subr.mxu0 0.0
  %444 = vmatpush1.msra.mxu0 0.0
  %445 = vmatprep.subr.mxu0 0.0
  %446 = vmatpush1.msra.mxu0 %v408
  %447 = vmatprep.subr.mxu0 0.0
  %448 = vmatpush1.msra.mxu0 %v406
  %449 = vmatprep.subr.mxu0 0.0
  %450 = vmatpush2.msra.mxu0 0.0
  %451 = vmatprep.subr.mxu0 0.0
  %452 = vmatpush2.msra.mxu0 0.0
  %453 = vmatprep.subr.mxu0 0.0
  %454 = vmatpush2.msra.mxu0 0.0
  %455 = vmatprep.subr.mxu0 0.0
  %456 = vmatpush2.msra.mxu0 0.0
  %457 = vmatprep.subr.mxu0 0.0
  %458 = vmatpush2.msra.mxu0 0.0
  %459 = vmatprep.subr.mxu0 0.0
  %460 = vmatpush2.msra.mxu0 0.0
  %461 = vmatprep.subr.mxu0 0.0
  %462 = vmatpush2.msra.mxu0 0.0
  %463 = vmatprep.subr.mxu0 0.0
  %464 = vmatpush2.msra.mxu0 0.0
  %465 = vmatprep.subr.mxu0 0.0
  %466 = vmatpush2.msra.mxu0 0.0
  %467 = vmatprep.subr.mxu0 0.0
  %468 = vmatpush2.msra.mxu0 0.0
  %469 = vmatprep.subr.mxu0 0.0
  %470 = vmatpush2.msra.mxu0 0.0
  %471 = vmatprep.subr.mxu0 0.0
  %472 = vmatpush2.msra.mxu0 0.0
  %473 = vmatprep.subr.mxu0 0.0
  %474 = vmatpush2.msra.mxu0 0.0
  %475 = vmatprep.subr.mxu0 0.0
  %476 = vmatpush2.msra.mxu0 0.0
  %477 = vmatprep.subr.mxu0 0.0
  %478 = vmatpush2.msra.mxu0 0.0
  %479 = vmatprep.subr.mxu0 0.0
  %480 = vmatpush2.msra.mxu0 0.0
  %481 = vmatprep.mubr.f32.mxu0 0.0
  %482 = vmatmul.mubr.f32.gmra.mxu0 %v412
  %v483 = vpop.f32.mrf.mxu0
  %v484 = vadd.f32 0.0, %v483
  %v485 = vpop.f32.mrf.mxu0
  %486 = vmatprep.mubr.f32.mxu0 0.0
  %487 = vmatmul.mubr.f32.gmra.mxu0 %v415
  %v488 = vpop.f32.mrf.mxu0
  %v489 = vadd.f32 0.0, %v488
  %v490 = vpop.f32.mrf.mxu0
  %491 = vdwg.mxu0
  %v492 = vadd.f32 %v400, %v484
  %v493 = vadd.f32 %v401, %v489
  %v494 = vadd.f32 %v492, %v53
  %v495 = vadd.f32 %v493, %v54
  %v496 = vld [vmem:[%s5] sm:$0xff]
  %v498 = vsel %vm57, %v496, 0
  %500 = vmatprep.subr.mxu0 0.0
  %501 = vmatpush1.msra.mxu0 0.0
  %502 = vmatprep.subr.mxu0 0.0
  %503 = vmatpush1.msra.mxu0 0.0
  %504 = vmatprep.subr.mxu0 0.0
  %505 = vmatpush1.msra.mxu0 0.0
  %506 = vmatprep.subr.mxu0 0.0
  %507 = vmatpush1.msra.mxu0 0.0
  %508 = vmatprep.subr.mxu0 0.0
  %509 = vmatpush1.msra.mxu0 0.0
  %510 = vmatprep.subr.mxu0 0.0
  %511 = vmatpush1.msra.mxu0 0.0
  %512 = vmatprep.subr.mxu0 0.0
  %513 = vmatpush1.msra.mxu0 0.0
  %514 = vmatprep.subr.mxu0 0.0
  %515 = vmatpush1.msra.mxu0 0.0
  %516 = vmatprep.subr.mxu0 0.0
  %517 = vmatpush1.msra.mxu0 0.0
  %518 = vmatprep.subr.mxu0 0.0
  %519 = vmatpush1.msra.mxu0 0.0
  %520 = vmatprep.subr.mxu0 0.0
  %521 = vmatpush1.msra.mxu0 0.0
  %522 = vmatprep.subr.mxu0 0.0
  %523 = vmatpush1.msra.mxu0 0.0
  %524 = vmatprep.subr.mxu0 0.0
  %525 = vmatpush1.msra.mxu0 0.0
  %526 = vmatprep.subr.mxu0 0.0
  %527 = vmatpush1.msra.mxu0 0.0
  %528 = vmatprep.subr.mxu0 0.0
  %529 = vmatpush1.msra.mxu0 %v495
  %530 = vmatprep.subr.mxu0 0.0
  %531 = vmatpush1.msra.mxu0 %v494
  %532 = vmatprep.subr.mxu0 0.0
  %533 = vmatpush2.msra.mxu0 0.0
  %534 = vmatprep.subr.mxu0 0.0
  %535 = vmatpush2.msra.mxu0 0.0
  %536 = vmatprep.subr.mxu0 0.0
  %537 = vmatpush2.msra.mxu0 0.0
  %538 = vmatprep.subr.mxu0 0.0
  %539 = vmatpush2.msra.mxu0 0.0
  %540 = vmatprep.subr.mxu0 0.0
  %541 = vmatpush2.msra.mxu0 0.0
  %542 = vmatprep.subr.mxu0 0.0
  %543 = vmatpush2.msra.mxu0 0.0
  %544 = vmatprep.subr.mxu0 0.0
  %545 = vmatpush2.msra.mxu0 0.0
  %546 = vmatprep.subr.mxu0 0.0
  %547 = vmatpush2.msra.mxu0 0.0
  %548 = vmatprep.subr.mxu0 0.0
  %549 = vmatpush2.msra.mxu0 0.0
  %550 = vmatprep.subr.mxu0 0.0
  %551 = vmatpush2.msra.mxu0 0.0
  %552 = vmatprep.subr.mxu0 0.0
  %553 = vmatpush2.msra.mxu0 0.0
  %554 = vmatprep.subr.mxu0 0.0
  %555 = vmatpush2.msra.mxu0 0.0
  %556 = vmatprep.subr.mxu0 0.0
  %557 = vmatpush2.msra.mxu0 0.0
  %558 = vmatprep.subr.mxu0 0.0
  %559 = vmatpush2.msra.mxu0 0.0
  %560 = vmatprep.subr.mxu0 0.0
  %561 = vmatpush2.msra.mxu0 0.0
  %562 = vmatprep.subr.mxu0 0.0
  %563 = vmatpush2.msra.mxu0 0.0
  %564 = vmatprep.mubr.f32.mxu0 0.0
  %565 = vmatmul.mubr.f32.gmra.mxu0 %v498
  %v566 = vpop.f32.mrf.mxu0
  %v567 = vadd.f32 0.0, %v566
  %v568 = vpop.f32.mrf.mxu0
  %569 = vdwg.mxu0
  %v570 = vld [vmem:[%s6] sm:$0xff]
  %vm571 = vcmask 64512
  %v573 = vsel %vm571, %v570, 0
  %575 = vmatprep.subr.mxu0 0.0
  %576 = vmatpush1.msra.mxu0 0.0
  %577 = vmatprep.subr.mxu0 0.0
  %578 = vmatpush1.msra.mxu0 0.0
  %579 = vmatprep.subr.mxu0 0.0
  %580 = vmatpush1.msra.mxu0 0.0
  %581 = vmatprep.subr.mxu0 0.0
  %582 = vmatpush1.msra.mxu0 0.0
  %583 = vmatprep.subr.mxu0 0.0
  %584 = vmatpush1.msra.mxu0 0.0
  %585 = vmatprep.subr.mxu0 0.0
  %586 = vmatpush1.msra.mxu0 0.0
  %587 = vmatprep.subr.mxu0 0.0
  %588 = vmatpush1.msra.mxu0 0.0
  %589 = vmatprep.subr.mxu0 0.0
  %590 = vmatpush1.msra.mxu0 0.0
  %591 = vmatprep.subr.mxu0 0.0
  %592 = vmatpush1.msra.mxu0 0.0
  %593 = vmatprep.subr.mxu0 0.0
  %594 = vmatpush1.msra.mxu0 0.0
  %595 = vmatprep.subr.mxu0 0.0
  %596 = vmatpush1.msra.mxu0 0.0
  %597 = vmatprep.subr.mxu0 0.0
  %598 = vmatpush1.msra.mxu0 0.0
  %599 = vmatprep.subr.mxu0 0.0
  %600 = vmatpush1.msra.mxu0 0.0
  %601 = vmatprep.subr.mxu0 0.0
  %602 = vmatpush1.msra.mxu0 0.0
  %603 = vmatprep.subr.mxu0 0.0
  %604 = vmatpush1.msra.mxu0 0.0
  %605 = vmatprep.subr.mxu0 0.0
  %606 = vmatpush1.msra.mxu0 %v567
  %607 = vmatprep.subr.mxu0 0.0
  %608 = vmatpush2.msra.mxu0 0.0
  %609 = vmatprep.subr.mxu0 0.0
  %610 = vmatpush2.msra.mxu0 0.0
  %611 = vmatprep.subr.mxu0 0.0
  %612 = vmatpush2.msra.mxu0 0.0
  %613 = vmatprep.subr.mxu0 0.0
  %614 = vmatpush2.msra.mxu0 0.0
  %615 = vmatprep.subr.mxu0 0.0
  %616 = vmatpush2.msra.mxu0 0.0
  %617 = vmatprep.subr.mxu0 0.0
  %618 = vmatpush2.msra.mxu0 0.0
  %619 = vmatprep.subr.mxu0 0.0
  %620 = vmatpush2.msra.mxu0 0.0
  %621 = vmatprep.subr.mxu0 0.0
  %622 = vmatpush2.msra.mxu0 0.0
  %623 = vmatprep.subr.mxu0 0.0
  %624 = vmatpush2.msra.mxu0 0.0
  %625 = vmatprep.subr.mxu0 0.0
  %626 = vmatpush2.msra.mxu0 0.0
  %627 = vmatprep.subr.mxu0 0.0
  %628 = vmatpush2.msra.mxu0 0.0
  %629 = vmatprep.subr.mxu0 0.0
  %630 = vmatpush2.msra.mxu0 0.0
  %631 = vmatprep.subr.mxu0 0.0
  %632 = vmatpush2.msra.mxu0 0.0
  %633 = vmatprep.subr.mxu0 0.0
  %634 = vmatpush2.msra.mxu0 0.0
  %635 = vmatprep.subr.mxu0 0.0
  %636 = vmatpush2.msra.mxu0 0.0
  %637 = vmatprep.subr.mxu0 0.0
  %638 = vmatpush2.msra.mxu0 0.0
  %639 = vmatprep.mubr.f32.mxu0 0.0
  %640 = vmatmul.mubr.f32.gmra.mxu0 %v573
  %v641 = vpop.f32.mrf.mxu0
  %v642 = vadd.f32 0.0, %v641
  %v643 = vpop.f32.mrf.mxu0
  %644 = vdwg.mxu0
  %645 = vmatprep.subr.mxu0 0.0
  %646 = vmatpush1.msra.mxu0 0.0
  %647 = vmatprep.subr.mxu0 0.0
  %648 = vmatpush1.msra.mxu0 0.0
  %649 = vmatprep.subr.mxu0 0.0
  %650 = vmatpush1.msra.mxu0 0.0
  %651 = vmatprep.subr.mxu0 0.0
  %652 = vmatpush1.msra.mxu0 0.0
  %653 = vmatprep.subr.mxu0 0.0
  %654 = vmatpush1.msra.mxu0 0.0
  %655 = vmatprep.subr.mxu0 0.0
  %656 = vmatpush1.msra.mxu0 0.0
  %657 = vmatprep.subr.mxu0 0.0
  %658 = vmatpush1.msra.mxu0 0.0
  %659 = vmatprep.subr.mxu0 0.0
  %660 = vmatpush1.msra.mxu0 0.0
  %661 = vmatprep.subr.mxu0 0.0
  %662 = vmatpush1.msra.mxu0 0.0
  %663 = vmatprep.subr.mxu0 0.0
  %664 = vmatpush1.msra.mxu0 0.0
  %665 = vmatprep.subr.mxu0 0.0
  %666 = vmatpush1.msra.mxu0 0.0
  %667 = vmatprep.subr.mxu0 0.0
  %668 = vmatpush1.msra.mxu0 0.0
  %669 = vmatprep.subr.mxu0 0.0
  %670 = vmatpush1.msra.mxu0 0.0
  %671 = vmatprep.subr.mxu0 0.0
  %672 = vmatpush1.msra.mxu0 0.0
  %673 = vmatprep.subr.mxu0 0.0
  %674 = vmatpush1.msra.mxu0 0.0
  %675 = vmatprep.subr.mxu0 0.0
  %676 = vmatpush1.msra.mxu0 %v642
  %677 = vmatprep.subr.mxu0 0.0
  %678 = vmatpush2.msra.mxu0 0.0
  %679 = vmatprep.subr.mxu0 0.0
  %680 = vmatpush2.msra.mxu0 0.0
  %681 = vmatprep.subr.mxu0 0.0
  %682 = vmatpush2.msra.mxu0 0.0
  %683 = vmatprep.subr.mxu0 0.0
  %684 = vmatpush2.msra.mxu0 0.0
  %685 = vmatprep.subr.mxu0 0.0
  %686 = vmatpush2.msra.mxu0 0.0
  %687 = vmatprep.subr.mxu0 0.0
  %688 = vmatpush2.msra.mxu0 0.0
  %689 = vmatprep.subr.mxu0 0.0
  %690 = vmatpush2.msra.mxu0 0.0
  %691 = vmatprep.subr.mxu0 0.0
  %692 = vmatpush2.msra.mxu0 0.0
  %693 = vmatprep.subr.mxu0 0.0
  %694 = vmatpush2.msra.mxu0 0.0
  %695 = vmatprep.subr.mxu0 0.0
  %696 = vmatpush2.msra.mxu0 0.0
  %697 = vmatprep.subr.mxu0 0.0
  %698 = vmatpush2.msra.mxu0 0.0
  %699 = vmatprep.subr.mxu0 0.0
  %700 = vmatpush2.msra.mxu0 0.0
  %701 = vmatprep.subr.mxu0 0.0
  %702 = vmatpush2.msra.mxu0 0.0
  %703 = vmatprep.subr.mxu0 0.0
  %704 = vmatpush2.msra.mxu0 0.0
  %705 = vmatprep.subr.mxu0 0.0
  %706 = vmatpush2.msra.mxu0 0.0
  %707 = vmatprep.subr.mxu0 0.0
  %708 = vmatpush2.msra.mxu0 0.0
  %709 = vmatprep.mubr.f32.mxu0 0.0
  %710 = vmatmul.mubr.f32.gmra.mxu0 %v573
  %v711 = vpop.f32.mrf.mxu0
  %v712 = vadd.f32 0.0, %v711
  %v713 = vpop.f32.mrf.mxu0
  %714 = vdwg.mxu0
  %v715 = vld [vmem:[%s7] sm:$0xff]
  %v717 = vsel %vm571, %v715, 0
  %719 = vmatprep.subr.mxu0 0.0
  %720 = vmatpush1.msra.mxu0 0.0
  %721 = vmatprep.subr.mxu0 0.0
  %722 = vmatpush1.msra.mxu0 0.0
  %723 = vmatprep.subr.mxu0 0.0
  %724 = vmatpush1.msra.mxu0 0.0
  %725 = vmatprep.subr.mxu0 0.0
  %726 = vmatpush1.msra.mxu0 0.0
  %727 = vmatprep.subr.mxu0 0.0
  %728 = vmatpush1.msra.mxu0 0.0
  %729 = vmatprep.subr.mxu0 0.0
  %730 = vmatpush1.msra.mxu0 0.0
  %731 = vmatprep.subr.mxu0 0.0
  %732 = vmatpush1.msra.mxu0 0.0
  %733 = vmatprep.subr.mxu0 0.0
  %734 = vmatpush1.msra.mxu0 0.0
  %735 = vmatprep.subr.mxu0 0.0
  %736 = vmatpush1.msra.mxu0 0.0
  %737 = vmatprep.subr.mxu0 0.0
  %738 = vmatpush1.msra.mxu0 0.0
  %739 = vmatprep.subr.mxu0 0.0
  %740 = vmatpush1.msra.mxu0 0.0
  %741 = vmatprep.subr.mxu0 0.0
  %742 = vmatpush1.msra.mxu0 0.0
  %743 = vmatprep.subr.mxu0 0.0
  %744 = vmatpush1.msra.mxu0 0.0
  %745 = vmatprep.subr.mxu0 0.0
  %746 = vmatpush1.msra.mxu0 0.0
  %747 = vmatprep.subr.mxu0 0.0
  %748 = vmatpush1.msra.mxu0 0.0
  %749 = vmatprep.subr.mxu0 0.0
  %750 = vmatpush1.msra.mxu0 %v567
  %751 = vmatprep.subr.mxu0 0.0
  %752 = vmatpush2.msra.mxu0 0.0
  %753 = vmatprep.subr.mxu0 0.0
  %754 = vmatpush2.msra.mxu0 0.0
  %755 = vmatprep.subr.mxu0 0.0
  %756 = vmatpush2.msra.mxu0 0.0
  %757 = vmatprep.subr.mxu0 0.0
  %758 = vmatpush2.msra.mxu0 0.0
  %759 = vmatprep.subr.mxu0 0.0
  %760 = vmatpush2.msra.mxu0 0.0
  %761 = vmatprep.subr.mxu0 0.0
  %762 = vmatpush2.msra.mxu0 0.0
  %763 = vmatprep.subr.mxu0 0.0
  %764 = vmatpush2.msra.mxu0 0.0
  %765 = vmatprep.subr.mxu0 0.0
  %766 = vmatpush2.msra.mxu0 0.0
  %767 = vmatprep.subr.mxu0 0.0
  %768 = vmatpush2.msra.mxu0 0.0
  %769 = vmatprep.subr.mxu0 0.0
  %770 = vmatpush2.msra.mxu0 0.0
  %771 = vmatprep.subr.mxu0 0.0
  %772 = vmatpush2.msra.mxu0 0.0
  %773 = vmatprep.subr.mxu0 0.0
  %774 = vmatpush2.msra.mxu0 0.0
  %775 = vmatprep.subr.mxu0 0.0
  %776 = vmatpush2.msra.mxu0 0.0
  %777 = vmatprep.subr.mxu0 0.0
  %778 = vmatpush2.msra.mxu0 0.0
  %779 = vmatprep.subr.mxu0 0.0
  %780 = vmatpush2.msra.mxu0 0.0
  %781 = vmatprep.subr.mxu0 0.0
  %782 = vmatpush2.msra.mxu0 0.0
  %783 = vmatprep.mubr.f32.mxu0 0.0
  %784 = vmatmul.mubr.f32.gmra.mxu0 %v717
  %v785 = vpop.f32.mrf.mxu0
  %v786 = vadd.f32 0.0, %v785
  %v787 = vpop.f32.mrf.mxu0
  %788 = vdwg.mxu0
  %789 = vmatprep.subr.mxu0 0.0
  %790 = vmatpush1.msra.mxu0 0.0
  %791 = vmatprep.subr.mxu0 0.0
  %792 = vmatpush1.msra.mxu0 0.0
  %793 = vmatprep.subr.mxu0 0.0
  %794 = vmatpush1.msra.mxu0 0.0
  %795 = vmatprep.subr.mxu0 0.0
  %796 = vmatpush1.msra.mxu0 0.0
  %797 = vmatprep.subr.mxu0 0.0
  %798 = vmatpush1.msra.mxu0 0.0
  %799 = vmatprep.subr.mxu0 0.0
  %800 = vmatpush1.msra.mxu0 0.0
  %801 = vmatprep.subr.mxu0 0.0
  %802 = vmatpush1.msra.mxu0 0.0
  %803 = vmatprep.subr.mxu0 0.0
  %804 = vmatpush1.msra.mxu0 0.0
  %805 = vmatprep.subr.mxu0 0.0
  %806 = vmatpush1.msra.mxu0 0.0
  %807 = vmatprep.subr.mxu0 0.0
  %808 = vmatpush1.msra.mxu0 0.0
  %809 = vmatprep.subr.mxu0 0.0
  %810 = vmatpush1.msra.mxu0 0.0
  %811 = vmatprep.subr.mxu0 0.0
  %812 = vmatpush1.msra.mxu0 0.0
  %813 = vmatprep.subr.mxu0 0.0
  %814 = vmatpush1.msra.mxu0 0.0
  %815 = vmatprep.subr.mxu0 0.0
  %816 = vmatpush1.msra.mxu0 0.0
  %817 = vmatprep.subr.mxu0 0.0
  %818 = vmatpush1.msra.mxu0 0.0
  %819 = vmatprep.subr.mxu0 0.0
  %820 = vmatpush1.msra.mxu0 %v786
  %821 = vmatprep.subr.mxu0 0.0
  %822 = vmatpush2.msra.mxu0 0.0
  %823 = vmatprep.subr.mxu0 0.0
  %824 = vmatpush2.msra.mxu0 0.0
  %825 = vmatprep.subr.mxu0 0.0
  %826 = vmatpush2.msra.mxu0 0.0
  %827 = vmatprep.subr.mxu0 0.0
  %828 = vmatpush2.msra.mxu0 0.0
  %829 = vmatprep.subr.mxu0 0.0
  %830 = vmatpush2.msra.mxu0 0.0
  %831 = vmatprep.subr.mxu0 0.0
  %832 = vmatpush2.msra.mxu0 0.0
  %833 = vmatprep.subr.mxu0 0.0
  %834 = vmatpush2.msra.mxu0 0.0
  %835 = vmatprep.subr.mxu0 0.0
  %836 = vmatpush2.msra.mxu0 0.0
  %837 = vmatprep.subr.mxu0 0.0
  %838 = vmatpush2.msra.mxu0 0.0
  %839 = vmatprep.subr.mxu0 0.0
  %840 = vmatpush2.msra.mxu0 0.0
  %841 = vmatprep.subr.mxu0 0.0
  %842 = vmatpush2.msra.mxu0 0.0
  %843 = vmatprep.subr.mxu0 0.0
  %844 = vmatpush2.msra.mxu0 0.0
  %845 = vmatprep.subr.mxu0 0.0
  %846 = vmatpush2.msra.mxu0 0.0
  %847 = vmatprep.subr.mxu0 0.0
  %848 = vmatpush2.msra.mxu0 0.0
  %849 = vmatprep.subr.mxu0 0.0
  %850 = vmatpush2.msra.mxu0 0.0
  %851 = vmatprep.subr.mxu0 0.0
  %852 = vmatpush2.msra.mxu0 0.0
  %853 = vmatprep.mubr.f32.mxu0 0.0
  %854 = vmatmul.mubr.f32.gmra.mxu0 %v717
  %v855 = vpop.f32.mrf.mxu0
  %v856 = vadd.f32 0.0, %v855
  %v857 = vpop.f32.mrf.mxu0
  %858 = vdwg.mxu0
  %v859 = vadd.f32 %v642, %v712
  %v860 = vmul.f32 %v859, 0.5
  %v861 = vadd.f32 %v786, %v856
  %v862 = vmul.f32 %v861, 0.5
  %v863 = vadd.f32 %v860, %v862
  %v864 = vmul.f32 %v863, 0.5
  %v865 = vld [vmem:[%s8] sm:$0xff]
  %v866 = vld [vmem:[%s8 + $0x8] sm:$0xff]
  %v868 = vsel %vm57, %v865, 0
  %v871 = vsel %vm57, %v866, 0
  %873 = vmatprep.subr.mxu0 0.0
  %874 = vmatpush1.msra.mxu0 0.0
  %875 = vmatprep.subr.mxu0 0.0
  %876 = vmatpush1.msra.mxu0 0.0
  %877 = vmatprep.subr.mxu0 0.0
  %878 = vmatpush1.msra.mxu0 0.0
  %879 = vmatprep.subr.mxu0 0.0
  %880 = vmatpush1.msra.mxu0 0.0
  %881 = vmatprep.subr.mxu0 0.0
  %882 = vmatpush1.msra.mxu0 0.0
  %883 = vmatprep.subr.mxu0 0.0
  %884 = vmatpush1.msra.mxu0 0.0
  %885 = vmatprep.subr.mxu0 0.0
  %886 = vmatpush1.msra.mxu0 0.0
  %887 = vmatprep.subr.mxu0 0.0
  %888 = vmatpush1.msra.mxu0 0.0
  %889 = vmatprep.subr.mxu0 0.0
  %890 = vmatpush1.msra.mxu0 0.0
  %891 = vmatprep.subr.mxu0 0.0
  %892 = vmatpush1.msra.mxu0 0.0
  %893 = vmatprep.subr.mxu0 0.0
  %894 = vmatpush1.msra.mxu0 0.0
  %895 = vmatprep.subr.mxu0 0.0
  %896 = vmatpush1.msra.mxu0 0.0
  %897 = vmatprep.subr.mxu0 0.0
  %898 = vmatpush1.msra.mxu0 0.0
  %899 = vmatprep.subr.mxu0 0.0
  %900 = vmatpush1.msra.mxu0 0.0
  %901 = vmatprep.subr.mxu0 0.0
  %902 = vmatpush1.msra.mxu0 %v495
  %903 = vmatprep.subr.mxu0 0.0
  %904 = vmatpush1.msra.mxu0 %v494
  %905 = vmatprep.subr.mxu0 0.0
  %906 = vmatpush2.msra.mxu0 0.0
  %907 = vmatprep.subr.mxu0 0.0
  %908 = vmatpush2.msra.mxu0 0.0
  %909 = vmatprep.subr.mxu0 0.0
  %910 = vmatpush2.msra.mxu0 0.0
  %911 = vmatprep.subr.mxu0 0.0
  %912 = vmatpush2.msra.mxu0 0.0
  %913 = vmatprep.subr.mxu0 0.0
  %914 = vmatpush2.msra.mxu0 0.0
  %915 = vmatprep.subr.mxu0 0.0
  %916 = vmatpush2.msra.mxu0 0.0
  %917 = vmatprep.subr.mxu0 0.0
  %918 = vmatpush2.msra.mxu0 0.0
  %919 = vmatprep.subr.mxu0 0.0
  %920 = vmatpush2.msra.mxu0 0.0
  %921 = vmatprep.subr.mxu0 0.0
  %922 = vmatpush2.msra.mxu0 0.0
  %923 = vmatprep.subr.mxu0 0.0
  %924 = vmatpush2.msra.mxu0 0.0
  %925 = vmatprep.subr.mxu0 0.0
  %926 = vmatpush2.msra.mxu0 0.0
  %927 = vmatprep.subr.mxu0 0.0
  %928 = vmatpush2.msra.mxu0 0.0
  %929 = vmatprep.subr.mxu0 0.0
  %930 = vmatpush2.msra.mxu0 0.0
  %931 = vmatprep.subr.mxu0 0.0
  %932 = vmatpush2.msra.mxu0 0.0
  %933 = vmatprep.subr.mxu0 0.0
  %934 = vmatpush2.msra.mxu0 0.0
  %935 = vmatprep.subr.mxu0 0.0
  %936 = vmatpush2.msra.mxu0 0.0
  %937 = vmatprep.mubr.f32.mxu0 0.0
  %938 = vmatmul.mubr.f32.gmra.mxu0 %v868
  %v939 = vpop.f32.mrf.mxu0
  %v940 = vadd.f32 0.0, %v939
  %v941 = vpop.f32.mrf.mxu0
  %942 = vmatprep.mubr.f32.mxu0 0.0
  %943 = vmatmul.mubr.f32.gmra.mxu0 %v871
  %v944 = vpop.f32.mrf.mxu0
  %v945 = vadd.f32 0.0, %v944
  %v946 = vpop.f32.mrf.mxu0
  %947 = vdwg.mxu0
  %948 = vmatprep.subr.mxu0 0.0
  %949 = vmatpush1.msra.mxu0 0.0
  %950 = vmatprep.subr.mxu0 0.0
  %951 = vmatpush1.msra.mxu0 0.0
  %952 = vmatprep.subr.mxu0 0.0
  %953 = vmatpush1.msra.mxu0 0.0
  %954 = vmatprep.subr.mxu0 0.0
  %955 = vmatpush1.msra.mxu0 0.0
  %956 = vmatprep.subr.mxu0 0.0
  %957 = vmatpush1.msra.mxu0 0.0
  %958 = vmatprep.subr.mxu0 0.0
  %959 = vmatpush1.msra.mxu0 0.0
  %960 = vmatprep.subr.mxu0 0.0
  %961 = vmatpush1.msra.mxu0 0.0
  %962 = vmatprep.subr.mxu0 0.0
  %963 = vmatpush1.msra.mxu0 0.0
  %964 = vmatprep.subr.mxu0 0.0
  %965 = vmatpush1.msra.mxu0 0.0
  %966 = vmatprep.subr.mxu0 0.0
  %967 = vmatpush1.msra.mxu0 0.0
  %968 = vmatprep.subr.mxu0 0.0
  %969 = vmatpush1.msra.mxu0 0.0
  %970 = vmatprep.subr.mxu0 0.0
  %971 = vmatpush1.msra.mxu0 0.0
  %972 = vmatprep.subr.mxu0 0.0
  %973 = vmatpush1.msra.mxu0 0.0
  %974 = vmatprep.subr.mxu0 0.0
  %975 = vmatpush1.msra.mxu0 0.0
  %976 = vmatprep.subr.mxu0 0.0
  %977 = vmatpush1.msra.mxu0 %v945
  %978 = vmatprep.subr.mxu0 0.0
  %979 = vmatpush1.msra.mxu0 %v940
  %980 = vmatprep.subr.mxu0 0.0
  %981 = vmatpush2.msra.mxu0 0.0
  %982 = vmatprep.subr.mxu0 0.0
  %983 = vmatpush2.msra.mxu0 0.0
  %984 = vmatprep.subr.mxu0 0.0
  %985 = vmatpush2.msra.mxu0 0.0
  %986 = vmatprep.subr.mxu0 0.0
  %987 = vmatpush2.msra.mxu0 0.0
  %988 = vmatprep.subr.mxu0 0.0
  %989 = vmatpush2.msra.mxu0 0.0
  %990 = vmatprep.subr.mxu0 0.0
  %991 = vmatpush2.msra.mxu0 0.0
  %992 = vmatprep.subr.mxu0 0.0
  %993 = vmatpush2.msra.mxu0 0.0
  %994 = vmatprep.subr.mxu0 0.0
  %995 = vmatpush2.msra.mxu0 0.0
  %996 = vmatprep.subr.mxu0 0.0
  %997 = vmatpush2.msra.mxu0 0.0
  %998 = vmatprep.subr.mxu0 0.0
  %999 = vmatpush2.msra.mxu0 0.0
  %1000 = vmatprep.subr.mxu0 0.0
  %1001 = vmatpush2.msra.mxu0 0.0
  %1002 = vmatprep.subr.mxu0 0.0
  %1003 = vmatpush2.msra.mxu0 0.0
  %1004 = vmatprep.subr.mxu0 0.0
  %1005 = vmatpush2.msra.mxu0 0.0
  %1006 = vmatprep.subr.mxu0 0.0
  %1007 = vmatpush2.msra.mxu0 0.0
  %1008 = vmatprep.subr.mxu0 0.0
  %1009 = vmatpush2.msra.mxu0 0.0
  %1010 = vmatprep.subr.mxu0 0.0
  %1011 = vmatpush2.msra.mxu0 0.0
  %1012 = vmatprep.mubr.f32.mxu0 0.0
  %1013 = vmatmul.mubr.f32.gmra.mxu0 %v868
  %v1014 = vpop.f32.mrf.mxu0
  %v1015 = vadd.f32 0.0, %v1014
  %v1016 = vpop.f32.mrf.mxu0
  %1017 = vmatprep.mubr.f32.mxu0 0.0
  %1018 = vmatmul.mubr.f32.gmra.mxu0 %v871
  %v1019 = vpop.f32.mrf.mxu0
  %v1020 = vadd.f32 0.0, %v1019
  %v1021 = vpop.f32.mrf.mxu0
  %1022 = vdwg.mxu0
  %1023 = vmatprep.subr.mxu0 0.0
  %1024 = vmatpush1.msra.mxu0 0.0
  %1025 = vmatprep.subr.mxu0 0.0
  %1026 = vmatpush1.msra.mxu0 0.0
  %1027 = vmatprep.subr.mxu0 0.0
  %1028 = vmatpush1.msra.mxu0 0.0
  %1029 = vmatprep.subr.mxu0 0.0
  %1030 = vmatpush1.msra.mxu0 0.0
  %1031 = vmatprep.subr.mxu0 0.0
  %1032 = vmatpush1.msra.mxu0 0.0
  %1033 = vmatprep.subr.mxu0 0.0
  %1034 = vmatpush1.msra.mxu0 0.0
  %1035 = vmatprep.subr.mxu0 0.0
  %1036 = vmatpush1.msra.mxu0 0.0
  %1037 = vmatprep.subr.mxu0 0.0
  %1038 = vmatpush1.msra.mxu0 0.0
  %1039 = vmatprep.subr.mxu0 0.0
  %1040 = vmatpush1.msra.mxu0 0.0
  %1041 = vmatprep.subr.mxu0 0.0
  %1042 = vmatpush1.msra.mxu0 0.0
  %1043 = vmatprep.subr.mxu0 0.0
  %1044 = vmatpush1.msra.mxu0 0.0
  %1045 = vmatprep.subr.mxu0 0.0
  %1046 = vmatpush1.msra.mxu0 0.0
  %1047 = vmatprep.subr.mxu0 0.0
  %1048 = vmatpush1.msra.mxu0 0.0
  %1049 = vmatprep.subr.mxu0 0.0
  %1050 = vmatpush1.msra.mxu0 0.0
  %1051 = vmatprep.subr.mxu0 0.0
  %1052 = vmatpush1.msra.mxu0 %v1020
  %1053 = vmatprep.subr.mxu0 0.0
  %1054 = vmatpush1.msra.mxu0 %v1015
  %1055 = vmatprep.subr.mxu0 0.0
  %1056 = vmatpush2.msra.mxu0 0.0
  %1057 = vmatprep.subr.mxu0 0.0
  %1058 = vmatpush2.msra.mxu0 0.0
  %1059 = vmatprep.subr.mxu0 0.0
  %1060 = vmatpush2.msra.mxu0 0.0
  %1061 = vmatprep.subr.mxu0 0.0
  %1062 = vmatpush2.msra.mxu0 0.0
  %1063 = vmatprep.subr.mxu0 0.0
  %1064 = vmatpush2.msra.mxu0 0.0
  %1065 = vmatprep.subr.mxu0 0.0
  %1066 = vmatpush2.msra.mxu0 0.0
  %1067 = vmatprep.subr.mxu0 0.0
  %1068 = vmatpush2.msra.mxu0 0.0
  %1069 = vmatprep.subr.mxu0 0.0
  %1070 = vmatpush2.msra.mxu0 0.0
  %1071 = vmatprep.subr.mxu0 0.0
  %1072 = vmatpush2.msra.mxu0 0.0
  %1073 = vmatprep.subr.mxu0 0.0
  %1074 = vmatpush2.msra.mxu0 0.0
  %1075 = vmatprep.subr.mxu0 0.0
  %1076 = vmatpush2.msra.mxu0 0.0
  %1077 = vmatprep.subr.mxu0 0.0
  %1078 = vmatpush2.msra.mxu0 0.0
  %1079 = vmatprep.subr.mxu0 0.0
  %1080 = vmatpush2.msra.mxu0 0.0
  %1081 = vmatprep.subr.mxu0 0.0
  %1082 = vmatpush2.msra.mxu0 0.0
  %1083 = vmatprep.subr.mxu0 0.0
  %1084 = vmatpush2.msra.mxu0 0.0
  %1085 = vmatprep.subr.mxu0 0.0
  %1086 = vmatpush2.msra.mxu0 0.0
  %1087 = vmatprep.mubr.f32.mxu0 0.0
  %1088 = vmatmul.mubr.f32.gmra.mxu0 %v868
  %v1089 = vpop.f32.mrf.mxu0
  %v1090 = vadd.f32 0.0, %v1089
  %v1091 = vpop.f32.mrf.mxu0
  %1092 = vmatprep.mubr.f32.mxu0 0.0
  %1093 = vmatmul.mubr.f32.gmra.mxu0 %v871
  %v1094 = vpop.f32.mrf.mxu0
  %v1095 = vadd.f32 0.0, %v1094
  %v1096 = vpop.f32.mrf.mxu0
  %1097 = vdwg.mxu0
  %v1098 = vadd.f32 %v940, %v1015
  %v1099 = vadd.f32 %v945, %v1020
  %v1100 = vadd.f32 %v1098, %v1090
  %v1101 = vadd.f32 %v1099, %v1095
  %v1102 = vadd.f32 %v1100, %v494
  %v1103 = vadd.f32 %v1101, %v495
  %v1104 = vmul.f32 %v1102, 0.25
  %v1105 = vmul.f32 %v1103, 0.25
  %v1106 = vld [vmem:[%s9] sm:$0xff]
  %v1107 = vld [vmem:[%s9 + $0x8] sm:$0xff]
  %v1109 = vsel %vm571, %v1106, 0
  %v1112 = vsel %vm571, %v1107, 0
  %1114 = vmatprep.subr.mxu0 0.0
  %1115 = vmatpush1.msra.mxu0 0.0
  %1116 = vmatprep.subr.mxu0 0.0
  %1117 = vmatpush1.msra.mxu0 0.0
  %1118 = vmatprep.subr.mxu0 0.0
  %1119 = vmatpush1.msra.mxu0 0.0
  %1120 = vmatprep.subr.mxu0 0.0
  %1121 = vmatpush1.msra.mxu0 0.0
  %1122 = vmatprep.subr.mxu0 0.0
  %1123 = vmatpush1.msra.mxu0 0.0
  %1124 = vmatprep.subr.mxu0 0.0
  %1125 = vmatpush1.msra.mxu0 0.0
  %1126 = vmatprep.subr.mxu0 0.0
  %1127 = vmatpush1.msra.mxu0 0.0
  %1128 = vmatprep.subr.mxu0 0.0
  %1129 = vmatpush1.msra.mxu0 0.0
  %1130 = vmatprep.subr.mxu0 0.0
  %1131 = vmatpush1.msra.mxu0 0.0
  %1132 = vmatprep.subr.mxu0 0.0
  %1133 = vmatpush1.msra.mxu0 0.0
  %1134 = vmatprep.subr.mxu0 0.0
  %1135 = vmatpush1.msra.mxu0 0.0
  %1136 = vmatprep.subr.mxu0 0.0
  %1137 = vmatpush1.msra.mxu0 0.0
  %1138 = vmatprep.subr.mxu0 0.0
  %1139 = vmatpush1.msra.mxu0 0.0
  %1140 = vmatprep.subr.mxu0 0.0
  %1141 = vmatpush1.msra.mxu0 0.0
  %1142 = vmatprep.subr.mxu0 0.0
  %1143 = vmatpush1.msra.mxu0 0.0
  %1144 = vmatprep.subr.mxu0 0.0
  %1145 = vmatpush1.msra.mxu0 %v864
  %1146 = vmatprep.subr.mxu0 0.0
  %1147 = vmatpush2.msra.mxu0 0.0
  %1148 = vmatprep.subr.mxu0 0.0
  %1149 = vmatpush2.msra.mxu0 0.0
  %1150 = vmatprep.subr.mxu0 0.0
  %1151 = vmatpush2.msra.mxu0 0.0
  %1152 = vmatprep.subr.mxu0 0.0
  %1153 = vmatpush2.msra.mxu0 0.0
  %1154 = vmatprep.subr.mxu0 0.0
  %1155 = vmatpush2.msra.mxu0 0.0
  %1156 = vmatprep.subr.mxu0 0.0
  %1157 = vmatpush2.msra.mxu0 0.0
  %1158 = vmatprep.subr.mxu0 0.0
  %1159 = vmatpush2.msra.mxu0 0.0
  %1160 = vmatprep.subr.mxu0 0.0
  %1161 = vmatpush2.msra.mxu0 0.0
  %1162 = vmatprep.subr.mxu0 0.0
  %1163 = vmatpush2.msra.mxu0 0.0
  %1164 = vmatprep.subr.mxu0 0.0
  %1165 = vmatpush2.msra.mxu0 0.0
  %1166 = vmatprep.subr.mxu0 0.0
  %1167 = vmatpush2.msra.mxu0 0.0
  %1168 = vmatprep.subr.mxu0 0.0
  %1169 = vmatpush2.msra.mxu0 0.0
  %1170 = vmatprep.subr.mxu0 0.0
  %1171 = vmatpush2.msra.mxu0 0.0
  %1172 = vmatprep.subr.mxu0 0.0
  %1173 = vmatpush2.msra.mxu0 0.0
  %1174 = vmatprep.subr.mxu0 0.0
  %1175 = vmatpush2.msra.mxu0 0.0
  %1176 = vmatprep.subr.mxu0 0.0
  %1177 = vmatpush2.msra.mxu0 0.0
  %1178 = vmatprep.mubr.f32.mxu0 0.0
  %1179 = vmatmul.mubr.f32.gmra.mxu0 %v1109
  %v1180 = vpop.f32.mrf.mxu0
  %v1181 = vadd.f32 0.0, %v1180
  %v1182 = vpop.f32.mrf.mxu0
  %1183 = vmatprep.mubr.f32.mxu0 0.0
  %1184 = vmatmul.mubr.f32.gmra.mxu0 %v1112
  %v1185 = vpop.f32.mrf.mxu0
  %v1186 = vadd.f32 0.0, %v1185
  %v1187 = vpop.f32.mrf.mxu0
  %1188 = vdwg.mxu0
  %v1189 = vadd.f32 %v1104, %v1181
  %v1190 = vadd.f32 %v1105, %v1186
  %v1191 = vld [vmem:[%s10] sm:$0xff]
  %v1192 = vld [vmem:[%s10 + $0x8] sm:$0xff]
  %v1193 = vld [vmem:[%s11] sm:$0x1]
  %v1195 = vlaneseq
  %v1196 = vshrl.u32 %v1195, 7
  %v1197 = vsub.s32 0, %v1196
  %v1198 = vrot.slane %v1193, %v1197
  %v1201 = vsel %vm57, %v1189, 0
  %v1204 = vsel %vm57, %v1190, 0
  %1206 = vmatprep.subr.mxu0 0.0
  %1207 = vmatpush1.msra.mxu0 0.0
  %1208 = vmatprep.subr.mxu0 0.0
  %1209 = vmatpush1.msra.mxu0 0.0
  %1210 = vmatprep.subr.mxu0 0.0
  %1211 = vmatpush1.msra.mxu0 0.0
  %1212 = vmatprep.subr.mxu0 0.0
  %1213 = vmatpush1.msra.mxu0 0.0
  %1214 = vmatprep.subr.mxu0 0.0
  %1215 = vmatpush1.msra.mxu0 0.0
  %1216 = vmatprep.subr.mxu0 0.0
  %1217 = vmatpush1.msra.mxu0 0.0
  %1218 = vmatprep.subr.mxu0 0.0
  %1219 = vmatpush1.msra.mxu0 0.0
  %1220 = vmatprep.subr.mxu0 0.0
  %1221 = vmatpush1.msra.mxu0 0.0
  %1222 = vmatprep.subr.mxu0 0.0
  %1223 = vmatpush1.msra.mxu0 0.0
  %1224 = vmatprep.subr.mxu0 0.0
  %1225 = vmatpush1.msra.mxu0 0.0
  %1226 = vmatprep.subr.mxu0 0.0
  %1227 = vmatpush1.msra.mxu0 0.0
  %1228 = vmatprep.subr.mxu0 0.0
  %1229 = vmatpush1.msra.mxu0 0.0
  %1230 = vmatprep.subr.mxu0 0.0
  %1231 = vmatpush1.msra.mxu0 0.0
  %1232 = vmatprep.subr.mxu0 0.0
  %1233 = vmatpush1.msra.mxu0 0.0
  %1234 = vmatprep.subr.mxu0 0.0
  %1235 = vmatpush1.msra.mxu0 %v1192
  %1236 = vmatprep.subr.mxu0 0.0
  %1237 = vmatpush1.msra.mxu0 %v1191
  %1238 = vmatprep.subr.mxu0 0.0
  %1239 = vmatpush2.msra.mxu0 0.0
  %1240 = vmatprep.subr.mxu0 0.0
  %1241 = vmatpush2.msra.mxu0 0.0
  %1242 = vmatprep.subr.mxu0 0.0
  %1243 = vmatpush2.msra.mxu0 0.0
  %1244 = vmatprep.subr.mxu0 0.0
  %1245 = vmatpush2.msra.mxu0 0.0
  %1246 = vmatprep.subr.mxu0 0.0
  %1247 = vmatpush2.msra.mxu0 0.0
  %1248 = vmatprep.subr.mxu0 0.0
  %1249 = vmatpush2.msra.mxu0 0.0
  %1250 = vmatprep.subr.mxu0 0.0
  %1251 = vmatpush2.msra.mxu0 0.0
  %1252 = vmatprep.subr.mxu0 0.0
  %1253 = vmatpush2.msra.mxu0 0.0
  %1254 = vmatprep.subr.mxu0 0.0
  %1255 = vmatpush2.msra.mxu0 0.0
  %1256 = vmatprep.subr.mxu0 0.0
  %1257 = vmatpush2.msra.mxu0 0.0
  %1258 = vmatprep.subr.mxu0 0.0
  %1259 = vmatpush2.msra.mxu0 0.0
  %1260 = vmatprep.subr.mxu0 0.0
  %1261 = vmatpush2.msra.mxu0 0.0
  %1262 = vmatprep.subr.mxu0 0.0
  %1263 = vmatpush2.msra.mxu0 0.0
  %1264 = vmatprep.subr.mxu0 0.0
  %1265 = vmatpush2.msra.mxu0 0.0
  %1266 = vmatprep.subr.mxu0 0.0
  %1267 = vmatpush2.msra.mxu0 0.0
  %1268 = vmatprep.subr.mxu0 0.0
  %1269 = vmatpush2.msra.mxu0 0.0
  %1270 = vmatprep.mubr.f32.mxu0 0.0
  %1271 = vmatmul.mubr.f32.gmra.mxu0 %v1201
  %v1272 = vpop.f32.mrf.mxu0
  %v1273 = vadd.f32 %v1198, %v1272
  %v1274 = vpop.f32.mrf.mxu0
  %1275 = vmatprep.mubr.f32.mxu0 0.0
  %1276 = vmatmul.mubr.f32.gmra.mxu0 %v1204
  %v1277 = vpop.f32.mrf.mxu0
  %v1278 = vadd.f32 %v1198, %v1277
  %v1279 = vpop.f32.mrf.mxu0
  %1280 = vdwg.mxu0
  %v1281 = vmax.f32 %v1273, 0.0
  %v1282 = vmax.f32 %v1278, 0.0
  %v1283 = vld [vmem:[%s12] sm:$0xff]
  %v1284 = vld [vmem:[%s13] sm:$0x1]
  %v1286 = vlaneseq
  %v1287 = vshrl.u32 %v1286, 7
  %v1288 = vsub.s32 0, %v1287
  %v1289 = vrot.slane %v1284, %v1288
  %v1292 = vsel %vm571, %v1281, 0
  %v1295 = vsel %vm571, %v1282, 0
  %1297 = vmatprep.subr.mxu0 0.0
  %1298 = vmatpush1.msra.mxu0 0.0
  %1299 = vmatprep.subr.mxu0 0.0
  %1300 = vmatpush1.msra.mxu0 0.0
  %1301 = vmatprep.subr.mxu0 0.0
  %1302 = vmatpush1.msra.mxu0 0.0
  %1303 = vmatprep.subr.mxu0 0.0
  %1304 = vmatpush1.msra.mxu0 0.0
  %1305 = vmatprep.subr.mxu0 0.0
  %1306 = vmatpush1.msra.mxu0 0.0
  %1307 = vmatprep.subr.mxu0 0.0
  %1308 = vmatpush1.msra.mxu0 0.0
  %1309 = vmatprep.subr.mxu0 0.0
  %1310 = vmatpush1.msra.mxu0 0.0
  %1311 = vmatprep.subr.mxu0 0.0
  %1312 = vmatpush1.msra.mxu0 0.0
  %1313 = vmatprep.subr.mxu0 0.0
  %1314 = vmatpush1.msra.mxu0 0.0
  %1315 = vmatprep.subr.mxu0 0.0
  %1316 = vmatpush1.msra.mxu0 0.0
  %1317 = vmatprep.subr.mxu0 0.0
  %1318 = vmatpush1.msra.mxu0 0.0
  %1319 = vmatprep.subr.mxu0 0.0
  %1320 = vmatpush1.msra.mxu0 0.0
  %1321 = vmatprep.subr.mxu0 0.0
  %1322 = vmatpush1.msra.mxu0 0.0
  %1323 = vmatprep.subr.mxu0 0.0
  %1324 = vmatpush1.msra.mxu0 0.0
  %1325 = vmatprep.subr.mxu0 0.0
  %1326 = vmatpush1.msra.mxu0 0.0
  %1327 = vmatprep.subr.mxu0 0.0
  %1328 = vmatpush1.msra.mxu0 %v1283
  %1329 = vmatprep.subr.mxu0 0.0
  %1330 = vmatpush2.msra.mxu0 0.0
  %1331 = vmatprep.subr.mxu0 0.0
  %1332 = vmatpush2.msra.mxu0 0.0
  %1333 = vmatprep.subr.mxu0 0.0
  %1334 = vmatpush2.msra.mxu0 0.0
  %1335 = vmatprep.subr.mxu0 0.0
  %1336 = vmatpush2.msra.mxu0 0.0
  %1337 = vmatprep.subr.mxu0 0.0
  %1338 = vmatpush2.msra.mxu0 0.0
  %1339 = vmatprep.subr.mxu0 0.0
  %1340 = vmatpush2.msra.mxu0 0.0
  %1341 = vmatprep.subr.mxu0 0.0
  %1342 = vmatpush2.msra.mxu0 0.0
  %1343 = vmatprep.subr.mxu0 0.0
  %1344 = vmatpush2.msra.mxu0 0.0
  %1345 = vmatprep.subr.mxu0 0.0
  %1346 = vmatpush2.msra.mxu0 0.0
  %1347 = vmatprep.subr.mxu0 0.0
  %1348 = vmatpush2.msra.mxu0 0.0
  %1349 = vmatprep.subr.mxu0 0.0
  %1350 = vmatpush2.msra.mxu0 0.0
  %1351 = vmatprep.subr.mxu0 0.0
  %1352 = vmatpush2.msra.mxu0 0.0
  %1353 = vmatprep.subr.mxu0 0.0
  %1354 = vmatpush2.msra.mxu0 0.0
  %1355 = vmatprep.subr.mxu0 0.0
  %1356 = vmatpush2.msra.mxu0 0.0
  %1357 = vmatprep.subr.mxu0 0.0
  %1358 = vmatpush2.msra.mxu0 0.0
  %1359 = vmatprep.subr.mxu0 0.0
  %1360 = vmatpush2.msra.mxu0 0.0
  %1361 = vmatprep.mubr.f32.mxu0 0.0
  %1362 = vmatmul.mubr.f32.gmra.mxu0 %v1292
  %v1363 = vpop.f32.mrf.mxu0
  %v1364 = vadd.f32 %v1289, %v1363
  %v1365 = vpop.f32.mrf.mxu0
  %1366 = vmatprep.mubr.f32.mxu0 0.0
  %1367 = vmatmul.mubr.f32.gmra.mxu0 %v1295
  %v1368 = vpop.f32.mrf.mxu0
  %v1369 = vadd.f32 %v1289, %v1368
  %v1370 = vpop.f32.mrf.mxu0
  %1371 = vdwg.mxu0
  %v1372 = vadd.f32 %v1364, %v1189
  %v1373 = vadd.f32 %v1369, %v1190
  %v1374 = vld [vmem:[%s14] sm:$0xff]
  %v1375 = vld [vmem:[%s14 + $0x8] sm:$0xff]
  %v1376 = vld [vmem:[%s15] sm:$0x1]
  %v1378 = vlaneseq
  %v1379 = vshrl.u32 %v1378, 7
  %v1380 = vsub.s32 0, %v1379
  %v1381 = vrot.slane %v1376, %v1380
  %v1384 = vsel %vm57, %v1372, 0
  %v1387 = vsel %vm57, %v1373, 0
  %1389 = vmatprep.subr.mxu0 0.0
  %1390 = vmatpush1.msra.mxu0 0.0
  %1391 = vmatprep.subr.mxu0 0.0
  %1392 = vmatpush1.msra.mxu0 0.0
  %1393 = vmatprep.subr.mxu0 0.0
  %1394 = vmatpush1.msra.mxu0 0.0
  %1395 = vmatprep.subr.mxu0 0.0
  %1396 = vmatpush1.msra.mxu0 0.0
  %1397 = vmatprep.subr.mxu0 0.0
  %1398 = vmatpush1.msra.mxu0 0.0
  %1399 = vmatprep.subr.mxu0 0.0
  %1400 = vmatpush1.msra.mxu0 0.0
  %1401 = vmatprep.subr.mxu0 0.0
  %1402 = vmatpush1.msra.mxu0 0.0
  %1403 = vmatprep.subr.mxu0 0.0
  %1404 = vmatpush1.msra.mxu0 0.0
  %1405 = vmatprep.subr.mxu0 0.0
  %1406 = vmatpush1.msra.mxu0 0.0
  %1407 = vmatprep.subr.mxu0 0.0
  %1408 = vmatpush1.msra.mxu0 0.0
  %1409 = vmatprep.subr.mxu0 0.0
  %1410 = vmatpush1.msra.mxu0 0.0
  %1411 = vmatprep.subr.mxu0 0.0
  %1412 = vmatpush1.msra.mxu0 0.0
  %1413 = vmatprep.subr.mxu0 0.0
  %1414 = vmatpush1.msra.mxu0 0.0
  %1415 = vmatprep.subr.mxu0 0.0
  %1416 = vmatpush1.msra.mxu0 0.0
  %1417 = vmatprep.subr.mxu0 0.0
  %1418 = vmatpush1.msra.mxu0 %v1375
  %1419 = vmatprep.subr.mxu0 0.0
  %1420 = vmatpush1.msra.mxu0 %v1374
  %1421 = vmatprep.subr.mxu0 0.0
  %1422 = vmatpush2.msra.mxu0 0.0
  %1423 = vmatprep.subr.mxu0 0.0
  %1424 = vmatpush2.msra.mxu0 0.0
  %1425 = vmatprep.subr.mxu0 0.0
  %1426 = vmatpush2.msra.mxu0 0.0
  %1427 = vmatprep.subr.mxu0 0.0
  %1428 = vmatpush2.msra.mxu0 0.0
  %1429 = vmatprep.subr.mxu0 0.0
  %1430 = vmatpush2.msra.mxu0 0.0
  %1431 = vmatprep.subr.mxu0 0.0
  %1432 = vmatpush2.msra.mxu0 0.0
  %1433 = vmatprep.subr.mxu0 0.0
  %1434 = vmatpush2.msra.mxu0 0.0
  %1435 = vmatprep.subr.mxu0 0.0
  %1436 = vmatpush2.msra.mxu0 0.0
  %1437 = vmatprep.subr.mxu0 0.0
  %1438 = vmatpush2.msra.mxu0 0.0
  %1439 = vmatprep.subr.mxu0 0.0
  %1440 = vmatpush2.msra.mxu0 0.0
  %1441 = vmatprep.subr.mxu0 0.0
  %1442 = vmatpush2.msra.mxu0 0.0
  %1443 = vmatprep.subr.mxu0 0.0
  %1444 = vmatpush2.msra.mxu0 0.0
  %1445 = vmatprep.subr.mxu0 0.0
  %1446 = vmatpush2.msra.mxu0 0.0
  %1447 = vmatprep.subr.mxu0 0.0
  %1448 = vmatpush2.msra.mxu0 0.0
  %1449 = vmatprep.subr.mxu0 0.0
  %1450 = vmatpush2.msra.mxu0 0.0
  %1451 = vmatprep.subr.mxu0 0.0
  %1452 = vmatpush2.msra.mxu0 0.0
  %1453 = vmatprep.mubr.f32.mxu0 0.0
  %1454 = vmatmul.mubr.f32.gmra.mxu0 %v1384
  %v1455 = vpop.f32.mrf.mxu0
  %v1456 = vadd.f32 %v1381, %v1455
  %v1457 = vpop.f32.mrf.mxu0
  %1458 = vmatprep.mubr.f32.mxu0 0.0
  %1459 = vmatmul.mubr.f32.gmra.mxu0 %v1387
  %v1460 = vpop.f32.mrf.mxu0
  %v1461 = vadd.f32 %v1381, %v1460
  %v1462 = vpop.f32.mrf.mxu0
  %1463 = vdwg.mxu0
  %vm1464 = vcmask 261120
  %1465 = vst.msk [vmem:[%s16] sm:$0xff] %vm1464, %v1456
  %1466 = vst.msk [vmem:[%s16 + $0x8] sm:$0xff] %vm1464, %v1461
  // Predicated region
  $region66: #{forward.4} parent=0 // pred_check
    _
  $region67: #{forward.4} parent=0 // pred_check_branch
    %1468 = sbr.rel (0) target = $region69
  $region68: #{forward.4} parent=0 // pred_region
    _
  $region69: #{forward.4} parent=0 // pred_fallthru
    _
  // Predicated region
  $region70: #{forward.4} parent=0 // pred_check
    _
  $region71: #{forward.4} parent=0 // pred_check_branch
    %1470 = sbr.rel (0) target = $region73
  $region72: #{forward.4} parent=0 // pred_region
    _
  $region73: #{forward.4} parent=0 // pred_fallthru
    _

</llo_original>
